<compile_context>
chip_gen: v7x
topology: tpu7x:2x2x1
jax: 0.10.0
libtpu: 0.0.40
codegen_flags: <defaults>
</compile_context>

<pallas_src>
import jax
import jax.numpy as jnp
from jax.experimental import pallas as pl
from jax.experimental.pallas import tpu as pltpu


def _round_up(x, m):
    return (x + m - 1) // m * m


def _pick_th(h, cap=8):
    """Largest divisor of h that is <= cap: bounds per-block VMEM and gives the
    pipeline / megacore several grid steps per image."""
    for t in range(min(cap, h), 0, -1):
        if h % t == 0:
            return t
    return h


def _vmem_limit(blocks, temps):
    """Scoped-VMEM request: double-buffered pipelined blocks + temporaries,
    with margin.  Floor 32 MiB (>= default scoped limits), cap 128 MiB."""
    est = 2 * sum(blocks) + temps
    est = 2 * int(est) + (4 << 20)
    return max(min(est, 128 << 20), 32 << 20)


# ---------------------------------------------------------------------------
# 3x3 conv (stride 1, pad 1) on NHWC bf16, one (image, row-tile) per grid step.
# Tile-local im2col -> single big-K MXU matmul, fused BN batch stats, optional
# fused BN-apply+ReLU prologue (conv2) or fused 1x1 downsample+bias (conv1).
# ---------------------------------------------------------------------------
def _conv3x3_call(x, w, *, th, affine=None, downsample=None):
    """x: (N,H,W,Cx) bf16; w: (Kp,Cp) bf16, rows ordered (kh,kw,cin).

    affine:      optional (a, b), each (1, Cx) f32 -> prologue relu(a*x + b)
                 fused into the input staging (BN-apply of the previous layer).
    downsample:  optional (wd (Cx,Cp) bf16, bd (1,Cp) f32) -> extra bf16
                 identity output (1x1 conv + bias on the same resident input).

    Returns (y[, ident], stats): y/ident (N,H,W,Cp) bf16;
    stats (N, H//th, 8, Cp) f32 with row 0 = per-channel sum, row 1 = per-
    channel sum of squares of the f32 conv accumulator (rows 2..7 are zero).
    """
    N, H, W, Cx = x.shape
    Kp, Cp = w.shape
    assert H % th == 0
    NH = H // th

    def stage(x_ref, xt_ref, h, transform):
        # Build a zero-padded (th+2, W+2, Cx) tile with a 1-row halo from the
        # VMEM-resident image; image borders stay zero (matches conv padding
        # AND keeps relu(a*0+b) from leaking into the border).
        r0 = h * th
        xt_ref[...] = jnp.zeros_like(xt_ref)
        xt_ref[1:th + 1, 1:W + 1, :] = transform(x_ref[0, pl.ds(r0, th), :, :])

        @pl.when(h > 0)
        def _():
            top = jnp.maximum(r0 - 1, 0)
            xt_ref[0:1, 1:W + 1, :] = transform(x_ref[0, pl.ds(top, 1), :, :])

        @pl.when(h < NH - 1)
        def _():
            bot = jnp.minimum(r0 + th, H - 1)
            xt_ref[th + 1:th + 2, 1:W + 1, :] = transform(
                x_ref[0, pl.ds(bot, 1), :, :])

    def im2col_matmul(xt_ref, w_ref):
        # Fold the 9 taps into the contraction dim -> ONE big-K MXU matmul
        # (K = 9*Cx, zero-padded to Kp); operands bf16, accumulation f32.
        patches = [xt_ref[dh:dh + th, dw:dw + W, :].reshape(th * W, Cx)
                   for dh in range(3) for dw in range(3)]
        if Kp > 9 * Cx:
            patches.append(jnp.zeros((th * W, Kp - 9 * Cx), jnp.bfloat16))
        col = jnp.concatenate(patches, axis=1)                 # (th*W, Kp)
        return jnp.dot(col, w_ref[...],
                       preferred_element_type=jnp.float32)     # (th*W, Cp) f32

    def epilogue(acc, y_ref, st_ref):
        y_ref[...] = acc.reshape(1, th, W, Cp).astype(y_ref.dtype)   # bf16 out
        ssum = jnp.sum(acc, axis=0).reshape(1, Cp)
        ssq = jnp.sum(acc * acc, axis=0).reshape(1, Cp)
        st = jnp.concatenate([ssum, ssq, jnp.zeros((6, Cp), jnp.float32)], 0)
        st_ref[...] = st.reshape(1, 1, 8, Cp)

    def plain_kernel(x_ref, w_ref, y_ref, st_ref, xt_ref):
        h = pl.program_id(1)
        stage(x_ref, xt_ref, h, lambda v: v)
        epilogue(im2col_matmul(xt_ref, w_ref), y_ref, st_ref)

    def bn_in_kernel(x_ref, w_ref, a_ref, b_ref, y_ref, st_ref, xt_ref):
        h = pl.program_id(1)
        a = a_ref[...].reshape(1, 1, Cx)
        b = b_ref[...].reshape(1, 1, Cx)

        def bn_relu(v):   # fused BN-apply + ReLU of the previous layer
            return jnp.maximum(v.astype(jnp.float32) * a + b,
                               0.0).astype(jnp.bfloat16)

        stage(x_ref, xt_ref, h, bn_relu)
        epilogue(im2col_matmul(xt_ref, w_ref), y_ref, st_ref)

    def ds_kernel(x_ref, w_ref, wd_ref, bd_ref, y_ref, id_ref, st_ref, xt_ref):
        h = pl.program_id(1)
        stage(x_ref, xt_ref, h, lambda v: v)
        epilogue(im2col_matmul(xt_ref, w_ref), y_ref, st_ref)
        # Fused 1x1 downsample + bias on the already-resident center rows
        # (bf16 operands, f32 accumulation, bf16 store).
        center = x_ref[0, pl.ds(h * th, th), :, :].reshape(th * W, Cx)
        ident = jnp.dot(center, wd_ref[...],
                        preferred_element_type=jnp.float32) + bd_ref[...]
        id_ref[...] = ident.reshape(1, th, W, Cp).astype(id_ref.dtype)

    # Whole image resident per n (index map ignores h -> DMA'd once per image);
    # outputs are H-tiled and lane-dense (Cp multiple of 128).
    x_spec = pl.BlockSpec((1, H, W, Cx), lambda n, h: (n, 0, 0, 0))
    w_spec = pl.BlockSpec((Kp, Cp), lambda n, h: (0, 0))
    y_spec = pl.BlockSpec((1, th, W, Cp), lambda n, h: (n, h, 0, 0))
    st_spec = pl.BlockSpec((1, 1, 8, Cp), lambda n, h: (n, h, 0, 0))
    vec_x = pl.BlockSpec((1, Cx), lambda n, h: (0, 0))
    vec_c = pl.BlockSpec((1, Cp), lambda n, h: (0, 0))
    wd_spec = pl.BlockSpec((Cx, Cp), lambda n, h: (0, 0))

    y_shape = jax.ShapeDtypeStruct((N, H, W, Cp), jnp.bfloat16)
    st_shape = jax.ShapeDtypeStruct((N, NH, 8, Cp), jnp.float32)
    scratch = [pltpu.VMEM((th + 2, W + 2, Cx), jnp.bfloat16)]

    blocks = [H * W * Cx * 2, Kp * Cp * 2, th * W * Cp * 2, 8 * Cp * 4]
    temps = ((th + 2) * (W + 2) * Cx * 2      # padded tile scratch
             + 2 * th * W * Kp * 2            # im2col value (+ patch temps)
             + 2 * th * W * Cp * 4)           # f32 accumulator (+ slack)

    if downsample is not None:
        wd, bd = downsample
        blocks = blocks + [th * W * Cp * 2, Cx * Cp * 2, Cp * 4]
        cp = pltpu.CompilerParams(
            dimension_semantics=("parallel", "parallel"),
            vmem_limit_bytes=_vmem_limit(blocks, temps))
        return pl.pallas_call(
            ds_kernel,
            out_shape=(y_shape, y_shape, st_shape),
            grid=(N, NH),
            in_specs=[x_spec, w_spec, wd_spec, vec_c],
            out_specs=(y_spec, y_spec, st_spec),
            scratch_shapes=scratch,
            compiler_params=cp,
        )(x, w, wd, bd)

    if affine is not None:
        a, b = affine
        blocks = blocks + [Cx * 4, Cx * 4]
        cp = pltpu.CompilerParams(
            dimension_semantics=("parallel", "parallel"),
            vmem_limit_bytes=_vmem_limit(blocks, temps))
        return pl.pallas_call(
            bn_in_kernel,
            out_shape=(y_shape, st_shape),
            grid=(N, NH),
            in_specs=[x_spec, w_spec, vec_x, vec_x],
            out_specs=(y_spec, st_spec),
            scratch_shapes=scratch,
            compiler_params=cp,
        )(x, w, a, b)

    cp = pltpu.CompilerParams(
        dimension_semantics=("parallel", "parallel"),
        vmem_limit_bytes=_vmem_limit(blocks, temps))
    return pl.pallas_call(
        plain_kernel,
        out_shape=(y_shape, st_shape),
        grid=(N, NH),
        in_specs=[x_spec, w_spec],
        out_specs=(y_spec, st_spec),
        scratch_shapes=scratch,
        compiler_params=cp,
    )(x, w)


# ---------------------------------------------------------------------------
# Final streaming kernel: relu(a * y + b + residual), lane-dense row tiles.
# ---------------------------------------------------------------------------
def _bn_add_relu(y, a, b, res):
    M, Cp = y.shape
    Cr = res.shape[1]
    TM = M if M <= 2048 else 1024            # ~0.5-1 MB blocks; cdiv tail masked
    grid = (pl.cdiv(M, TM),)

    def kernel(y_ref, a_ref, b_ref, r_ref, o_ref):
        yv = y_ref[...].astype(jnp.float32)
        rv = r_ref[...].astype(jnp.float32)
        if Cr < Cp:   # lane-pad a narrow residual in-kernel (no XLA pad pass)
            rv = jnp.concatenate(
                [rv, jnp.zeros((rv.shape[0], Cp - Cr), jnp.float32)], axis=1)
        o_ref[...] = jnp.maximum(a_ref[...] * yv + b_ref[...] + rv, 0.0)

    blocks = [TM * Cp * 2, TM * Cr * 2, TM * Cp * 4, 2 * Cp * 4]
    cp = pltpu.CompilerParams(
        dimension_semantics=("parallel",),
        vmem_limit_bytes=_vmem_limit(blocks, 2 * TM * Cp * 4))
    return pl.pallas_call(
        kernel,
        out_shape=jax.ShapeDtypeStruct((M, Cp), jnp.float32),
        grid=grid,
        in_specs=[pl.BlockSpec((TM, Cp), lambda i: (i, 0)),
                  pl.BlockSpec((1, Cp), lambda i: (0, 0)),
                  pl.BlockSpec((1, Cp), lambda i: (0, 0)),
                  pl.BlockSpec((TM, Cr), lambda i: (i, 0))],
        out_specs=pl.BlockSpec((TM, Cp), lambda i: (i, 0)),
        compiler_params=cp,
    )(y, a, b, res)


# ---------------------------------------------------------------------------
# Tiny per-channel math: fused batch stats -> BN affine coefficients.
# ---------------------------------------------------------------------------
def _stats_to_affine(st, gamma_p, beta_p, m, eps=1e-5):
    ssum = jnp.sum(st[:, :, 0, :], axis=(0, 1))
    ssq = jnp.sum(st[:, :, 1, :], axis=(0, 1))
    mean = ssum / m
    var = jnp.maximum(ssq / m - mean * mean, 0.0)   # biased (training-mode)
    a = gamma_p * jax.lax.rsqrt(var + eps)
    b = beta_p - mean * a
    c = gamma_p.shape[0]
    return a.reshape(1, c), b.reshape(1, c)


def _fold_conv3x3_weight(w, cx, cp):
    """PyTorch (Cout, Cin, 3, 3) -> (Kp, Cp) bf16 with rows ordered (kh,kw,cin)
    to match the in-kernel tile-local im2col; K zero-padded to 128-multiple."""
    cout, cin = w.shape[0], w.shape[1]
    wt = jnp.transpose(w, (2, 3, 1, 0))
    wt = jnp.pad(wt, ((0, 0), (0, 0), (0, cx - cin), (0, cp - cout)))
    wt = wt.reshape(9 * cx, cp)
    kp = _round_up(9 * cx, 128)
    wt = jnp.pad(wt, ((0, kp - 9 * cx), (0, 0)))
    return wt.astype(jnp.bfloat16)


# ---------------------------------------------------------------------------
# Full forward pass of ResBatchNormBlock (stride=(1,1), training-mode BN).
# ---------------------------------------------------------------------------
def res_batchnorm_block(x_nchw, w1, w2, gamma2, beta2, wd=None, bd=None,
                        eps=1e-5):
    N, Cin, H, W = x_nchw.shape
    Cout = w1.shape[0]
    Ci_p = _round_up(Cin, 8)        # keep x narrow in HBM; K is lane-padded
    Cp = _round_up(Cout, 128)       # lane-dense output channels
    M = N * H * W
    th = _pick_th(H)

    # NCHW f32 -> NHWC bf16 with channel zero-pad (single XLA pass; no spatial
    # padding anywhere -- the conv halo is built in-kernel).
    x = jnp.transpose(x_nchw, (0, 2, 3, 1))
    x = jnp.pad(x, ((0, 0), (0, 0), (0, 0),
                    (0, Ci_p - Cin))).astype(jnp.bfloat16)

    w1m = _fold_conv3x3_weight(w1, Ci_p, Cp)
    w2m = _fold_conv3x3_weight(w2, Cp, Cp)
    gamma_p = jnp.pad(gamma2.astype(jnp.float32), (0, Cp - Cout))
    beta_p = jnp.pad(beta2.astype(jnp.float32), (0, Cp - Cout))

    # conv1 (+ fused 1x1 downsample + bias when Cin != Cout) + fused BN stats.
    if Cin != Cout:
        wdm = jnp.pad(wd.reshape(Cout, Cin).T,
                      ((0, Ci_p - Cin), (0, Cp - Cout))).astype(jnp.bfloat16)
        bdm = jnp.pad(bd.astype(jnp.float32), (0, Cp - Cout)).reshape(1, Cp)
        y1, ident, st1 = _conv3x3_call(x, w1m, th=th, downsample=(wdm, bdm))
        res = ident.reshape(M, Cp)
    else:
        y1, st1 = _conv3x3_call(x, w1m, th=th)
        res = x.reshape(M, Ci_p)    # raw (narrow) x; lane-padded in-kernel

    # batch_norm2 on conv1 output (fresh batch stats) is fused as a
    # relu(a1*y + b1) prologue inside conv2 -- no z1 HBM round trip.
    a1, b1 = _stats_to_affine(st1, gamma_p, beta_p, M, eps)
    y2, st2 = _conv3x3_call(y1, w2m, th=th, affine=(a1, b1))

    # batch_norm2 on conv2 output (fresh batch stats) + residual + ReLU.
    a2, b2 = _stats_to_affine(st2, gamma_p, beta_p, M, eps)
    out = _bn_add_relu(y2.reshape(M, Cp), a2, b2, res)

    out = out.reshape(N, H, W, Cp)[..., :Cout]
    return jnp.transpose(out, (0, 3, 1, 2))          # back to NCHW


# ---------------------------------------------------------------------------
# Pure-JAX f32 reference (mirrors the PyTorch forward, training-mode BN).
# ---------------------------------------------------------------------------
def _reference(x, w1, w2, gamma2, beta2, wd, bd, eps=1e-5):
    dn = ("NCHW", "OIHW", "NCHW")
    hp = jax.lax.Precision.HIGHEST

    def conv(v, w, pad):
        return jax.lax.conv_general_dilated(v, w, (1, 1), ((pad, pad),) * 2,
                                            dimension_numbers=dn, precision=hp)

    def bn(v):
        mean = v.mean(axis=(0, 2, 3), keepdims=True)
        var = v.var(axis=(0, 2, 3), keepdims=True)
        g = gamma2.reshape(1, -1, 1, 1)
        bta = beta2.reshape(1, -1, 1, 1)
        return g * (v - mean) * jax.lax.rsqrt(var + eps) + bta

    identity = x
    if wd is not None:
        identity = conv(x, wd, 0) + bd.reshape(1, -1, 1, 1)
    h = jax.nn.relu(bn(conv(x, w1, 1)))
    h = bn(conv(h, w2, 1))
    return jax.nn.relu(h + identity)


if __name__ == "__main__":
    key = jax.random.PRNGKey(0)
    N, Cin, Cout, H, W = 2, 4, 8, 16, 16
    ks = jax.random.split(key, 8)

    x = jax.random.normal(ks[0], (N, Cin, H, W), jnp.float32)
    # Deterministic synthetic parameters (shapes per the module's __init__).
    w1 = 0.1 * jax.random.normal(ks[1], (Cout, Cin, 3, 3), jnp.float32)   # conv1.weight
    w2 = 0.1 * jax.random.normal(ks[2], (Cout, Cout, 3, 3), jnp.float32)  # conv2.weight
    gamma2 = 1.0 + 0.1 * jax.random.normal(ks[3], (Cout,), jnp.float32)   # batch_norm2.weight
    beta2 = 0.1 * jax.random.normal(ks[4], (Cout,), jnp.float32)          # batch_norm2.bias
    wd = 0.1 * jax.random.normal(ks[5], (Cout, Cin, 1, 1), jnp.float32)   # downsample.weight
    bd = 0.1 * jax.random.normal(ks[6], (Cout,), jnp.float32)             # downsample.bias
    # batch_norm1 parameters exist in the module but are never used in forward.

    fwd = jax.jit(res_batchnorm_block)
    out = fwd(x, w1, w2, gamma2, beta2, wd, bd)
    jax.block_until_ready(out)
    assert out.shape == (N, Cout, H, W), out.shape

    # Correctness check against an f32 reference (bf16-activation tolerance).
    ref = _reference(x, w1, w2, gamma2, beta2, wd, bd)
    assert jnp.allclose(out, ref, atol=1e-1, rtol=1e-1), (
        float(jnp.max(jnp.abs(out - ref))))
    print("KERNEL_OK")
</pallas_src>

<mosaic_0001>
module attributes {stable_mosaic.version = 11 : i64} {
  func.func @ds_kernel(%arg0: i32, %arg1: i32, %arg2: memref<1x16x16x8xbf16, #tpu.memory_space<vmem>>, %arg3: memref<128x128xbf16, #tpu.memory_space<vmem>>, %arg4: memref<8x128xbf16, #tpu.memory_space<vmem>>, %arg5: memref<1x128xf32, #tpu.memory_space<vmem>>, %arg6: memref<1x8x16x128xbf16, #tpu.memory_space<vmem>>, %arg7: memref<1x8x16x128xbf16, #tpu.memory_space<vmem>>, %arg8: memref<1x1x8x128xf32, #tpu.memory_space<vmem>>, %arg9: memref<10x18x8xbf16, #tpu.memory_space<vmem>>) attributes {dimension_semantics = [#tpu.dimension_semantics<parallel>, #tpu.dimension_semantics<parallel>], iteration_bounds = array<i64: 2, 2>, scalar_prefetch = 0 : i64, scratch_operands = 1 : i64, tpu.core_type = #tpu.core_type<tc>, window_params = [{transform_indices = @transform_0, window_bounds = array<i64: 1, 16, 16, 8>}, {pipeline_mode = #tpu.pipeline_mode<synchronous>, transform_indices = @transform_1, window_bounds = array<i64: 128, 128>}, {pipeline_mode = #tpu.pipeline_mode<synchronous>, transform_indices = @transform_2, window_bounds = array<i64: 8, 128>}, {pipeline_mode = #tpu.pipeline_mode<synchronous>, transform_indices = @transform_3, window_bounds = array<i64: 1, 128>}, {transform_indices = @transform_4, window_bounds = array<i64: 1, 8, 16, 128>}, {transform_indices = @transform_5, window_bounds = array<i64: 1, 8, 16, 128>}, {transform_indices = @transform_6, window_bounds = array<i64: 1, 1, 8, 128>}]} {
    %c8_i32 = arith.constant 8 : i32
    %0 = arith.muli %arg1, %c8_i32 : i32
    %cst = arith.constant 0.000000e+00 : bf16
    %1 = vector.broadcast %cst : bf16 to vector<10x18x8xbf16>
    %c0 = arith.constant 0 : index
    %c0_0 = arith.constant 0 : index
    %c0_1 = arith.constant 0 : index
    %2 = vector.load %arg9[%c0, %c0_0, %c0_1] : memref<10x18x8xbf16, #tpu.memory_space<vmem>>, vector<10x18x8xbf16>
    tpu.vector_store %arg9[%c0, %c0_0, %c0_1], %1 {strides = array<i32>} : memref<10x18x8xbf16, #tpu.memory_space<vmem>>, vector<10x18x8xbf16>,
    %c0_2 = arith.constant 0 : index
    %3 = arith.index_cast %0 : i32 to index
    %c0_3 = arith.constant 0 : index
    %c0_4 = arith.constant 0 : index
    %4 = vector.load %arg2[%c0_2, %3, %c0_3, %c0_4] : memref<1x16x16x8xbf16, #tpu.memory_space<vmem>>, vector<1x8x16x8xbf16>
    %5 = vector.shape_cast %4 : vector<1x8x16x8xbf16> to vector<8x16x8xbf16>
    %c1 = arith.constant 1 : index
    %c1_5 = arith.constant 1 : index
    %c0_6 = arith.constant 0 : index
    %6 = vector.load %arg9[%c1, %c1_5, %c0_6] : memref<10x18x8xbf16, #tpu.memory_space<vmem>>, vector<8x16x8xbf16>
    tpu.vector_store %arg9[%c1, %c1_5, %c0_6], %5 {strides = array<i32>} : memref<10x18x8xbf16, #tpu.memory_space<vmem>>, vector<8x16x8xbf16>,
    %c0_i32 = arith.constant 0 : i32
    %7 = arith.cmpi sgt, %arg1, %c0_i32 : i32
    %8 = arith.extui %7 : i1 to i32
    %c0_i32_7 = arith.constant 0 : i32
    %9 = arith.cmpi ne, %8, %c0_i32_7 : i32
    scf.if %9 {
      %c1_i32_63 = arith.constant 1 : i32
      %60 = arith.subi %0, %c1_i32_63 : i32
      %c0_i32_64 = arith.constant 0 : i32
      %61 = arith.maxsi %60, %c0_i32_64 : i32
      %c0_65 = arith.constant 0 : index
      %62 = arith.index_cast %61 : i32 to index
      %c0_66 = arith.constant 0 : index
      %c0_67 = arith.constant 0 : index
      %63 = vector.load %arg2[%c0_65, %62, %c0_66, %c0_67] : memref<1x16x16x8xbf16, #tpu.memory_space<vmem>>, vector<1x1x16x8xbf16>
      %64 = vector.shape_cast %63 : vector<1x1x16x8xbf16> to vector<1x16x8xbf16>
      %c0_68 = arith.constant 0 : index
      %c1_69 = arith.constant 1 : index
      %c0_70 = arith.constant 0 : index
      %65 = vector.load %arg9[%c0_68, %c1_69, %c0_70] : memref<10x18x8xbf16, #tpu.memory_space<vmem>>, vector<1x16x8xbf16>
      tpu.vector_store %arg9[%c0_68, %c1_69, %c0_70], %64 {strides = array<i32>} : memref<10x18x8xbf16, #tpu.memory_space<vmem>>, vector<1x16x8xbf16>,
    } else {
    }
    %c1_i32 = arith.constant 1 : i32
    %10 = arith.cmpi slt, %arg1, %c1_i32 : i32
    %11 = arith.extui %10 : i1 to i32
    %c0_i32_8 = arith.constant 0 : i32
    %12 = arith.cmpi ne, %11, %c0_i32_8 : i32
    scf.if %12 {
      %c8_i32_63 = arith.constant 8 : i32
      %60 = arith.addi %0, %c8_i32_63 : i32
      %c15_i32 = arith.constant 15 : i32
      %61 = arith.minsi %60, %c15_i32 : i32
      %c0_64 = arith.constant 0 : index
      %62 = arith.index_cast %61 : i32 to index
      %c0_65 = arith.constant 0 : index
      %c0_66 = arith.constant 0 : index
      %63 = vector.load %arg2[%c0_64, %62, %c0_65, %c0_66] : memref<1x16x16x8xbf16, #tpu.memory_space<vmem>>, vector<1x1x16x8xbf16>
      %64 = vector.shape_cast %63 : vector<1x1x16x8xbf16> to vector<1x16x8xbf16>
      %c9 = arith.constant 9 : index
      %c1_67 = arith.constant 1 : index
      %c0_68 = arith.constant 0 : index
      %65 = vector.load %arg9[%c9, %c1_67, %c0_68] : memref<10x18x8xbf16, #tpu.memory_space<vmem>>, vector<1x16x8xbf16>
      tpu.vector_store %arg9[%c9, %c1_67, %c0_68], %64 {strides = array<i32>} : memref<10x18x8xbf16, #tpu.memory_space<vmem>>, vector<1x16x8xbf16>,
    } else {
    }
    %c0_9 = arith.constant 0 : index
    %c0_10 = arith.constant 0 : index
    %c0_11 = arith.constant 0 : index
    %13 = vector.load %arg9[%c0_9, %c0_10, %c0_11] : memref<10x18x8xbf16, #tpu.memory_space<vmem>>, vector<8x16x8xbf16>
    %14 = vector.shape_cast %13 : vector<8x16x8xbf16> to vector<128x8xbf16>
    %c0_12 = arith.constant 0 : index
    %c1_13 = arith.constant 1 : index
    %c0_14 = arith.constant 0 : index
    %15 = vector.load %arg9[%c0_12, %c1_13, %c0_14] : memref<10x18x8xbf16, #tpu.memory_space<vmem>>, vector<8x16x8xbf16>
    %16 = vector.shape_cast %15 : vector<8x16x8xbf16> to vector<128x8xbf16>
    %c0_15 = arith.constant 0 : index
    %c2 = arith.constant 2 : index
    %c0_16 = arith.constant 0 : index
    %17 = vector.load %arg9[%c0_15, %c2, %c0_16] : memref<10x18x8xbf16, #tpu.memory_space<vmem>>, vector<8x16x8xbf16>
    %18 = vector.shape_cast %17 : vector<8x16x8xbf16> to vector<128x8xbf16>
    %c1_17 = arith.constant 1 : index
    %c0_18 = arith.constant 0 : index
    %c0_19 = arith.constant 0 : index
    %19 = vector.load %arg9[%c1_17, %c0_18, %c0_19] : memref<10x18x8xbf16, #tpu.memory_space<vmem>>, vector<8x16x8xbf16>
    %20 = vector.shape_cast %19 : vector<8x16x8xbf16> to vector<128x8xbf16>
    %c1_20 = arith.constant 1 : index
    %c1_21 = arith.constant 1 : index
    %c0_22 = arith.constant 0 : index
    %21 = vector.load %arg9[%c1_20, %c1_21, %c0_22] : memref<10x18x8xbf16, #tpu.memory_space<vmem>>, vector<8x16x8xbf16>
    %22 = vector.shape_cast %21 : vector<8x16x8xbf16> to vector<128x8xbf16>
    %c1_23 = arith.constant 1 : index
    %c2_24 = arith.constant 2 : index
    %c0_25 = arith.constant 0 : index
    %23 = vector.load %arg9[%c1_23, %c2_24, %c0_25] : memref<10x18x8xbf16, #tpu.memory_space<vmem>>, vector<8x16x8xbf16>
    %24 = vector.shape_cast %23 : vector<8x16x8xbf16> to vector<128x8xbf16>
    %c2_26 = arith.constant 2 : index
    %c0_27 = arith.constant 0 : index
    %c0_28 = arith.constant 0 : index
    %25 = vector.load %arg9[%c2_26, %c0_27, %c0_28] : memref<10x18x8xbf16, #tpu.memory_space<vmem>>, vector<8x16x8xbf16>
    %26 = vector.shape_cast %25 : vector<8x16x8xbf16> to vector<128x8xbf16>
    %c2_29 = arith.constant 2 : index
    %c1_30 = arith.constant 1 : index
    %c0_31 = arith.constant 0 : index
    %27 = vector.load %arg9[%c2_29, %c1_30, %c0_31] : memref<10x18x8xbf16, #tpu.memory_space<vmem>>, vector<8x16x8xbf16>
    %28 = vector.shape_cast %27 : vector<8x16x8xbf16> to vector<128x8xbf16>
    %c2_32 = arith.constant 2 : index
    %c2_33 = arith.constant 2 : index
    %c0_34 = arith.constant 0 : index
    %29 = vector.load %arg9[%c2_32, %c2_33, %c0_34] : memref<10x18x8xbf16, #tpu.memory_space<vmem>>, vector<8x16x8xbf16>
    %30 = vector.shape_cast %29 : vector<8x16x8xbf16> to vector<128x8xbf16>
    %cst_35 = arith.constant 0.000000e+00 : bf16
    %31 = vector.broadcast %cst_35 : bf16 to vector<128x56xbf16>
    %32 = tpu.concatenate %14, %16, %18, %20, %22, %24, %26, %28, %30, %31 in 1 : vector<128x8xbf16>, vector<128x8xbf16>, vector<128x8xbf16>, vector<128x8xbf16>, vector<128x8xbf16>, vector<128x8xbf16>, vector<128x8xbf16>, vector<128x8xbf16>, vector<128x8xbf16>, vector<128x56xbf16> -> vector<128x128xbf16>
    %c0_36 = arith.constant 0 : index
    %c0_37 = arith.constant 0 : index
    %33 = vector.load %arg3[%c0_36, %c0_37] : memref<128x128xbf16, #tpu.memory_space<vmem>>, vector<128x128xbf16>
    %cst_38 = arith.constant dense<0.000000e+00> : vector<128x128xf32>
    %34 = tpu.matmul %32, %33, %cst_38 {dimension_numbers = #tpu.dot_dimension_numbers<[1], [0], [0], [1], [0, 0, 1, 1], [], []>} : vector<128x128xbf16>, vector<128x128xbf16>, vector<128x128xf32> -> vector<128x128xf32>
    %35 = vector.shape_cast %34 : vector<128x128xf32> to vector<1x8x16x128xf32>
    %36 = arith.truncf %35 : vector<1x8x16x128xf32> to vector<1x8x16x128xbf16>
    %c0_39 = arith.constant 0 : index
    %c0_40 = arith.constant 0 : index
    %c0_41 = arith.constant 0 : index
    %c0_42 = arith.constant 0 : index
    %37 = vector.load %arg6[%c0_39, %c0_40, %c0_41, %c0_42] : memref<1x8x16x128xbf16, #tpu.memory_space<vmem>>, vector<1x8x16x128xbf16>
    tpu.vector_store %arg6[%c0_39, %c0_40, %c0_41, %c0_42], %36 {strides = array<i32>} : memref<1x8x16x128xbf16, #tpu.memory_space<vmem>>, vector<1x8x16x128xbf16>,
    %cst_43 = arith.constant dense<0.000000e+00> : vector<128xf32>
    %38 = vector.multi_reduction <add>, %34, %cst_43 [0] : vector<128x128xf32> to vector<128xf32>
    %39 = vector.shape_cast %38 : vector<128xf32> to vector<1x128xf32>
    %40 = arith.mulf %34, %34 : vector<128x128xf32>
    %cst_44 = arith.constant dense<0.000000e+00> : vector<128xf32>
    %41 = vector.multi_reduction <add>, %40, %cst_44 [0] : vector<128x128xf32> to vector<128xf32>
    %42 = vector.shape_cast %41 : vector<128xf32> to vector<1x128xf32>
    %cst_45 = arith.constant 0.000000e+00 : f32
    %43 = vector.broadcast %cst_45 : f32 to vector<6x128xf32>
    %44 = tpu.concatenate %39, %42, %43 in 0 : vector<1x128xf32>, vector<1x128xf32>, vector<6x128xf32> -> vector<8x128xf32>
    %45 = vector.shape_cast %44 : vector<8x128xf32> to vector<1x1x8x128xf32>
    %c0_46 = arith.constant 0 : index
    %c0_47 = arith.constant 0 : index
    %c0_48 = arith.constant 0 : index
    %c0_49 = arith.constant 0 : index
    %46 = vector.load %arg8[%c0_46, %c0_47, %c0_48, %c0_49] : memref<1x1x8x128xf32, #tpu.memory_space<vmem>>, vector<1x1x8x128xf32>
    tpu.vector_store %arg8[%c0_46, %c0_47, %c0_48, %c0_49], %45 {strides = array<i32>} : memref<1x1x8x128xf32, #tpu.memory_space<vmem>>, vector<1x1x8x128xf32>,
    %c8_i32_50 = arith.constant 8 : i32
    %47 = arith.muli %arg1, %c8_i32_50 : i32
    %c0_51 = arith.constant 0 : index
    %48 = arith.index_cast %47 : i32 to index
    %c0_52 = arith.constant 0 : index
    %c0_53 = arith.constant 0 : index
    %49 = vector.load %arg2[%c0_51, %48, %c0_52, %c0_53] : memref<1x16x16x8xbf16, #tpu.memory_space<vmem>>, vector<1x8x16x8xbf16>
    %50 = vector.shape_cast %49 : vector<1x8x16x8xbf16> to vector<8x16x8xbf16>
    %51 = vector.shape_cast %50 : vector<8x16x8xbf16> to vector<128x8xbf16>
    %c0_54 = arith.constant 0 : index
    %c0_55 = arith.constant 0 : index
    %52 = vector.load %arg4[%c0_54, %c0_55] : memref<8x128xbf16, #tpu.memory_space<vmem>>, vector<8x128xbf16>
    %cst_56 = arith.constant dense<0.000000e+00> : vector<128x128xf32>
    %53 = tpu.matmul %51, %52, %cst_56 {dimension_numbers = #tpu.dot_dimension_numbers<[1], [0], [0], [1], [0, 0, 1, 1], [], []>} : vector<128x8xbf16>, vector<8x128xbf16>, vector<128x128xf32> -> vector<128x128xf32>
    %c0_57 = arith.constant 0 : index
    %c0_58 = arith.constant 0 : index
    %54 = vector.load %arg5[%c0_57, %c0_58] : memref<1x128xf32, #tpu.memory_space<vmem>>, vector<1x128xf32>
    %55 = vector.broadcast %54 : vector<1x128xf32> to vector<128x128xf32>
    %56 = arith.addf %53, %55 : vector<128x128xf32>
    %57 = vector.shape_cast %56 : vector<128x128xf32> to vector<1x8x16x128xf32>
    %58 = arith.truncf %57 : vector<1x8x16x128xf32> to vector<1x8x16x128xbf16>
    %c0_59 = arith.constant 0 : index
    %c0_60 = arith.constant 0 : index
    %c0_61 = arith.constant 0 : index
    %c0_62 = arith.constant 0 : index
    %59 = vector.load %arg7[%c0_59, %c0_60, %c0_61, %c0_62] : memref<1x8x16x128xbf16, #tpu.memory_space<vmem>>, vector<1x8x16x128xbf16>
    tpu.vector_store %arg7[%c0_59, %c0_60, %c0_61, %c0_62], %58 {strides = array<i32>} : memref<1x8x16x128xbf16, #tpu.memory_space<vmem>>, vector<1x8x16x128xbf16>,
    return
  }
  func.func @transform_0(%arg0: i32, %arg1: i32) -> (i32, i32, i32, i32) {
    %c0_i32 = arith.constant 0 : i32
    %c0_i32_0 = arith.constant 0 : i32
    %c0_i32_1 = arith.constant 0 : i32
    %c0_i32_2 = arith.constant 0 : i32
    return %arg0, %c0_i32, %c0_i32_0, %c0_i32_1 : i32, i32, i32, i32
  }
  func.func @transform_1(%arg0: i32, %arg1: i32) -> (i32, i32) {
    %c0_i32 = arith.constant 0 : i32
    %c0_i32_0 = arith.constant 0 : i32
    %c0_i32_1 = arith.constant 0 : i32
    return %c0_i32, %c0_i32_0 : i32, i32
  }
  func.func @transform_2(%arg0: i32, %arg1: i32) -> (i32, i32) {
    %c0_i32 = arith.constant 0 : i32
    %c0_i32_0 = arith.constant 0 : i32
    %c0_i32_1 = arith.constant 0 : i32
    return %c0_i32, %c0_i32_0 : i32, i32
  }
  func.func @transform_3(%arg0: i32, %arg1: i32) -> (i32, i32) {
    %c0_i32 = arith.constant 0 : i32
    %c0_i32_0 = arith.constant 0 : i32
    %c0_i32_1 = arith.constant 0 : i32
    return %c0_i32, %c0_i32_0 : i32, i32
  }
  func.func @transform_4(%arg0: i32, %arg1: i32) -> (i32, i32, i32, i32) {
    %c0_i32 = arith.constant 0 : i32
    %c0_i32_0 = arith.constant 0 : i32
    %c0_i32_1 = arith.constant 0 : i32
    return %arg0, %arg1, %c0_i32, %c0_i32_0 : i32, i32, i32, i32
  }
  func.func @transform_5(%arg0: i32, %arg1: i32) -> (i32, i32, i32, i32) {
    %c0_i32 = arith.constant 0 : i32
    %c0_i32_0 = arith.constant 0 : i32
    %c0_i32_1 = arith.constant 0 : i32
    return %arg0, %arg1, %c0_i32, %c0_i32_0 : i32, i32, i32, i32
  }
  func.func @transform_6(%arg0: i32, %arg1: i32) -> (i32, i32, i32, i32) {
    %c0_i32 = arith.constant 0 : i32
    %c0_i32_0 = arith.constant 0 : i32
    %c0_i32_1 = arith.constant 0 : i32
    return %arg0, %arg1, %c0_i32, %c0_i32_0 : i32, i32, i32, i32
  }
}

module attributes {stable_mosaic.version = 11 : i64} {
  func.func @bn_in_kernel(%arg0: i32, %arg1: i32, %arg2: memref<1x16x16x128xbf16, #tpu.memory_space<vmem>>, %arg3: memref<1152x128xbf16, #tpu.memory_space<vmem>>, %arg4: memref<1x128xf32, #tpu.memory_space<vmem>>, %arg5: memref<1x128xf32, #tpu.memory_space<vmem>>, %arg6: memref<1x8x16x128xbf16, #tpu.memory_space<vmem>>, %arg7: memref<1x1x8x128xf32, #tpu.memory_space<vmem>>, %arg8: memref<10x18x128xbf16, #tpu.memory_space<vmem>>) attributes {dimension_semantics = [#tpu.dimension_semantics<parallel>, #tpu.dimension_semantics<parallel>], iteration_bounds = array<i64: 2, 2>, scalar_prefetch = 0 : i64, scratch_operands = 1 : i64, tpu.core_type = #tpu.core_type<tc>, window_params = [{transform_indices = @transform_0, window_bounds = array<i64: 1, 16, 16, 128>}, {pipeline_mode = #tpu.pipeline_mode<synchronous>, transform_indices = @transform_1, window_bounds = array<i64: 1152, 128>}, {pipeline_mode = #tpu.pipeline_mode<synchronous>, transform_indices = @transform_2, window_bounds = array<i64: 1, 128>}, {pipeline_mode = #tpu.pipeline_mode<synchronous>, transform_indices = @transform_3, window_bounds = array<i64: 1, 128>}, {transform_indices = @transform_4, window_bounds = array<i64: 1, 8, 16, 128>}, {transform_indices = @transform_5, window_bounds = array<i64: 1, 1, 8, 128>}]} {
    %c0 = arith.constant 0 : index
    %c0_0 = arith.constant 0 : index
    %0 = vector.load %arg4[%c0, %c0_0] : memref<1x128xf32, #tpu.memory_space<vmem>>, vector<1x128xf32>
    %1 = vector.shape_cast %0 : vector<1x128xf32> to vector<1x1x128xf32>
    %c0_1 = arith.constant 0 : index
    %c0_2 = arith.constant 0 : index
    %2 = vector.load %arg5[%c0_1, %c0_2] : memref<1x128xf32, #tpu.memory_space<vmem>>, vector<1x128xf32>
    %3 = vector.shape_cast %2 : vector<1x128xf32> to vector<1x1x128xf32>
    %c8_i32 = arith.constant 8 : i32
    %4 = arith.muli %arg1, %c8_i32 : i32
    %cst = arith.constant 0.000000e+00 : bf16
    %5 = vector.broadcast %cst : bf16 to vector<10x18x128xbf16>
    %c0_3 = arith.constant 0 : index
    %c0_4 = arith.constant 0 : index
    %c0_5 = arith.constant 0 : index
    %6 = vector.load %arg8[%c0_3, %c0_4, %c0_5] : memref<10x18x128xbf16, #tpu.memory_space<vmem>>, vector<10x18x128xbf16>
    tpu.vector_store %arg8[%c0_3, %c0_4, %c0_5], %5 {strides = array<i32>} : memref<10x18x128xbf16, #tpu.memory_space<vmem>>, vector<10x18x128xbf16>,
    %c0_6 = arith.constant 0 : index
    %7 = arith.index_cast %4 : i32 to index
    %c0_7 = arith.constant 0 : index
    %c0_8 = arith.constant 0 : index
    %8 = vector.load %arg2[%c0_6, %7, %c0_7, %c0_8] : memref<1x16x16x128xbf16, #tpu.memory_space<vmem>>, vector<1x8x16x128xbf16>
    %9 = vector.shape_cast %8 : vector<1x8x16x128xbf16> to vector<8x16x128xbf16>
    %10 = arith.extf %9 : vector<8x16x128xbf16> to vector<8x16x128xf32>
    %11 = vector.broadcast %1 : vector<1x1x128xf32> to vector<8x16x128xf32>
    %12 = arith.mulf %10, %11 : vector<8x16x128xf32>
    %13 = vector.broadcast %3 : vector<1x1x128xf32> to vector<8x16x128xf32>
    %14 = arith.addf %12, %13 : vector<8x16x128xf32>
    %cst_9 = arith.constant 0.000000e+00 : f32
    %15 = vector.broadcast %cst_9 : f32 to vector<8x16x128xf32>
    %16 = arith.maximumf %14, %15 : vector<8x16x128xf32>
    %17 = arith.truncf %16 : vector<8x16x128xf32> to vector<8x16x128xbf16>
    %c1 = arith.constant 1 : index
    %c1_10 = arith.constant 1 : index
    %c0_11 = arith.constant 0 : index
    %18 = vector.load %arg8[%c1, %c1_10, %c0_11] : memref<10x18x128xbf16, #tpu.memory_space<vmem>>, vector<8x16x128xbf16>
    tpu.vector_store %arg8[%c1, %c1_10, %c0_11], %17 {strides = array<i32>} : memref<10x18x128xbf16, #tpu.memory_space<vmem>>, vector<8x16x128xbf16>,
    %c0_i32 = arith.constant 0 : i32
    %19 = arith.cmpi sgt, %arg1, %c0_i32 : i32
    %20 = arith.extui %19 : i1 to i32
    %c0_i32_12 = arith.constant 0 : i32
    %21 = arith.cmpi ne, %20, %c0_i32_12 : i32
    scf.if %21 {
      %c1_i32_54 = arith.constant 1 : i32
      %58 = arith.subi %4, %c1_i32_54 : i32
      %c0_i32_55 = arith.constant 0 : i32
      %59 = arith.maxsi %58, %c0_i32_55 : i32
      %c0_56 = arith.constant 0 : index
      %60 = arith.index_cast %59 : i32 to index
      %c0_57 = arith.constant 0 : index
      %c0_58 = arith.constant 0 : index
      %61 = vector.load %arg2[%c0_56, %60, %c0_57, %c0_58] : memref<1x16x16x128xbf16, #tpu.memory_space<vmem>>, vector<1x1x16x128xbf16>
      %62 = vector.shape_cast %61 : vector<1x1x16x128xbf16> to vector<1x16x128xbf16>
      %63 = arith.extf %62 : vector<1x16x128xbf16> to vector<1x16x128xf32>
      %64 = vector.broadcast %1 : vector<1x1x128xf32> to vector<1x16x128xf32>
      %65 = arith.mulf %63, %64 : vector<1x16x128xf32>
      %66 = vector.broadcast %3 : vector<1x1x128xf32> to vector<1x16x128xf32>
      %67 = arith.addf %65, %66 : vector<1x16x128xf32>
      %cst_59 = arith.constant 0.000000e+00 : f32
      %68 = vector.broadcast %cst_59 : f32 to vector<1x16x128xf32>
      %69 = arith.maximumf %67, %68 : vector<1x16x128xf32>
      %70 = arith.truncf %69 : vector<1x16x128xf32> to vector<1x16x128xbf16>
      %c0_60 = arith.constant 0 : index
      %c1_61 = arith.constant 1 : index
      %c0_62 = arith.constant 0 : index
      %71 = vector.load %arg8[%c0_60, %c1_61, %c0_62] : memref<10x18x128xbf16, #tpu.memory_space<vmem>>, vector<1x16x128xbf16>
      tpu.vector_store %arg8[%c0_60, %c1_61, %c0_62], %70 {strides = array<i32>} : memref<10x18x128xbf16, #tpu.memory_space<vmem>>, vector<1x16x128xbf16>,
    } else {
    }
    %c1_i32 = arith.constant 1 : i32
    %22 = arith.cmpi slt, %arg1, %c1_i32 : i32
    %23 = arith.extui %22 : i1 to i32
    %c0_i32_13 = arith.constant 0 : i32
    %24 = arith.cmpi ne, %23, %c0_i32_13 : i32
    scf.if %24 {
      %c8_i32_54 = arith.constant 8 : i32
      %58 = arith.addi %4, %c8_i32_54 : i32
      %c15_i32 = arith.constant 15 : i32
      %59 = arith.minsi %58, %c15_i32 : i32
      %c0_55 = arith.constant 0 : index
      %60 = arith.index_cast %59 : i32 to index
      %c0_56 = arith.constant 0 : index
      %c0_57 = arith.constant 0 : index
      %61 = vector.load %arg2[%c0_55, %60, %c0_56, %c0_57] : memref<1x16x16x128xbf16, #tpu.memory_space<vmem>>, vector<1x1x16x128xbf16>
      %62 = vector.shape_cast %61 : vector<1x1x16x128xbf16> to vector<1x16x128xbf16>
      %63 = arith.extf %62 : vector<1x16x128xbf16> to vector<1x16x128xf32>
      %64 = vector.broadcast %1 : vector<1x1x128xf32> to vector<1x16x128xf32>
      %65 = arith.mulf %63, %64 : vector<1x16x128xf32>
      %66 = vector.broadcast %3 : vector<1x1x128xf32> to vector<1x16x128xf32>
      %67 = arith.addf %65, %66 : vector<1x16x128xf32>
      %cst_58 = arith.constant 0.000000e+00 : f32
      %68 = vector.broadcast %cst_58 : f32 to vector<1x16x128xf32>
      %69 = arith.maximumf %67, %68 : vector<1x16x128xf32>
      %70 = arith.truncf %69 : vector<1x16x128xf32> to vector<1x16x128xbf16>
      %c9 = arith.constant 9 : index
      %c1_59 = arith.constant 1 : index
      %c0_60 = arith.constant 0 : index
      %71 = vector.load %arg8[%c9, %c1_59, %c0_60] : memref<10x18x128xbf16, #tpu.memory_space<vmem>>, vector<1x16x128xbf16>
      tpu.vector_store %arg8[%c9, %c1_59, %c0_60], %70 {strides = array<i32>} : memref<10x18x128xbf16, #tpu.memory_space<vmem>>, vector<1x16x128xbf16>,
    } else {
    }
    %c0_14 = arith.constant 0 : index
    %c0_15 = arith.constant 0 : index
    %c0_16 = arith.constant 0 : index
    %25 = vector.load %arg8[%c0_14, %c0_15, %c0_16] : memref<10x18x128xbf16, #tpu.memory_space<vmem>>, vector<8x16x128xbf16>
    %26 = vector.shape_cast %25 : vector<8x16x128xbf16> to vector<128x128xbf16>
    %c0_17 = arith.constant 0 : index
    %c1_18 = arith.constant 1 : index
    %c0_19 = arith.constant 0 : index
    %27 = vector.load %arg8[%c0_17, %c1_18, %c0_19] : memref<10x18x128xbf16, #tpu.memory_space<vmem>>, vector<8x16x128xbf16>
    %28 = vector.shape_cast %27 : vector<8x16x128xbf16> to vector<128x128xbf16>
    %c0_20 = arith.constant 0 : index
    %c2 = arith.constant 2 : index
    %c0_21 = arith.constant 0 : index
    %29 = vector.load %arg8[%c0_20, %c2, %c0_21] : memref<10x18x128xbf16, #tpu.memory_space<vmem>>, vector<8x16x128xbf16>
    %30 = vector.shape_cast %29 : vector<8x16x128xbf16> to vector<128x128xbf16>
    %c1_22 = arith.constant 1 : index
    %c0_23 = arith.constant 0 : index
    %c0_24 = arith.constant 0 : index
    %31 = vector.load %arg8[%c1_22, %c0_23, %c0_24] : memref<10x18x128xbf16, #tpu.memory_space<vmem>>, vector<8x16x128xbf16>
    %32 = vector.shape_cast %31 : vector<8x16x128xbf16> to vector<128x128xbf16>
    %c1_25 = arith.constant 1 : index
    %c1_26 = arith.constant 1 : index
    %c0_27 = arith.constant 0 : index
    %33 = vector.load %arg8[%c1_25, %c1_26, %c0_27] : memref<10x18x128xbf16, #tpu.memory_space<vmem>>, vector<8x16x128xbf16>
    %34 = vector.shape_cast %33 : vector<8x16x128xbf16> to vector<128x128xbf16>
    %c1_28 = arith.constant 1 : index
    %c2_29 = arith.constant 2 : index
    %c0_30 = arith.constant 0 : index
    %35 = vector.load %arg8[%c1_28, %c2_29, %c0_30] : memref<10x18x128xbf16, #tpu.memory_space<vmem>>, vector<8x16x128xbf16>
    %36 = vector.shape_cast %35 : vector<8x16x128xbf16> to vector<128x128xbf16>
    %c2_31 = arith.constant 2 : index
    %c0_32 = arith.constant 0 : index
    %c0_33 = arith.constant 0 : index
    %37 = vector.load %arg8[%c2_31, %c0_32, %c0_33] : memref<10x18x128xbf16, #tpu.memory_space<vmem>>, vector<8x16x128xbf16>
    %38 = vector.shape_cast %37 : vector<8x16x128xbf16> to vector<128x128xbf16>
    %c2_34 = arith.constant 2 : index
    %c1_35 = arith.constant 1 : index
    %c0_36 = arith.constant 0 : index
    %39 = vector.load %arg8[%c2_34, %c1_35, %c0_36] : memref<10x18x128xbf16, #tpu.memory_space<vmem>>, vector<8x16x128xbf16>
    %40 = vector.shape_cast %39 : vector<8x16x128xbf16> to vector<128x128xbf16>
    %c2_37 = arith.constant 2 : index
    %c2_38 = arith.constant 2 : index
    %c0_39 = arith.constant 0 : index
    %41 = vector.load %arg8[%c2_37, %c2_38, %c0_39] : memref<10x18x128xbf16, #tpu.memory_space<vmem>>, vector<8x16x128xbf16>
    %42 = vector.shape_cast %41 : vector<8x16x128xbf16> to vector<128x128xbf16>
    %43 = tpu.concatenate %26, %28, %30, %32, %34, %36, %38, %40, %42 in 1 : vector<128x128xbf16>, vector<128x128xbf16>, vector<128x128xbf16>, vector<128x128xbf16>, vector<128x128xbf16>, vector<128x128xbf16>, vector<128x128xbf16>, vector<128x128xbf16>, vector<128x128xbf16> -> vector<128x1152xbf16>
    %c0_40 = arith.constant 0 : index
    %c0_41 = arith.constant 0 : index
    %44 = vector.load %arg3[%c0_40, %c0_41] : memref<1152x128xbf16, #tpu.memory_space<vmem>>, vector<1152x128xbf16>
    %cst_42 = arith.constant dense<0.000000e+00> : vector<128x128xf32>
    %45 = tpu.matmul %43, %44, %cst_42 {dimension_numbers = #tpu.dot_dimension_numbers<[1], [0], [0], [1], [0, 0, 1, 1], [], []>} : vector<128x1152xbf16>, vector<1152x128xbf16>, vector<128x128xf32> -> vector<128x128xf32>
    %46 = vector.shape_cast %45 : vector<128x128xf32> to vector<1x8x16x128xf32>
    %47 = arith.truncf %46 : vector<1x8x16x128xf32> to vector<1x8x16x128xbf16>
    %c0_43 = arith.constant 0 : index
    %c0_44 = arith.constant 0 : index
    %c0_45 = arith.constant 0 : index
    %c0_46 = arith.constant 0 : index
    %48 = vector.load %arg6[%c0_43, %c0_44, %c0_45, %c0_46] : memref<1x8x16x128xbf16, #tpu.memory_space<vmem>>, vector<1x8x16x128xbf16>
    tpu.vector_store %arg6[%c0_43, %c0_44, %c0_45, %c0_46], %47 {strides = array<i32>} : memref<1x8x16x128xbf16, #tpu.memory_space<vmem>>, vector<1x8x16x128xbf16>,
    %cst_47 = arith.constant dense<0.000000e+00> : vector<128xf32>
    %49 = vector.multi_reduction <add>, %45, %cst_47 [0] : vector<128x128xf32> to vector<128xf32>
    %50 = vector.shape_cast %49 : vector<128xf32> to vector<1x128xf32>
    %51 = arith.mulf %45, %45 : vector<128x128xf32>
    %cst_48 = arith.constant dense<0.000000e+00> : vector<128xf32>
    %52 = vector.multi_reduction <add>, %51, %cst_48 [0] : vector<128x128xf32> to vector<128xf32>
    %53 = vector.shape_cast %52 : vector<128xf32> to vector<1x128xf32>
    %cst_49 = arith.constant 0.000000e+00 : f32
    %54 = vector.broadcast %cst_49 : f32 to vector<6x128xf32>
    %55 = tpu.concatenate %50, %53, %54 in 0 : vector<1x128xf32>, vector<1x128xf32>, vector<6x128xf32> -> vector<8x128xf32>
    %56 = vector.shape_cast %55 : vector<8x128xf32> to vector<1x1x8x128xf32>
    %c0_50 = arith.constant 0 : index
    %c0_51 = arith.constant 0 : index
    %c0_52 = arith.constant 0 : index
    %c0_53 = arith.constant 0 : index
    %57 = vector.load %arg7[%c0_50, %c0_51, %c0_52, %c0_53] : memref<1x1x8x128xf32, #tpu.memory_space<vmem>>, vector<1x1x8x128xf32>
    tpu.vector_store %arg7[%c0_50, %c0_51, %c0_52, %c0_53], %56 {strides = array<i32>} : memref<1x1x8x128xf32, #tpu.memory_space<vmem>>, vector<1x1x8x128xf32>,
    return
  }
  func.func @transform_0(%arg0: i32, %arg1: i32) -> (i32, i32, i32, i32) {
    %c0_i32 = arith.constant 0 : i32
    %c0_i32_0 = arith.constant 0 : i32
    %c0_i32_1 = arith.constant 0 : i32
    %c0_i32_2 = arith.constant 0 : i32
    return %arg0, %c0_i32, %c0_i32_0, %c0_i32_1 : i32, i32, i32, i32
  }
  func.func @transform_1(%arg0: i32, %arg1: i32) -> (i32, i32) {
    %c0_i32 = arith.constant 0 : i32
    %c0_i32_0 = arith.constant 0 : i32
    %c0_i32_1 = arith.constant 0 : i32
    return %c0_i32, %c0_i32_0 : i32, i32
  }
  func.func @transform_2(%arg0: i32, %arg1: i32) -> (i32, i32) {
    %c0_i32 = arith.constant 0 : i32
    %c0_i32_0 = arith.constant 0 : i32
    %c0_i32_1 = arith.constant 0 : i32
    return %c0_i32, %c0_i32_0 : i32, i32
  }
  func.func @transform_3(%arg0: i32, %arg1: i32) -> (i32, i32) {
    %c0_i32 = arith.constant 0 : i32
    %c0_i32_0 = arith.constant 0 : i32
    %c0_i32_1 = arith.constant 0 : i32
    return %c0_i32, %c0_i32_0 : i32, i32
  }
  func.func @transform_4(%arg0: i32, %arg1: i32) -> (i32, i32, i32, i32) {
    %c0_i32 = arith.constant 0 : i32
    %c0_i32_0 = arith.constant 0 : i32
    %c0_i32_1 = arith.constant 0 : i32
    return %arg0, %arg1, %c0_i32, %c0_i32_0 : i32, i32, i32, i32
  }
  func.func @transform_5(%arg0: i32, %arg1: i32) -> (i32, i32, i32, i32) {
    %c0_i32 = arith.constant 0 : i32
    %c0_i32_0 = arith.constant 0 : i32
    %c0_i32_1 = arith.constant 0 : i32
    return %arg0, %arg1, %c0_i32, %c0_i32_0 : i32, i32, i32, i32
  }
}

module attributes {stable_mosaic.version = 11 : i64} {
  func.func @kernel(%arg0: i32, %arg1: memref<512x128xbf16, #tpu.memory_space<vmem>>, %arg2: memref<1x128xf32, #tpu.memory_space<vmem>>, %arg3: memref<1x128xf32, #tpu.memory_space<vmem>>, %arg4: memref<512x128xbf16, #tpu.memory_space<vmem>>, %arg5: memref<512x128xf32, #tpu.memory_space<vmem>>) attributes {dimension_semantics = [#tpu.dimension_semantics<parallel>], iteration_bounds = array<i64: 1>, scalar_prefetch = 0 : i64, scratch_operands = 0 : i64, tpu.core_type = #tpu.core_type<tc>, window_params = [{transform_indices = @transform_0, window_bounds = array<i64: 512, 128>}, {pipeline_mode = #tpu.pipeline_mode<synchronous>, transform_indices = @transform_1, window_bounds = array<i64: 1, 128>}, {pipeline_mode = #tpu.pipeline_mode<synchronous>, transform_indices = @transform_2, window_bounds = array<i64: 1, 128>}, {transform_indices = @transform_3, window_bounds = array<i64: 512, 128>}, {transform_indices = @transform_4, window_bounds = array<i64: 512, 128>}]} {
    %c0 = arith.constant 0 : index
    %c0_0 = arith.constant 0 : index
    %0 = vector.load %arg1[%c0, %c0_0] : memref<512x128xbf16, #tpu.memory_space<vmem>>, vector<512x128xbf16>
    %1 = arith.extf %0 : vector<512x128xbf16> to vector<512x128xf32>
    %c0_1 = arith.constant 0 : index
    %c0_2 = arith.constant 0 : index
    %2 = vector.load %arg4[%c0_1, %c0_2] : memref<512x128xbf16, #tpu.memory_space<vmem>>, vector<512x128xbf16>
    %3 = arith.extf %2 : vector<512x128xbf16> to vector<512x128xf32>
    %c0_3 = arith.constant 0 : index
    %c0_4 = arith.constant 0 : index
    %4 = vector.load %arg2[%c0_3, %c0_4] : memref<1x128xf32, #tpu.memory_space<vmem>>, vector<1x128xf32>
    %5 = vector.broadcast %4 : vector<1x128xf32> to vector<512x128xf32>
    %6 = arith.mulf %5, %1 : vector<512x128xf32>
    %c0_5 = arith.constant 0 : index
    %c0_6 = arith.constant 0 : index
    %7 = vector.load %arg3[%c0_5, %c0_6] : memref<1x128xf32, #tpu.memory_space<vmem>>, vector<1x128xf32>
    %8 = vector.broadcast %7 : vector<1x128xf32> to vector<512x128xf32>
    %9 = arith.addf %6, %8 : vector<512x128xf32>
    %10 = arith.addf %9, %3 : vector<512x128xf32>
    %cst = arith.constant 0.000000e+00 : f32
    %11 = vector.broadcast %cst : f32 to vector<512x128xf32>
    %12 = arith.maximumf %10, %11 : vector<512x128xf32>
    %c0_7 = arith.constant 0 : index
    %c0_8 = arith.constant 0 : index
    %13 = vector.load %arg5[%c0_7, %c0_8] : memref<512x128xf32, #tpu.memory_space<vmem>>, vector<512x128xf32>
    tpu.vector_store %arg5[%c0_7, %c0_8], %12 {strides = array<i32>} : memref<512x128xf32, #tpu.memory_space<vmem>>, vector<512x128xf32>,
    return
  }
  func.func @transform_0(%arg0: i32) -> (i32, i32) {
    %c0_i32 = arith.constant 0 : i32
    %c0_i32_0 = arith.constant 0 : i32
    return %arg0, %c0_i32 : i32, i32
  }
  func.func @transform_1(%arg0: i32) -> (i32, i32) {
    %c0_i32 = arith.constant 0 : i32
    %c0_i32_0 = arith.constant 0 : i32
    %c0_i32_1 = arith.constant 0 : i32
    return %c0_i32, %c0_i32_0 : i32, i32
  }
  func.func @transform_2(%arg0: i32) -> (i32, i32) {
    %c0_i32 = arith.constant 0 : i32
    %c0_i32_0 = arith.constant 0 : i32
    %c0_i32_1 = arith.constant 0 : i32
    return %c0_i32, %c0_i32_0 : i32, i32
  }
  func.func @transform_3(%arg0: i32) -> (i32, i32) {
    %c0_i32 = arith.constant 0 : i32
    %c0_i32_0 = arith.constant 0 : i32
    return %arg0, %c0_i32 : i32, i32
  }
  func.func @transform_4(%arg0: i32) -> (i32, i32) {
    %c0_i32 = arith.constant 0 : i32
    %c0_i32_0 = arith.constant 0 : i32
    return %arg0, %c0_i32 : i32, i32
  }
}

</mosaic_0001>

<llo_original>
// kernel: res_batchnorm_block.5
$region0: #{res_batchnorm_block.5}
  #allocation0 [shape = 'u32[]', space=smem, size = 0x4, offset = 0x4, fixed_abs, tag = 'smem constant byte address 0x4 - core index']
  #allocation1 [shape = 'u32[144,128]{1,0:T(1,128)}', space=vmem, size = 0x12000, scoped, tag = 'internal scratch']
  %s0 = inlined_call_operand.vmem [shape: bf16[512,128], index: 0, kind: input, shape index: {}]
  %s1 = inlined_call_operand.vmem [shape: f32[1,128], index: 1, kind: input, shape index: {}]
  %s2 = inlined_call_operand.vmem [shape: f32[1,128], index: 2, kind: input, shape index: {}]
  %s3 = inlined_call_operand.vmem [shape: bf16[512,128], index: 3, kind: input, shape index: {}]
  %s4 = inlined_call_operand.vmem [shape: f32[512,128], index: 4, kind: output, shape index: {}]
  %s5 = sld [smem:[#allocation0]]
  $region26: #{res_batchnorm_block.5} parent=0
    _
  %s7 = ssub.s32 1, %s5
  %s8 = scalar_select 0, %s7, %s5
  // Predicated region
  $region2: #{res_batchnorm_block.5} parent=0 // pred_check
    _
  $region3: #{res_batchnorm_block.5} parent=0 // pred_check_branch
    %10 = sbr.rel (0) target = $region5
  $region4: #{res_batchnorm_block.5} parent=0 // pred_region
    _
  $region5: #{res_batchnorm_block.5} parent=0 // pred_fallthru
    _
  // Predicated region
  $region6: #{res_batchnorm_block.5} parent=0 // pred_check
    _
  $region7: #{res_batchnorm_block.5} parent=0 // pred_check_branch
    %12 = sbr.rel (0) target = $region9
  $region8: #{res_batchnorm_block.5} parent=0 // pred_region
    _
  $region9: #{res_batchnorm_block.5} parent=0 // pred_fallthru
    _
  // Predicated region
  $region10: #{res_batchnorm_block.5} parent=0 // pred_check
    _
  $region11: #{res_batchnorm_block.5} parent=0 // pred_check_branch
    %14 = sbr.rel (0) target = $region13
  $region12: #{res_batchnorm_block.5} parent=0 // pred_region
    _
  $region13: #{res_batchnorm_block.5} parent=0 // pred_fallthru
    _
  // Predicated region
  $region14: #{res_batchnorm_block.5} parent=0 // pred_check
    _
  $region15: #{res_batchnorm_block.5} parent=0 // pred_check_branch
    %16 = sbr.rel (0) target = $region17
  $region16: #{res_batchnorm_block.5} parent=0 // pred_region
    _
  $region17: #{res_batchnorm_block.5} parent=0 // pred_fallthru
    _
  %v17 = vld [vmem:[%s0] sm:$0xf]
  %v18 = vld [vmem:[%s0 + $0x4] sm:$0xf]
  %v19 = vld [vmem:[%s0 + $0x8] sm:$0xf]
  %v20 = vld [vmem:[%s0 + $0xc] sm:$0xf]
  %v21 = vld [vmem:[%s0 + $0x10] sm:$0xf]
  %v22 = vld [vmem:[%s0 + $0x14] sm:$0xf]
  %v23 = vld [vmem:[%s0 + $0x18] sm:$0xf]
  %v24 = vld [vmem:[%s0 + $0x1c] sm:$0xf]
  %v25 = vld [vmem:[%s0 + $0x20] sm:$0xf]
  %v26 = vld [vmem:[%s0 + $0x24] sm:$0xf]
  %v27 = vld [vmem:[%s0 + $0x28] sm:$0xf]
  %v28 = vld [vmem:[%s0 + $0x2c] sm:$0xf]
  %v29 = vld [vmem:[%s0 + $0x30] sm:$0xf]
  %v30 = vld [vmem:[%s0 + $0x34] sm:$0xf]
  %v31 = vld [vmem:[%s0 + $0x38] sm:$0xf]
  %v32 = vld [vmem:[%s0 + $0x3c] sm:$0xf]
  %v33 = vld [vmem:[%s0 + $0x40] sm:$0xf]
  %v34 = vld [vmem:[%s0 + $0x44] sm:$0xf]
  %v35 = vld [vmem:[%s0 + $0x48] sm:$0xf]
  %v36 = vld [vmem:[%s0 + $0x4c] sm:$0xf]
  %v37 = vld [vmem:[%s0 + $0x50] sm:$0xf]
  %v38 = vld [vmem:[%s0 + $0x54] sm:$0xf]
  %v39 = vld [vmem:[%s0 + $0x58] sm:$0xf]
  %v40 = vld [vmem:[%s0 + $0x5c] sm:$0xf]
  %v41 = vld [vmem:[%s0 + $0x60] sm:$0xf]
  %v42 = vld [vmem:[%s0 + $0x64] sm:$0xf]
  %v43 = vld [vmem:[%s0 + $0x68] sm:$0xf]
  %v44 = vld [vmem:[%s0 + $0x6c] sm:$0xf]
  %v45 = vld [vmem:[%s0 + $0x70] sm:$0xf]
  %v46 = vld [vmem:[%s0 + $0x74] sm:$0xf]
  %v47 = vld [vmem:[%s0 + $0x78] sm:$0xf]
  %v48 = vld [vmem:[%s0 + $0x7c] sm:$0xf]
  %v49 = vld [vmem:[%s0 + $0x80] sm:$0xf]
  %v50 = vld [vmem:[%s0 + $0x84] sm:$0xf]
  %v51 = vld [vmem:[%s0 + $0x88] sm:$0xf]
  %v52 = vld [vmem:[%s0 + $0x8c] sm:$0xf]
  %v53 = vld [vmem:[%s0 + $0x90] sm:$0xf]
  %v54 = vld [vmem:[%s0 + $0x94] sm:$0xf]
  %v55 = vld [vmem:[%s0 + $0x98] sm:$0xf]
  %v56 = vld [vmem:[%s0 + $0x9c] sm:$0xf]
  %v57 = vld [vmem:[%s0 + $0xa0] sm:$0xf]
  %v58 = vld [vmem:[%s0 + $0xa4] sm:$0xf]
  %v59 = vld [vmem:[%s0 + $0xa8] sm:$0xf]
  %v60 = vld [vmem:[%s0 + $0xac] sm:$0xf]
  %v61 = vld [vmem:[%s0 + $0xb0] sm:$0xf]
  %v62 = vld [vmem:[%s0 + $0xb4] sm:$0xf]
  %v63 = vld [vmem:[%s0 + $0xb8] sm:$0xf]
  %v64 = vld [vmem:[%s0 + $0xbc] sm:$0xf]
  %v65 = vld [vmem:[%s0 + $0xc0] sm:$0xf]
  %v66 = vld [vmem:[%s0 + $0xc4] sm:$0xf]
  %v67 = vld [vmem:[%s0 + $0xc8] sm:$0xf]
  %v68 = vld [vmem:[%s0 + $0xcc] sm:$0xf]
  %v69 = vld [vmem:[%s0 + $0xd0] sm:$0xf]
  %v70 = vld [vmem:[%s0 + $0xd4] sm:$0xf]
  %v71 = vld [vmem:[%s0 + $0xd8] sm:$0xf]
  %v72 = vld [vmem:[%s0 + $0xdc] sm:$0xf]
  %v73 = vld [vmem:[%s0 + $0xe0] sm:$0xf]
  %v74 = vld [vmem:[%s0 + $0xe4] sm:$0xf]
  %v75 = vld [vmem:[%s0 + $0xe8] sm:$0xf]
  %v76 = vld [vmem:[%s0 + $0xec] sm:$0xf]
  %v77 = vld [vmem:[%s0 + $0xf0] sm:$0xf]
  %v78 = vld [vmem:[%s0 + $0xf4] sm:$0xf]
  %v79 = vld [vmem:[%s0 + $0xf8] sm:$0xf]
  %v80 = vld [vmem:[%s0 + $0xfc] sm:$0xf]
  %v81 = vunpack.c.l.bf16 %v17
  %v82 = vunpack.c.l.bf16 %v18
  %v83 = vunpack.c.l.bf16 %v19
  %v84 = vunpack.c.l.bf16 %v20
  %v85 = vunpack.c.l.bf16 %v21
  %v86 = vunpack.c.l.bf16 %v22
  %v87 = vunpack.c.l.bf16 %v23
  %v88 = vunpack.c.l.bf16 %v24
  %v89 = vunpack.c.l.bf16 %v25
  %v90 = vunpack.c.l.bf16 %v26
  %v91 = vunpack.c.l.bf16 %v27
  %v92 = vunpack.c.l.bf16 %v28
  %v93 = vunpack.c.l.bf16 %v29
  %v94 = vunpack.c.l.bf16 %v30
  %v95 = vunpack.c.l.bf16 %v31
  %v96 = vunpack.c.l.bf16 %v32
  %v97 = vunpack.c.l.bf16 %v33
  %v98 = vunpack.c.l.bf16 %v34
  %v99 = vunpack.c.l.bf16 %v35
  %v100 = vunpack.c.l.bf16 %v36
  %v101 = vunpack.c.l.bf16 %v37
  %v102 = vunpack.c.l.bf16 %v38
  %v103 = vunpack.c.l.bf16 %v39
  %v104 = vunpack.c.l.bf16 %v40
  %v105 = vunpack.c.l.bf16 %v41
  %v106 = vunpack.c.l.bf16 %v42
  %v107 = vunpack.c.l.bf16 %v43
  %v108 = vunpack.c.l.bf16 %v44
  %v109 = vunpack.c.l.bf16 %v45
  %v110 = vunpack.c.l.bf16 %v46
  %v111 = vunpack.c.l.bf16 %v47
  %v112 = vunpack.c.l.bf16 %v48
  %v113 = vunpack.c.l.bf16 %v49
  %v114 = vunpack.c.l.bf16 %v50
  %v115 = vunpack.c.l.bf16 %v51
  %v116 = vunpack.c.l.bf16 %v52
  %v117 = vunpack.c.l.bf16 %v53
  %v118 = vunpack.c.l.bf16 %v54
  %v119 = vunpack.c.l.bf16 %v55
  %v120 = vunpack.c.l.bf16 %v56
  %v121 = vunpack.c.l.bf16 %v57
  %v122 = vunpack.c.l.bf16 %v58
  %v123 = vunpack.c.l.bf16 %v59
  %v124 = vunpack.c.l.bf16 %v60
  %v125 = vunpack.c.l.bf16 %v61
  %v126 = vunpack.c.l.bf16 %v62
  %v127 = vunpack.c.l.bf16 %v63
  %v128 = vunpack.c.l.bf16 %v64
  %v129 = vunpack.c.l.bf16 %v65
  %v130 = vunpack.c.l.bf16 %v66
  %v131 = vunpack.c.l.bf16 %v67
  %v132 = vunpack.c.l.bf16 %v68
  %v133 = vunpack.c.l.bf16 %v69
  %v134 = vunpack.c.l.bf16 %v70
  %v135 = vunpack.c.l.bf16 %v71
  %v136 = vunpack.c.l.bf16 %v72
  %v137 = vunpack.c.l.bf16 %v73
  %v138 = vunpack.c.l.bf16 %v74
  %v139 = vunpack.c.l.bf16 %v75
  %v140 = vunpack.c.l.bf16 %v76
  %v141 = vunpack.c.l.bf16 %v77
  %v142 = vunpack.c.l.bf16 %v78
  %v143 = vunpack.c.l.bf16 %v79
  %v144 = vunpack.c.l.bf16 %v80
  %v145 = vld [vmem:[%s3] sm:$0xf]
  %v146 = vld [vmem:[%s3 + $0x4] sm:$0xf]
  %v147 = vld [vmem:[%s3 + $0x8] sm:$0xf]
  %v148 = vld [vmem:[%s3 + $0xc] sm:$0xf]
  %v149 = vld [vmem:[%s3 + $0x10] sm:$0xf]
  %v150 = vld [vmem:[%s3 + $0x14] sm:$0xf]
  %v151 = vld [vmem:[%s3 + $0x18] sm:$0xf]
  %v152 = vld [vmem:[%s3 + $0x1c] sm:$0xf]
  %v153 = vld [vmem:[%s3 + $0x20] sm:$0xf]
  %v154 = vld [vmem:[%s3 + $0x24] sm:$0xf]
  %v155 = vld [vmem:[%s3 + $0x28] sm:$0xf]
  %v156 = vld [vmem:[%s3 + $0x2c] sm:$0xf]
  %v157 = vld [vmem:[%s3 + $0x30] sm:$0xf]
  %v158 = vld [vmem:[%s3 + $0x34] sm:$0xf]
  %v159 = vld [vmem:[%s3 + $0x38] sm:$0xf]
  %v160 = vld [vmem:[%s3 + $0x3c] sm:$0xf]
  %v161 = vld [vmem:[%s3 + $0x40] sm:$0xf]
  %v162 = vld [vmem:[%s3 + $0x44] sm:$0xf]
  %v163 = vld [vmem:[%s3 + $0x48] sm:$0xf]
  %v164 = vld [vmem:[%s3 + $0x4c] sm:$0xf]
  %v165 = vld [vmem:[%s3 + $0x50] sm:$0xf]
  %v166 = vld [vmem:[%s3 + $0x54] sm:$0xf]
  %v167 = vld [vmem:[%s3 + $0x58] sm:$0xf]
  %v168 = vld [vmem:[%s3 + $0x5c] sm:$0xf]
  %v169 = vld [vmem:[%s3 + $0x60] sm:$0xf]
  %v170 = vld [vmem:[%s3 + $0x64] sm:$0xf]
  %v171 = vld [vmem:[%s3 + $0x68] sm:$0xf]
  %v172 = vld [vmem:[%s3 + $0x6c] sm:$0xf]
  %v173 = vld [vmem:[%s3 + $0x70] sm:$0xf]
  %v174 = vld [vmem:[%s3 + $0x74] sm:$0xf]
  %v175 = vld [vmem:[%s3 + $0x78] sm:$0xf]
  %v176 = vld [vmem:[%s3 + $0x7c] sm:$0xf]
  %v177 = vld [vmem:[%s3 + $0x80] sm:$0xf]
  %v178 = vld [vmem:[%s3 + $0x84] sm:$0xf]
  %v179 = vld [vmem:[%s3 + $0x88] sm:$0xf]
  %v180 = vld [vmem:[%s3 + $0x8c] sm:$0xf]
  %v181 = vld [vmem:[%s3 + $0x90] sm:$0xf]
  %v182 = vld [vmem:[%s3 + $0x94] sm:$0xf]
  %v183 = vld [vmem:[%s3 + $0x98] sm:$0xf]
  %v184 = vld [vmem:[%s3 + $0x9c] sm:$0xf]
  %v185 = vld [vmem:[%s3 + $0xa0] sm:$0xf]
  %v186 = vld [vmem:[%s3 + $0xa4] sm:$0xf]
  %v187 = vld [vmem:[%s3 + $0xa8] sm:$0xf]
  %v188 = vld [vmem:[%s3 + $0xac] sm:$0xf]
  %v189 = vld [vmem:[%s3 + $0xb0] sm:$0xf]
  %v190 = vld [vmem:[%s3 + $0xb4] sm:$0xf]
  %v191 = vld [vmem:[%s3 + $0xb8] sm:$0xf]
  %v192 = vld [vmem:[%s3 + $0xbc] sm:$0xf]
  %v193 = vld [vmem:[%s3 + $0xc0] sm:$0xf]
  %v194 = vld [vmem:[%s3 + $0xc4] sm:$0xf]
  %v195 = vld [vmem:[%s3 + $0xc8] sm:$0xf]
  %v196 = vld [vmem:[%s3 + $0xcc] sm:$0xf]
  %v197 = vld [vmem:[%s3 + $0xd0] sm:$0xf]
  %v198 = vld [vmem:[%s3 + $0xd4] sm:$0xf]
  %v199 = vld [vmem:[%s3 + $0xd8] sm:$0xf]
  %v200 = vld [vmem:[%s3 + $0xdc] sm:$0xf]
  %v201 = vld [vmem:[%s3 + $0xe0] sm:$0xf]
  %v202 = vld [vmem:[%s3 + $0xe4] sm:$0xf]
  %v203 = vld [vmem:[%s3 + $0xe8] sm:$0xf]
  %v204 = vld [vmem:[%s3 + $0xec] sm:$0xf]
  %v205 = vld [vmem:[%s3 + $0xf0] sm:$0xf]
  %v206 = vld [vmem:[%s3 + $0xf4] sm:$0xf]
  %v207 = vld [vmem:[%s3 + $0xf8] sm:$0xf]
  %v208 = vld [vmem:[%s3 + $0xfc] sm:$0xf]
  %v209 = vunpack.c.l.bf16 %v145
  %v210 = vunpack.c.l.bf16 %v146
  %v211 = vunpack.c.l.bf16 %v147
  %v212 = vunpack.c.l.bf16 %v148
  %v213 = vunpack.c.l.bf16 %v149
  %v214 = vunpack.c.l.bf16 %v150
  %v215 = vunpack.c.l.bf16 %v151
  %v216 = vunpack.c.l.bf16 %v152
  %v217 = vunpack.c.l.bf16 %v153
  %v218 = vunpack.c.l.bf16 %v154
  %v219 = vunpack.c.l.bf16 %v155
  %v220 = vunpack.c.l.bf16 %v156
  %v221 = vunpack.c.l.bf16 %v157
  %v222 = vunpack.c.l.bf16 %v158
  %v223 = vunpack.c.l.bf16 %v159
  %v224 = vunpack.c.l.bf16 %v160
  %v225 = vunpack.c.l.bf16 %v161
  %v226 = vunpack.c.l.bf16 %v162
  %v227 = vunpack.c.l.bf16 %v163
  %v228 = vunpack.c.l.bf16 %v164
  %v229 = vunpack.c.l.bf16 %v165
  %v230 = vunpack.c.l.bf16 %v166
  %v231 = vunpack.c.l.bf16 %v167
  %v232 = vunpack.c.l.bf16 %v168
  %v233 = vunpack.c.l.bf16 %v169
  %v234 = vunpack.c.l.bf16 %v170
  %v235 = vunpack.c.l.bf16 %v171
  %v236 = vunpack.c.l.bf16 %v172
  %v237 = vunpack.c.l.bf16 %v173
  %v238 = vunpack.c.l.bf16 %v174
  %v239 = vunpack.c.l.bf16 %v175
  %v240 = vunpack.c.l.bf16 %v176
  %v241 = vunpack.c.l.bf16 %v177
  %v242 = vunpack.c.l.bf16 %v178
  %v243 = vunpack.c.l.bf16 %v179
  %v244 = vunpack.c.l.bf16 %v180
  %v245 = vunpack.c.l.bf16 %v181
  %v246 = vunpack.c.l.bf16 %v182
  %v247 = vunpack.c.l.bf16 %v183
  %v248 = vunpack.c.l.bf16 %v184
  %v249 = vunpack.c.l.bf16 %v185
  %v250 = vunpack.c.l.bf16 %v186
  %v251 = vunpack.c.l.bf16 %v187
  %v252 = vunpack.c.l.bf16 %v188
  %v253 = vunpack.c.l.bf16 %v189
  %v254 = vunpack.c.l.bf16 %v190
  %v255 = vunpack.c.l.bf16 %v191
  %v256 = vunpack.c.l.bf16 %v192
  %v257 = vunpack.c.l.bf16 %v193
  %v258 = vunpack.c.l.bf16 %v194
  %v259 = vunpack.c.l.bf16 %v195
  %v260 = vunpack.c.l.bf16 %v196
  %v261 = vunpack.c.l.bf16 %v197
  %v262 = vunpack.c.l.bf16 %v198
  %v263 = vunpack.c.l.bf16 %v199
  %v264 = vunpack.c.l.bf16 %v200
  %v265 = vunpack.c.l.bf16 %v201
  %v266 = vunpack.c.l.bf16 %v202
  %v267 = vunpack.c.l.bf16 %v203
  %v268 = vunpack.c.l.bf16 %v204
  %v269 = vunpack.c.l.bf16 %v205
  %v270 = vunpack.c.l.bf16 %v206
  %v271 = vunpack.c.l.bf16 %v207
  %v272 = vunpack.c.l.bf16 %v208
  %v273 = vld [vmem:[%s1] sm:$0x1]
  %v275 = vlaneseq
  %v276 = vshrl.u32 %v275, 7
  %v277 = vsub.s32 0, %v276
  %v278 = vrot.slane %v273, %v277
  %v280 = vmul.f32 %v278, %v81
  %v281 = vmul.f32 %v278, %v82
  %v282 = vmul.f32 %v278, %v83
  %v283 = vmul.f32 %v278, %v84
  %v284 = vmul.f32 %v278, %v85
  %v285 = vmul.f32 %v278, %v86
  %v286 = vmul.f32 %v278, %v87
  %v287 = vmul.f32 %v278, %v88
  %v288 = vmul.f32 %v278, %v89
  %v289 = vmul.f32 %v278, %v90
  %v290 = vmul.f32 %v278, %v91
  %v291 = vmul.f32 %v278, %v92
  %v292 = vmul.f32 %v278, %v93
  %v293 = vmul.f32 %v278, %v94
  %v294 = vmul.f32 %v278, %v95
  %v295 = vmul.f32 %v278, %v96
  %v296 = vmul.f32 %v278, %v97
  %v297 = vmul.f32 %v278, %v98
  %v298 = vmul.f32 %v278, %v99
  %v299 = vmul.f32 %v278, %v100
  %v300 = vmul.f32 %v278, %v101
  %v301 = vmul.f32 %v278, %v102
  %v302 = vmul.f32 %v278, %v103
  %v303 = vmul.f32 %v278, %v104
  %v304 = vmul.f32 %v278, %v105
  %v305 = vmul.f32 %v278, %v106
  %v306 = vmul.f32 %v278, %v107
  %v307 = vmul.f32 %v278, %v108
  %v308 = vmul.f32 %v278, %v109
  %v309 = vmul.f32 %v278, %v110
  %v310 = vmul.f32 %v278, %v111
  %v311 = vmul.f32 %v278, %v112
  %v312 = vmul.f32 %v278, %v113
  %v313 = vmul.f32 %v278, %v114
  %v314 = vmul.f32 %v278, %v115
  %v315 = vmul.f32 %v278, %v116
  %v316 = vmul.f32 %v278, %v117
  %v317 = vmul.f32 %v278, %v118
  %v318 = vmul.f32 %v278, %v119
  %v319 = vmul.f32 %v278, %v120
  %v320 = vmul.f32 %v278, %v121
  %v321 = vmul.f32 %v278, %v122
  %v322 = vmul.f32 %v278, %v123
  %v323 = vmul.f32 %v278, %v124
  %v324 = vmul.f32 %v278, %v125
  %v325 = vmul.f32 %v278, %v126
  %v326 = vmul.f32 %v278, %v127
  %v327 = vmul.f32 %v278, %v128
  %v328 = vmul.f32 %v278, %v129
  %v329 = vmul.f32 %v278, %v130
  %v330 = vmul.f32 %v278, %v131
  %v331 = vmul.f32 %v278, %v132
  %v332 = vmul.f32 %v278, %v133
  %v333 = vmul.f32 %v278, %v134
  %v334 = vmul.f32 %v278, %v135
  %v335 = vmul.f32 %v278, %v136
  %v336 = vmul.f32 %v278, %v137
  %v337 = vmul.f32 %v278, %v138
  %v338 = vmul.f32 %v278, %v139
  %v339 = vmul.f32 %v278, %v140
  %v340 = vmul.f32 %v278, %v141
  %v341 = vmul.f32 %v278, %v142
  %v342 = vmul.f32 %v278, %v143
  %v343 = vmul.f32 %v278, %v144
  %v344 = vld [vmem:[%s2] sm:$0x1]
  %v346 = vlaneseq
  %v347 = vshrl.u32 %v346, 7
  %v348 = vsub.s32 0, %v347
  %v349 = vrot.slane %v344, %v348
  %v351 = vadd.f32 %v280, %v349
  %v352 = vadd.f32 %v281, %v349
  %v353 = vadd.f32 %v282, %v349
  %v354 = vadd.f32 %v283, %v349
  %v355 = vadd.f32 %v284, %v349
  %v356 = vadd.f32 %v285, %v349
  %v357 = vadd.f32 %v286, %v349
  %v358 = vadd.f32 %v287, %v349
  %v359 = vadd.f32 %v288, %v349
  %v360 = vadd.f32 %v289, %v349
  %v361 = vadd.f32 %v290, %v349
  %v362 = vadd.f32 %v291, %v349
  %v363 = vadd.f32 %v292, %v349
  %v364 = vadd.f32 %v293, %v349
  %v365 = vadd.f32 %v294, %v349
  %v366 = vadd.f32 %v295, %v349
  %v367 = vadd.f32 %v296, %v349
  %v368 = vadd.f32 %v297, %v349
  %v369 = vadd.f32 %v298, %v349
  %v370 = vadd.f32 %v299, %v349
  %v371 = vadd.f32 %v300, %v349
  %v372 = vadd.f32 %v301, %v349
  %v373 = vadd.f32 %v302, %v349
  %v374 = vadd.f32 %v303, %v349
  %v375 = vadd.f32 %v304, %v349
  %v376 = vadd.f32 %v305, %v349
  %v377 = vadd.f32 %v306, %v349
  %v378 = vadd.f32 %v307, %v349
  %v379 = vadd.f32 %v308, %v349
  %v380 = vadd.f32 %v309, %v349
  %v381 = vadd.f32 %v310, %v349
  %v382 = vadd.f32 %v311, %v349
  %v383 = vadd.f32 %v312, %v349
  %v384 = vadd.f32 %v313, %v349
  %v385 = vadd.f32 %v314, %v349
  %v386 = vadd.f32 %v315, %v349
  %v387 = vadd.f32 %v316, %v349
  %v388 = vadd.f32 %v317, %v349
  %v389 = vadd.f32 %v318, %v349
  %v390 = vadd.f32 %v319, %v349
  %v391 = vadd.f32 %v320, %v349
  %v392 = vadd.f32 %v321, %v349
  %v393 = vadd.f32 %v322, %v349
  %v394 = vadd.f32 %v323, %v349
  %v395 = vadd.f32 %v324, %v349
  %v396 = vadd.f32 %v325, %v349
  %v397 = vadd.f32 %v326, %v349
  %v398 = vadd.f32 %v327, %v349
  %v399 = vadd.f32 %v328, %v349
  %v400 = vadd.f32 %v329, %v349
  %v401 = vadd.f32 %v330, %v349
  %v402 = vadd.f32 %v331, %v349
  %v403 = vadd.f32 %v332, %v349
  %v404 = vadd.f32 %v333, %v349
  %v405 = vadd.f32 %v334, %v349
  %v406 = vadd.f32 %v335, %v349
  %v407 = vadd.f32 %v336, %v349
  %v408 = vadd.f32 %v337, %v349
  %v409 = vadd.f32 %v338, %v349
  %v410 = vadd.f32 %v339, %v349
  %v411 = vadd.f32 %v340, %v349
  %v412 = vadd.f32 %v341, %v349
  %v413 = vadd.f32 %v342, %v349
  %v414 = vadd.f32 %v343, %v349
  %v415 = vadd.f32 %v351, %v209
  %v416 = vadd.f32 %v352, %v210
  %v417 = vadd.f32 %v353, %v211
  %v418 = vadd.f32 %v354, %v212
  %v419 = vadd.f32 %v355, %v213
  %v420 = vadd.f32 %v356, %v214
  %v421 = vadd.f32 %v357, %v215
  %v422 = vadd.f32 %v358, %v216
  %v423 = vadd.f32 %v359, %v217
  %v424 = vadd.f32 %v360, %v218
  %v425 = vadd.f32 %v361, %v219
  %v426 = vadd.f32 %v362, %v220
  %v427 = vadd.f32 %v363, %v221
  %v428 = vadd.f32 %v364, %v222
  %v429 = vadd.f32 %v365, %v223
  %v430 = vadd.f32 %v366, %v224
  %v431 = vadd.f32 %v367, %v225
  %v432 = vadd.f32 %v368, %v226
  %v433 = vadd.f32 %v369, %v227
  %v434 = vadd.f32 %v370, %v228
  %v435 = vadd.f32 %v371, %v229
  %v436 = vadd.f32 %v372, %v230
  %v437 = vadd.f32 %v373, %v231
  %v438 = vadd.f32 %v374, %v232
  %v439 = vadd.f32 %v375, %v233
  %v440 = vadd.f32 %v376, %v234
  %v441 = vadd.f32 %v377, %v235
  %v442 = vadd.f32 %v378, %v236
  %v443 = vadd.f32 %v379, %v237
  %v444 = vadd.f32 %v380, %v238
  %v445 = vadd.f32 %v381, %v239
  %v446 = vadd.f32 %v382, %v240
  %v447 = vadd.f32 %v383, %v241
  %v448 = vadd.f32 %v384, %v242
  %v449 = vadd.f32 %v385, %v243
  %v450 = vadd.f32 %v386, %v244
  %v451 = vadd.f32 %v387, %v245
  %v452 = vadd.f32 %v388, %v246
  %v453 = vadd.f32 %v389, %v247
  %v454 = vadd.f32 %v390, %v248
  %v455 = vadd.f32 %v391, %v249
  %v456 = vadd.f32 %v392, %v250
  %v457 = vadd.f32 %v393, %v251
  %v458 = vadd.f32 %v394, %v252
  %v459 = vadd.f32 %v395, %v253
  %v460 = vadd.f32 %v396, %v254
  %v461 = vadd.f32 %v397, %v255
  %v462 = vadd.f32 %v398, %v256
  %v463 = vadd.f32 %v399, %v257
  %v464 = vadd.f32 %v400, %v258
  %v465 = vadd.f32 %v401, %v259
  %v466 = vadd.f32 %v402, %v260
  %v467 = vadd.f32 %v403, %v261
  %v468 = vadd.f32 %v404, %v262
  %v469 = vadd.f32 %v405, %v263
  %v470 = vadd.f32 %v406, %v264
  %v471 = vadd.f32 %v407, %v265
  %v472 = vadd.f32 %v408, %v266
  %v473 = vadd.f32 %v409, %v267
  %v474 = vadd.f32 %v410, %v268
  %v475 = vadd.f32 %v411, %v269
  %v476 = vadd.f32 %v412, %v270
  %v477 = vadd.f32 %v413, %v271
  %v478 = vadd.f32 %v414, %v272
  %v479 = vmax.f32 %v415, 0.0
  %v480 = vmax.f32 %v416, 0.0
  %v481 = vmax.f32 %v417, 0.0
  %v482 = vmax.f32 %v418, 0.0
  %v483 = vmax.f32 %v419, 0.0
  %v484 = vmax.f32 %v420, 0.0
  %v485 = vmax.f32 %v421, 0.0
  %v486 = vmax.f32 %v422, 0.0
  %v487 = vmax.f32 %v423, 0.0
  %v488 = vmax.f32 %v424, 0.0
  %v489 = vmax.f32 %v425, 0.0
  %v490 = vmax.f32 %v426, 0.0
  %v491 = vmax.f32 %v427, 0.0
  %v492 = vmax.f32 %v428, 0.0
  %v493 = vmax.f32 %v429, 0.0
  %v494 = vmax.f32 %v430, 0.0
  %v495 = vmax.f32 %v431, 0.0
  %v496 = vmax.f32 %v432, 0.0
  %v497 = vmax.f32 %v433, 0.0
  %v498 = vmax.f32 %v434, 0.0
  %v499 = vmax.f32 %v435, 0.0
  %v500 = vmax.f32 %v436, 0.0
  %v501 = vmax.f32 %v437, 0.0
  %v502 = vmax.f32 %v438, 0.0
  %v503 = vmax.f32 %v439, 0.0
  %v504 = vmax.f32 %v440, 0.0
  %v505 = vmax.f32 %v441, 0.0
  %v506 = vmax.f32 %v442, 0.0
  %v507 = vmax.f32 %v443, 0.0
  %v508 = vmax.f32 %v444, 0.0
  %v509 = vmax.f32 %v445, 0.0
  %v510 = vmax.f32 %v446, 0.0
  %v511 = vmax.f32 %v447, 0.0
  %v512 = vmax.f32 %v448, 0.0
  %v513 = vmax.f32 %v449, 0.0
  %v514 = vmax.f32 %v450, 0.0
  %v515 = vmax.f32 %v451, 0.0
  %v516 = vmax.f32 %v452, 0.0
  %v517 = vmax.f32 %v453, 0.0
  %v518 = vmax.f32 %v454, 0.0
  %v519 = vmax.f32 %v455, 0.0
  %v520 = vmax.f32 %v456, 0.0
  %v521 = vmax.f32 %v457, 0.0
  %v522 = vmax.f32 %v458, 0.0
  %v523 = vmax.f32 %v459, 0.0
  %v524 = vmax.f32 %v460, 0.0
  %v525 = vmax.f32 %v461, 0.0
  %v526 = vmax.f32 %v462, 0.0
  %v527 = vmax.f32 %v463, 0.0
  %v528 = vmax.f32 %v464, 0.0
  %v529 = vmax.f32 %v465, 0.0
  %v530 = vmax.f32 %v466, 0.0
  %v531 = vmax.f32 %v467, 0.0
  %v532 = vmax.f32 %v468, 0.0
  %v533 = vmax.f32 %v469, 0.0
  %v534 = vmax.f32 %v470, 0.0
  %v535 = vmax.f32 %v471, 0.0
  %v536 = vmax.f32 %v472, 0.0
  %v537 = vmax.f32 %v473, 0.0
  %v538 = vmax.f32 %v474, 0.0
  %v539 = vmax.f32 %v475, 0.0
  %v540 = vmax.f32 %v476, 0.0
  %v541 = vmax.f32 %v477, 0.0
  %v542 = vmax.f32 %v478, 0.0
  %543 = vst [vmem:[%s4] sm:$0xff] %v479
  %544 = vst [vmem:[%s4 + $0x8] sm:$0xff] %v480
  %545 = vst [vmem:[%s4 + $0x10] sm:$0xff] %v481
  %546 = vst [vmem:[%s4 + $0x18] sm:$0xff] %v482
  %547 = vst [vmem:[%s4 + $0x20] sm:$0xff] %v483
  %548 = vst [vmem:[%s4 + $0x28] sm:$0xff] %v484
  %549 = vst [vmem:[%s4 + $0x30] sm:$0xff] %v485
  %550 = vst [vmem:[%s4 + $0x38] sm:$0xff] %v486
  %551 = vst [vmem:[%s4 + $0x40] sm:$0xff] %v487
  %552 = vst [vmem:[%s4 + $0x48] sm:$0xff] %v488
  %553 = vst [vmem:[%s4 + $0x50] sm:$0xff] %v489
  %554 = vst [vmem:[%s4 + $0x58] sm:$0xff] %v490
  %555 = vst [vmem:[%s4 + $0x60] sm:$0xff] %v491
  %556 = vst [vmem:[%s4 + $0x68] sm:$0xff] %v492
  %557 = vst [vmem:[%s4 + $0x70] sm:$0xff] %v493
  %558 = vst [vmem:[%s4 + $0x78] sm:$0xff] %v494
  %559 = vst [vmem:[%s4 + $0x80] sm:$0xff] %v495
  %560 = vst [vmem:[%s4 + $0x88] sm:$0xff] %v496
  %561 = vst [vmem:[%s4 + $0x90] sm:$0xff] %v497
  %562 = vst [vmem:[%s4 + $0x98] sm:$0xff] %v498
  %563 = vst [vmem:[%s4 + $0xa0] sm:$0xff] %v499
  %564 = vst [vmem:[%s4 + $0xa8] sm:$0xff] %v500
  %565 = vst [vmem:[%s4 + $0xb0] sm:$0xff] %v501
  %566 = vst [vmem:[%s4 + $0xb8] sm:$0xff] %v502
  %567 = vst [vmem:[%s4 + $0xc0] sm:$0xff] %v503
  %568 = vst [vmem:[%s4 + $0xc8] sm:$0xff] %v504
  %569 = vst [vmem:[%s4 + $0xd0] sm:$0xff] %v505
  %570 = vst [vmem:[%s4 + $0xd8] sm:$0xff] %v506
  %571 = vst [vmem:[%s4 + $0xe0] sm:$0xff] %v507
  %572 = vst [vmem:[%s4 + $0xe8] sm:$0xff] %v508
  %573 = vst [vmem:[%s4 + $0xf0] sm:$0xff] %v509
  %574 = vst [vmem:[%s4 + $0xf8] sm:$0xff] %v510
  %575 = vst [vmem:[%s4 + $0x100] sm:$0xff] %v511
  %576 = vst [vmem:[%s4 + $0x108] sm:$0xff] %v512
  %577 = vst [vmem:[%s4 + $0x110] sm:$0xff] %v513
  %578 = vst [vmem:[%s4 + $0x118] sm:$0xff] %v514
  %579 = vst [vmem:[%s4 + $0x120] sm:$0xff] %v515
  %580 = vst [vmem:[%s4 + $0x128] sm:$0xff] %v516
  %581 = vst [vmem:[%s4 + $0x130] sm:$0xff] %v517
  %582 = vst [vmem:[%s4 + $0x138] sm:$0xff] %v518
  %583 = vst [vmem:[%s4 + $0x140] sm:$0xff] %v519
  %584 = vst [vmem:[%s4 + $0x148] sm:$0xff] %v520
  %585 = vst [vmem:[%s4 + $0x150] sm:$0xff] %v521
  %586 = vst [vmem:[%s4 + $0x158] sm:$0xff] %v522
  %587 = vst [vmem:[%s4 + $0x160] sm:$0xff] %v523
  %588 = vst [vmem:[%s4 + $0x168] sm:$0xff] %v524
  %589 = vst [vmem:[%s4 + $0x170] sm:$0xff] %v525
  %590 = vst [vmem:[%s4 + $0x178] sm:$0xff] %v526
  %591 = vst [vmem:[%s4 + $0x180] sm:$0xff] %v527
  %592 = vst [vmem:[%s4 + $0x188] sm:$0xff] %v528
  %593 = vst [vmem:[%s4 + $0x190] sm:$0xff] %v529
  %594 = vst [vmem:[%s4 + $0x198] sm:$0xff] %v530
  %595 = vst [vmem:[%s4 + $0x1a0] sm:$0xff] %v531
  %596 = vst [vmem:[%s4 + $0x1a8] sm:$0xff] %v532
  %597 = vst [vmem:[%s4 + $0x1b0] sm:$0xff] %v533
  %598 = vst [vmem:[%s4 + $0x1b8] sm:$0xff] %v534
  %599 = vst [vmem:[%s4 + $0x1c0] sm:$0xff] %v535
  %600 = vst [vmem:[%s4 + $0x1c8] sm:$0xff] %v536
  %601 = vst [vmem:[%s4 + $0x1d0] sm:$0xff] %v537
  %602 = vst [vmem:[%s4 + $0x1d8] sm:$0xff] %v538
  %603 = vst [vmem:[%s4 + $0x1e0] sm:$0xff] %v539
  %604 = vst [vmem:[%s4 + $0x1e8] sm:$0xff] %v540
  %605 = vst [vmem:[%s4 + $0x1f0] sm:$0xff] %v541
  %606 = vst [vmem:[%s4 + $0x1f8] sm:$0xff] %v542
  // Predicated region
  $region18: #{res_batchnorm_block.5} parent=0 // pred_check
    _
  $region19: #{res_batchnorm_block.5} parent=0 // pred_check_branch
    %608 = sbr.rel (0) target = $region21
  $region20: #{res_batchnorm_block.5} parent=0 // pred_region
    _
  $region21: #{res_batchnorm_block.5} parent=0 // pred_fallthru
    _
  // Predicated region
  $region22: #{res_batchnorm_block.5} parent=0 // pred_check
    _
  $region23: #{res_batchnorm_block.5} parent=0 // pred_check_branch
    %610 = sbr.rel (0) target = $region25
  $region24: #{res_batchnorm_block.5} parent=0 // pred_region
    _
  $region25: #{res_batchnorm_block.5} parent=0 // pred_fallthru
    _

// kernel: res_batchnorm_block.3
$region0: #{res_batchnorm_block.3}
  #allocation0 [shape = 'u32[]', space=smem, size = 0x4, offset = 0x4, fixed_abs, tag = 'smem constant byte address 0x4 - core index']
  #allocation1 [shape = 'u32[144,128]{1,0:T(1,128)}', space=vmem, size = 0x12000, scoped, tag = 'internal scratch']
  #allocation2 [shape = 'bf16[10,18,8]{2,1,0:T(8,128)(2,1)}', space=vmem, size = 0xf000, scoped, tag = 'scratch operand']
  %s0 = inlined_call_operand.vmem [shape: bf16[2,16,16,8], index: 0, kind: input, shape index: {}]
  %s1 = inlined_call_operand.vmem [shape: bf16[128,128], index: 1, kind: input, shape index: {}]
  %s2 = inlined_call_operand.vmem [shape: bf16[8,128], index: 2, kind: input, shape index: {}]
  %s3 = inlined_call_operand.vmem [shape: f32[1,128], index: 3, kind: input, shape index: {}]
  %s4 = inlined_call_operand.vmem [shape: bf16[2,16,16,128], index: 4, kind: output, shape index: {0}]
  %s5 = inlined_call_operand.vmem [shape: bf16[2,16,16,128], index: 5, kind: output, shape index: {1}]
  %s6 = inlined_call_operand.vmem [shape: f32[2,2,8,128], index: 6, kind: output, shape index: {2}]
  %7 = xla_tuple %s4, %s5, %s6
  %s8 = sld [smem:[#allocation0]]
  $region73: #{res_batchnorm_block.3} parent=0
    _
  %s10 = ssub.s32 1, %s8
  %s11 = scalar_select 0, %s10, %s8
  loop: start=0, step=1, limit=6
  $region2: #{res_batchnorm_block.3} parent=0 // loop_pre_header
    _
  $region3: #{res_batchnorm_block.3} parent=0 // loop_header
    %s13 = sphi 0, %s17
    %p14 = scmp.ge.s32.totalorder %s13, 6
    %s20 = sphi 0, %s32
    %s21 = sphi 0, %s28
    %s22 = sphi 0, %s20
    %s23 = sphi 0, %s21
    %s24 = sphi 0, %s22
    %s25 = sphi 0, %s23
    %s35 = sphi 0, %s37
    %s38 = sphi 0, %s35
    %s39 = sphi 0, %s38
    %s55 = sphi 0, %s39
    %s59 = sphi 0, %s59
    %s61 = sphi 0, %s59
    %s62 = sphi 0, %s61
    %s76 = sphi 0, %s62
    %s80 = sphi 0, %s80
    %s82 = sphi 0, %s80
    %s83 = sphi 0, %s82
    %s97 = sphi 0, %s83
    %s101 = sphi 0, %s101
    %s103 = sphi 0, %s101
    %s104 = sphi 0, %s103
    %s118 = sphi 0, %s104
    %s126 = sphi 0, %s128
    %s129 = sphi 0, %s126
    %s130 = sphi 0, %s129
    %s146 = sphi 0, %s130
    %s154 = sphi 0, %s156
    %s157 = sphi 0, %s154
    %s158 = sphi 0, %s157
    %s174 = sphi 0, %s158
    %s182 = sphi 0, %s184
    %s185 = sphi 0, %s182
    %s186 = sphi 0, %s185
    %s202 = sphi 0, %s186
  $region4: #{res_batchnorm_block.3} parent=0 // loop_header_branch
    %16 = sbr.rel (%p14) target = $region8
  $region5: #{res_batchnorm_block.3} parent=0 // loop_body
    %s18 = ssub.s32 %s13, 1
    %s19 = ssub.s32 %s13, 2
    %s26 = sadd.s32 1, %s21
    %p27 = scmp.ge.s32.totalorder %s26, 2
    %s28 = scalar_select %p27, 0, %s26
    %s29 = sadd.s32 1, %s20
    %s30 = scalar_select %p27, %s29, %s20
    %p31 = scmp.ge.s32.totalorder %s30, 2
    %s32 = scalar_select %p31, 0, %s30
    %s33 = ssub.s32 %s20, %s32
    %p34 = scmp.eq.s32.totalorder %s33, 0
    %s36 = sadd.s32 %s35, 1
    %s37 = scalar_select %p34, %s35, %s36
    %p40 = pneg %p34
    %p41 = scmp.eq.s32.totalorder %s13, 3
    %p42 = por %p40, %p41
    %p43 = scmp.ne.s32.totalorder %s35, %s38
    %p44 = scmp.eq.s32.totalorder %s13, 0
    %p45 = por %p43, %p44
    %p46 = scmp.ne.s32.totalorder %s35, %s38
    %p47 = scmp.eq.s32.totalorder %s18, 3
    %p48 = por %p46, %p47
    %p49 = scmp.ne.s32.totalorder %s38, %s39
    %p50 = scmp.eq.s32.totalorder %s18, 0
    %p51 = por %p49, %p50
    %p52 = scmp.ne.s32.totalorder %s38, %s39
    %p53 = scmp.eq.s32.totalorder %s19, 3
    %p54 = por %p52, %p53
    %p56 = scmp.ne.s32.totalorder %s39, %s55
    %p57 = scmp.eq.s32.totalorder %s19, 0
    %p58 = por %p56, %p57
    %s60 = sadd.s32 %s59, 1
    %p63 = scmp.eq.s32.totalorder %s13, 3
    %p64 = scmp.ne.s32.totalorder %s59, %s61
    %p65 = scmp.eq.s32.totalorder %s13, 0
    %p66 = por %p64, %p65
    %p67 = scmp.ne.s32.totalorder %s59, %s61
    %p68 = scmp.eq.s32.totalorder %s18, 3
    %p69 = por %p67, %p68
    %p70 = scmp.ne.s32.totalorder %s61, %s62
    %p71 = scmp.eq.s32.totalorder %s18, 0
    %p72 = por %p70, %p71
    %p73 = scmp.ne.s32.totalorder %s61, %s62
    %p74 = scmp.eq.s32.totalorder %s19, 3
    %p75 = por %p73, %p74
    %p77 = scmp.ne.s32.totalorder %s62, %s76
    %p78 = scmp.eq.s32.totalorder %s19, 0
    %p79 = por %p77, %p78
    %s81 = sadd.s32 %s80, 1
    %p84 = scmp.eq.s32.totalorder %s13, 3
    %p85 = scmp.ne.s32.totalorder %s80, %s82
    %p86 = scmp.eq.s32.totalorder %s13, 0
    %p87 = por %p85, %p86
    %p88 = scmp.ne.s32.totalorder %s80, %s82
    %p89 = scmp.eq.s32.totalorder %s18, 3
    %p90 = por %p88, %p89
    %p91 = scmp.ne.s32.totalorder %s82, %s83
    %p92 = scmp.eq.s32.totalorder %s18, 0
    %p93 = por %p91, %p92
    %p94 = scmp.ne.s32.totalorder %s82, %s83
    %p95 = scmp.eq.s32.totalorder %s19, 3
    %p96 = por %p94, %p95
    %p98 = scmp.ne.s32.totalorder %s83, %s97
    %p99 = scmp.eq.s32.totalorder %s19, 0
    %p100 = por %p98, %p99
    %s102 = sadd.s32 %s101, 1
    %p105 = scmp.eq.s32.totalorder %s13, 3
    %p106 = scmp.ne.s32.totalorder %s101, %s103
    %p107 = scmp.eq.s32.totalorder %s13, 0
    %p108 = por %p106, %p107
    %p109 = scmp.ne.s32.totalorder %s101, %s103
    %p110 = scmp.eq.s32.totalorder %s18, 3
    %p111 = por %p109, %p110
    %p112 = scmp.ne.s32.totalorder %s103, %s104
    %p113 = scmp.eq.s32.totalorder %s18, 0
    %p114 = por %p112, %p113
    %p115 = scmp.ne.s32.totalorder %s103, %s104
    %p116 = scmp.eq.s32.totalorder %s19, 3
    %p117 = por %p115, %p116
    %p119 = scmp.ne.s32.totalorder %s104, %s118
    %p120 = scmp.eq.s32.totalorder %s19, 0
    %p121 = por %p119, %p120
    %s122 = ssub.s32 %s20, %s32
    %s123 = ssub.s32 %s21, %s28
    %s124 = sor.u32 %s122, %s123
    %p125 = scmp.eq.s32.totalorder %s124, 0
    %s127 = sadd.s32 %s126, 1
    %s128 = scalar_select %p125, %s126, %s127
    %p131 = pneg %p125
    %p132 = scmp.eq.s32.totalorder %s13, 3
    %p133 = por %p131, %p132
    %p134 = scmp.ne.s32.totalorder %s126, %s129
    %p135 = scmp.eq.s32.totalorder %s13, 0
    %p136 = por %p134, %p135
    %p137 = scmp.ne.s32.totalorder %s126, %s129
    %p138 = scmp.eq.s32.totalorder %s18, 3
    %p139 = por %p137, %p138
    %p140 = scmp.ne.s32.totalorder %s129, %s130
    %p141 = scmp.eq.s32.totalorder %s18, 0
    %p142 = por %p140, %p141
    %p143 = scmp.ne.s32.totalorder %s129, %s130
    %p144 = scmp.eq.s32.totalorder %s19, 3
    %p145 = por %p143, %p144
    %p147 = scmp.ne.s32.totalorder %s130, %s146
    %p148 = scmp.eq.s32.totalorder %s19, 0
    %p149 = por %p147, %p148
    %s150 = ssub.s32 %s20, %s32
    %s151 = ssub.s32 %s21, %s28
    %s152 = sor.u32 %s150, %s151
    %p153 = scmp.eq.s32.totalorder %s152, 0
    %s155 = sadd.s32 %s154, 1
    %s156 = scalar_select %p153, %s154, %s155
    %p159 = pneg %p153
    %p160 = scmp.eq.s32.totalorder %s13, 3
    %p161 = por %p159, %p160
    %p162 = scmp.ne.s32.totalorder %s154, %s157
    %p163 = scmp.eq.s32.totalorder %s13, 0
    %p164 = por %p162, %p163
    %p165 = scmp.ne.s32.totalorder %s154, %s157
    %p166 = scmp.eq.s32.totalorder %s18, 3
    %p167 = por %p165, %p166
    %p168 = scmp.ne.s32.totalorder %s157, %s158
    %p169 = scmp.eq.s32.totalorder %s18, 0
    %p170 = por %p168, %p169
    %p171 = scmp.ne.s32.totalorder %s157, %s158
    %p172 = scmp.eq.s32.totalorder %s19, 3
    %p173 = por %p171, %p172
    %p175 = scmp.ne.s32.totalorder %s158, %s174
    %p176 = scmp.eq.s32.totalorder %s19, 0
    %p177 = por %p175, %p176
    %s178 = ssub.s32 %s20, %s32
    %s179 = ssub.s32 %s21, %s28
    %s180 = sor.u32 %s178, %s179
    %p181 = scmp.eq.s32.totalorder %s180, 0
    %s183 = sadd.s32 %s182, 1
    %s184 = scalar_select %p181, %s182, %s183
    %p187 = pneg %p181
    %p188 = scmp.eq.s32.totalorder %s13, 3
    %p189 = por %p187, %p188
    %p190 = scmp.ne.s32.totalorder %s182, %s185
    %p191 = scmp.eq.s32.totalorder %s13, 0
    %p192 = por %p190, %p191
    %p193 = scmp.ne.s32.totalorder %s182, %s185
    %p194 = scmp.eq.s32.totalorder %s18, 3
    %p195 = por %p193, %p194
    %p196 = scmp.ne.s32.totalorder %s185, %s186
    %p197 = scmp.eq.s32.totalorder %s18, 0
    %p198 = por %p196, %p197
    %p199 = scmp.ne.s32.totalorder %s185, %s186
    %p200 = scmp.eq.s32.totalorder %s19, 3
    %p201 = por %p199, %p200
    %p203 = scmp.ne.s32.totalorder %s186, %s202
    %p204 = scmp.eq.s32.totalorder %s19, 0
    %p205 = por %p203, %p204
    %p206 = scmp.le.s32.totalorder 1, %s13
    %p207 = scmp.lt.s32.totalorder %s13, 5
    %p208 = pnand %p206, %p207
    %p209 = pneg %p208
    // Predicated region
    $region9: #{res_batchnorm_block.3} parent=5 // pred_check
      _
    $region10: #{res_batchnorm_block.3} parent=5 // pred_check_branch
      %211 = sbr.rel (%p208) target = $region12
    $region11: #{res_batchnorm_block.3} parent=5 // pred_region
      %s212 = ssub.s32 %s13, 1
      // Predicated region
      $region13: #{res_batchnorm_block.3} parent=11 // pred_check
        %p213 = pneg %p72
      $region14: #{res_batchnorm_block.3} parent=11 // pred_check_branch
        %215 = sbr.rel (%p213) target = $region16
      $region15: #{res_batchnorm_block.3} parent=11 // pred_region
        _
      $region16: #{res_batchnorm_block.3} parent=11 // pred_fallthru
        _
      // Predicated region
      $region17: #{res_batchnorm_block.3} parent=11 // pred_check
        %p216 = pneg %p93
      $region18: #{res_batchnorm_block.3} parent=11 // pred_check_branch
        %218 = sbr.rel (%p216) target = $region20
      $region19: #{res_batchnorm_block.3} parent=11 // pred_region
        _
      $region20: #{res_batchnorm_block.3} parent=11 // pred_fallthru
        _
      // Predicated region
      $region21: #{res_batchnorm_block.3} parent=11 // pred_check
        %p219 = pneg %p114
      $region22: #{res_batchnorm_block.3} parent=11 // pred_check_branch
        %221 = sbr.rel (%p219) target = $region24
      $region23: #{res_batchnorm_block.3} parent=11 // pred_region
        _
      $region24: #{res_batchnorm_block.3} parent=11 // pred_fallthru
        _
    $region12: #{res_batchnorm_block.3} parent=5 // pred_fallthru
      _
    %p222 = scmp.lt.s32.totalorder %s13, 4
    // Predicated region
    $region25: #{res_batchnorm_block.3} parent=5 // pred_check
      %p223 = pneg %p222
    $region26: #{res_batchnorm_block.3} parent=5 // pred_check_branch
      %225 = sbr.rel (%p223) target = $region28
    $region27: #{res_batchnorm_block.3} parent=5 // pred_region
      // Predicated region
      $region29: #{res_batchnorm_block.3} parent=27 // pred_check
        %p226 = pneg %p45
      $region30: #{res_batchnorm_block.3} parent=27 // pred_check_branch
        %228 = sbr.rel (%p226) target = $region32
      $region31: #{res_batchnorm_block.3} parent=27 // pred_region
        %p229 = scmp.lt.s32.totalorder %s20, 1
        %s230 = scalar_select %p229, %s20, 1
        %s231 = smul.addr %s230, 32
        %s232 = smul.addr %s231, 4
        %s233 = scalar_lea.vmem %s0, %s232
      $region32: #{res_batchnorm_block.3} parent=27 // pred_fallthru
        _
    $region28: #{res_batchnorm_block.3} parent=5 // pred_fallthru
      _
    %p234 = scmp.le.s32.totalorder 1, %s13
    %p235 = scmp.lt.s32.totalorder %s13, 5
    %p236 = pnand %p234, %p235
    %p237 = pneg %p236
    // Predicated region
    $region33: #{res_batchnorm_block.3} parent=5 // pred_check
      _
    $region34: #{res_batchnorm_block.3} parent=5 // pred_check_branch
      %239 = sbr.rel (%p236) target = $region36
    $region35: #{res_batchnorm_block.3} parent=5 // pred_region
      %s240 = ssub.s32 %s13, 1
      %p241 = scmp.lt.s32.totalorder %s22, 1
      %s242 = scalar_select %p241, %s22, 1
      %s243 = smul.addr %s242, 32
      %s244 = smul.addr %s243, 4
      %s245 = scalar_lea.vmem %s0, %s244
      %p246 = pneg %p51
      %p247 = pneg %p48
      %p248 = pneg %p72
      %p249 = pneg %p69
      %p250 = pneg %p93
      %p251 = pneg %p90
      %p252 = pneg %p114
      %p253 = pneg %p111
      %p254 = pneg %p142
      %p255 = pneg %p139
      %s256 = smul.u32 8, %s23
      %p257 = scmp.lt.s32.totalorder %s22, 1
      %s258 = scalar_select %p257, %s22, 1
      %p259 = scmp.lt.s32.totalorder %s256, 15
      %s260 = scalar_select %p259, %s256, 15
      %s261 = smul.addr %s260, 2
      %s262 = smul.addr %s258, 32
      %s263 = sadd.s32 %s261, %s262
      %s264 = smul.addr %s263, 4
      %s265 = scalar_lea.vmem %s4, %s264
      %p266 = pneg %p170
      %p267 = pneg %p167
      %s268 = smul.u32 8, %s23
      %p269 = scmp.lt.s32.totalorder %s22, 1
      %s270 = scalar_select %p269, %s22, 1
      %p271 = scmp.lt.s32.totalorder %s268, 15
      %s272 = scalar_select %p271, %s268, 15
      %s273 = smul.addr %s272, 2
      %s274 = smul.addr %s270, 32
      %s275 = sadd.s32 %s273, %s274
      %s276 = smul.addr %s275, 4
      %s277 = scalar_lea.vmem %s5, %s276
      %p278 = pneg %p198
      %p279 = pneg %p195
      %p280 = scmp.lt.s32.totalorder %s22, 1
      %s281 = scalar_select %p280, %s22, 1
      %p282 = scmp.lt.s32.totalorder %s23, 1
      %s283 = scalar_select %p282, %s23, 1
      %s284 = smul.addr %s281, 2
      %s285 = sadd.s32 %s283, %s284
      %s286 = smul.addr %s285, 8
      %s287 = scalar_lea.vmem %s6, %s286
      %p288 = scmp.lt.s32.totalorder %s22, 1
      %s289 = scalar_select %p288, %s22, 1
      %s290 = smul.addr %s289, 32
      %s291 = smul.addr %s290, 4
      %s292 = scalar_lea.vmem %s0, %s291
      %s293 = smul.u32 8, %s23
      %p294 = scmp.lt.s32.totalorder %s22, 1
      %s295 = scalar_select %p294, %s22, 1
      %p296 = scmp.lt.s32.totalorder %s293, 15
      %s297 = scalar_select %p296, %s293, 15
      %s298 = smul.addr %s297, 2
      %s299 = smul.addr %s295, 32
      %s300 = sadd.s32 %s298, %s299
      %s301 = smul.addr %s300, 4
      %s302 = scalar_lea.vmem %s4, %s301
      %s303 = smul.u32 8, %s23
      %s304 = smul.u32 8, %s23
      %p305 = scmp.lt.s32.totalorder %s22, 1
      %s306 = scalar_select %p305, %s22, 1
      %p307 = scmp.lt.s32.totalorder %s304, 15
      %s308 = scalar_select %p307, %s304, 15
      %s309 = smul.addr %s308, 2
      %s310 = smul.addr %s306, 32
      %s311 = sadd.s32 %s309, %s310
      %s312 = smul.addr %s311, 4
      %s313 = scalar_lea.vmem %s5, %s312
      %s314 = smul.u32 8, %s23
      %p315 = scmp.lt.s32.totalorder %s22, 1
      %s316 = scalar_select %p315, %s22, 1
      %p317 = scmp.lt.s32.totalorder %s23, 1
      %s318 = scalar_select %p317, %s23, 1
      %s319 = smul.addr %s316, 2
      %s320 = sadd.s32 %s318, %s319
      %s321 = smul.addr %s320, 8
      %s322 = scalar_lea.vmem %s6, %s321
      %s324 = smul.u32 %s23, 8
      %vm325 = vcmask 60416
      %326 = vst.msk [vmem:[#allocation2] sm:$0xf] %vm325, 0
      %327 = vst.msk [vmem:[#allocation2 + $0x4] sm:$0xf] %vm325, 0
      %vm328 = vcmask 57344
      %329 = vst.msk [vmem:[#allocation2 + $0x8] sm:$0x1] %vm328, 0
      %330 = vst.msk [vmem:[#allocation2 + $0xc] sm:$0xf] %vm325, 0
      %331 = vst.msk [vmem:[#allocation2 + $0x10] sm:$0xf] %vm325, 0
      %332 = vst.msk [vmem:[#allocation2 + $0x14] sm:$0x1] %vm328, 0
      %333 = vst.msk [vmem:[#allocation2 + $0x18] sm:$0xf] %vm325, 0
      %334 = vst.msk [vmem:[#allocation2 + $0x1c] sm:$0xf] %vm325, 0
      %335 = vst.msk [vmem:[#allocation2 + $0x20] sm:$0x1] %vm328, 0
      %336 = vst.msk [vmem:[#allocation2 + $0x24] sm:$0xf] %vm325, 0
      %337 = vst.msk [vmem:[#allocation2 + $0x28] sm:$0xf] %vm325, 0
      %338 = vst.msk [vmem:[#allocation2 + $0x2c] sm:$0x1] %vm328, 0
      %339 = vst.msk [vmem:[#allocation2 + $0x30] sm:$0xf] %vm325, 0
      %340 = vst.msk [vmem:[#allocation2 + $0x34] sm:$0xf] %vm325, 0
      %341 = vst.msk [vmem:[#allocation2 + $0x38] sm:$0x1] %vm328, 0
      %342 = vst.msk [vmem:[#allocation2 + $0x3c] sm:$0xf] %vm325, 0
      %343 = vst.msk [vmem:[#allocation2 + $0x40] sm:$0xf] %vm325, 0
      %344 = vst.msk [vmem:[#allocation2 + $0x44] sm:$0x1] %vm328, 0
      %345 = vst.msk [vmem:[#allocation2 + $0x48] sm:$0xf] %vm325, 0
      %346 = vst.msk [vmem:[#allocation2 + $0x4c] sm:$0xf] %vm325, 0
      %347 = vst.msk [vmem:[#allocation2 + $0x50] sm:$0x1] %vm328, 0
      %348 = vst.msk [vmem:[#allocation2 + $0x54] sm:$0xf] %vm325, 0
      %349 = vst.msk [vmem:[#allocation2 + $0x58] sm:$0xf] %vm325, 0
      %350 = vst.msk [vmem:[#allocation2 + $0x5c] sm:$0x1] %vm328, 0
      %351 = vst.msk [vmem:[#allocation2 + $0x60] sm:$0xf] %vm325, 0
      %352 = vst.msk [vmem:[#allocation2 + $0x64] sm:$0xf] %vm325, 0
      %353 = vst.msk [vmem:[#allocation2 + $0x68] sm:$0x1] %vm328, 0
      %354 = vst.msk [vmem:[#allocation2 + $0x6c] sm:$0xf] %vm325, 0
      %355 = vst.msk [vmem:[#allocation2 + $0x70] sm:$0xf] %vm325, 0
      %356 = vst.msk [vmem:[#allocation2 + $0x74] sm:$0x1] %vm328, 0
      %s357 = smul.u32 %s324, 2
      %s358 = smul.addr %s357, 4
      %s359 = scalar_lea.vmem %s292, %s358
      %v360 = vld [vmem:[%s359] sm:$0xf]
      %v361 = vld [vmem:[%s359 + $0x4] sm:$0xf]
      %v362 = vld [vmem:[%s359 + $0x8] sm:$0xf]
      %v363 = vld [vmem:[%s359 + $0xc] sm:$0xf]
      %v364 = vld [vmem:[%s359 + $0x10] sm:$0xf]
      %v365 = vld [vmem:[%s359 + $0x14] sm:$0xf]
      %v366 = vld [vmem:[%s359 + $0x18] sm:$0xf]
      %v367 = vld [vmem:[%s359 + $0x1c] sm:$0xf]
      %v368 = vld [vmem:[%s359 + $0x20] sm:$0xf]
      %v369 = vld [vmem:[%s359 + $0x24] sm:$0xf]
      %v370 = vld [vmem:[%s359 + $0x28] sm:$0xf]
      %v371 = vld [vmem:[%s359 + $0x2c] sm:$0xf]
      %v372 = vld [vmem:[%s359 + $0x30] sm:$0xf]
      %v373 = vld [vmem:[%s359 + $0x34] sm:$0xf]
      %v374 = vld [vmem:[%s359 + $0x38] sm:$0xf]
      %v375 = vld [vmem:[%s359 + $0x3c] sm:$0xf]
      %vm376 = vsmask.f32 256
      %vm377 = vsmask.f32 4368
      %vm378 = vmor %vm376, %vm377
      %v380 = vshrl.u32 %v360, 16
      %v382 = vrot.slane %v380, 7
      %v383 = vshll.u32 %v360, 16
      %v385 = vor.u32 %v382, %v383
      %v386 = vrot.slane %v382, 4
      %v388 = vshrl.u32 %v361, 16
      %v390 = vrot.slane %v388, 7
      %v391 = vshll.u32 %v361, 16
      %v393 = vor.u32 %v390, %v391
      %v394 = vsel %vm378, %v386, %v393
      %v395 = vrot.slane %v390, 4
      %v397 = vshrl.u32 %v362, 16
      %v399 = vrot.slane %v397, 7
      %v400 = vshll.u32 %v362, 16
      %v402 = vor.u32 %v399, %v400
      %v403 = vrot.slane %v399, 4
      %v405 = vshrl.u32 %v363, 16
      %v407 = vrot.slane %v405, 7
      %v408 = vshll.u32 %v363, 16
      %v410 = vor.u32 %v407, %v408
      %v411 = vsel %vm378, %v403, %v410
      %v412 = vrot.slane %v407, 4
      %v414 = vshrl.u32 %v364, 16
      %v416 = vrot.slane %v414, 7
      %v417 = vshll.u32 %v364, 16
      %v419 = vor.u32 %v416, %v417
      %v420 = vrot.slane %v416, 4
      %v422 = vshrl.u32 %v365, 16
      %v424 = vrot.slane %v422, 7
      %v425 = vshll.u32 %v365, 16
      %v427 = vor.u32 %v424, %v425
      %v428 = vsel %vm378, %v420, %v427
      %v429 = vrot.slane %v424, 4
      %v431 = vshrl.u32 %v366, 16
      %v433 = vrot.slane %v431, 7
      %v434 = vshll.u32 %v366, 16
      %v436 = vor.u32 %v433, %v434
      %v437 = vrot.slane %v433, 4
      %v439 = vshrl.u32 %v367, 16
      %v441 = vrot.slane %v439, 7
      %v442 = vshll.u32 %v367, 16
      %v444 = vor.u32 %v441, %v442
      %v445 = vsel %vm378, %v437, %v444
      %v446 = vrot.slane %v441, 4
      %v448 = vshrl.u32 %v368, 16
      %v450 = vrot.slane %v448, 7
      %v451 = vshll.u32 %v368, 16
      %v453 = vor.u32 %v450, %v451
      %v454 = vrot.slane %v450, 4
      %v456 = vshrl.u32 %v369, 16
      %v458 = vrot.slane %v456, 7
      %v459 = vshll.u32 %v369, 16
      %v461 = vor.u32 %v458, %v459
      %v462 = vsel %vm378, %v454, %v461
      %v463 = vrot.slane %v458, 4
      %v465 = vshrl.u32 %v370, 16
      %v467 = vrot.slane %v465, 7
      %v468 = vshll.u32 %v370, 16
      %v470 = vor.u32 %v467, %v468
      %v471 = vrot.slane %v467, 4
      %v473 = vshrl.u32 %v371, 16
      %v475 = vrot.slane %v473, 7
      %v476 = vshll.u32 %v371, 16
      %v478 = vor.u32 %v475, %v476
      %v479 = vsel %vm378, %v471, %v478
      %v480 = vrot.slane %v475, 4
      %v482 = vshrl.u32 %v372, 16
      %v484 = vrot.slane %v482, 7
      %v485 = vshll.u32 %v372, 16
      %v487 = vor.u32 %v484, %v485
      %v488 = vrot.slane %v484, 4
      %v490 = vshrl.u32 %v373, 16
      %v492 = vrot.slane %v490, 7
      %v493 = vshll.u32 %v373, 16
      %v495 = vor.u32 %v492, %v493
      %v496 = vsel %vm378, %v488, %v495
      %v497 = vrot.slane %v492, 4
      %v499 = vshrl.u32 %v374, 16
      %v501 = vrot.slane %v499, 7
      %v502 = vshll.u32 %v374, 16
      %v504 = vor.u32 %v501, %v502
      %v505 = vrot.slane %v501, 4
      %v507 = vshrl.u32 %v375, 16
      %v509 = vrot.slane %v507, 7
      %v510 = vshll.u32 %v375, 16
      %v512 = vor.u32 %v509, %v510
      %v513 = vsel %vm378, %v505, %v512
      %v514 = vrot.slane %v509, 4
      %s539 = scalar_lea.vmem [#allocation2], 12
      %vm540 = vcmask 60416
      %vm541 = vsmask.f32 7938
      %vm542 = vmand %vm540, %vm541
      %v543 = vld [vmem:[%s539] sm:$0xf]
      %v544 = vsel %vm542, %v385, %v543
      %545 = vst [vmem:[%s539] sm:$0xf] %v544
      %546 = vst.msk [vmem:[%s539 + $0x4] sm:$0xf] %vm325, %v394
      %vm547 = vcmask 57344
      %vm548 = vmand %vm547, %vm376
      %v549 = vld [vmem:[%s539 + $0x8] sm:$0x1]
      %v550 = vsel %vm548, %v395, %v549
      %551 = vst [vmem:[%s539 + $0x8] sm:$0x1] %v550
      %v552 = vld [vmem:[%s539 + $0xc] sm:$0xf]
      %v553 = vsel %vm542, %v402, %v552
      %554 = vst [vmem:[%s539 + $0xc] sm:$0xf] %v553
      %555 = vst.msk [vmem:[%s539 + $0x10] sm:$0xf] %vm325, %v411
      %v556 = vld [vmem:[%s539 + $0x14] sm:$0x1]
      %v557 = vsel %vm548, %v412, %v556
      %558 = vst [vmem:[%s539 + $0x14] sm:$0x1] %v557
      %v559 = vld [vmem:[%s539 + $0x18] sm:$0xf]
      %v560 = vsel %vm542, %v419, %v559
      %561 = vst [vmem:[%s539 + $0x18] sm:$0xf] %v560
      %562 = vst.msk [vmem:[%s539 + $0x1c] sm:$0xf] %vm325, %v428
      %v563 = vld [vmem:[%s539 + $0x20] sm:$0x1]
      %v564 = vsel %vm548, %v429, %v563
      %565 = vst [vmem:[%s539 + $0x20] sm:$0x1] %v564
      %v566 = vld [vmem:[%s539 + $0x24] sm:$0xf]
      %v567 = vsel %vm542, %v436, %v566
      %568 = vst [vmem:[%s539 + $0x24] sm:$0xf] %v567
      %569 = vst.msk [vmem:[%s539 + $0x28] sm:$0xf] %vm325, %v445
      %v570 = vld [vmem:[%s539 + $0x2c] sm:$0x1]
      %v571 = vsel %vm548, %v446, %v570
      %572 = vst [vmem:[%s539 + $0x2c] sm:$0x1] %v571
      %v573 = vld [vmem:[%s539 + $0x30] sm:$0xf]
      %v574 = vsel %vm542, %v453, %v573
      %575 = vst [vmem:[%s539 + $0x30] sm:$0xf] %v574
      %576 = vst.msk [vmem:[%s539 + $0x34] sm:$0xf] %vm325, %v462
      %v577 = vld [vmem:[%s539 + $0x38] sm:$0x1]
      %v578 = vsel %vm548, %v463, %v577
      %579 = vst [vmem:[%s539 + $0x38] sm:$0x1] %v578
      %v580 = vld [vmem:[%s539 + $0x3c] sm:$0xf]
      %v581 = vsel %vm542, %v470, %v580
      %582 = vst [vmem:[%s539 + $0x3c] sm:$0xf] %v581
      %583 = vst.msk [vmem:[%s539 + $0x40] sm:$0xf] %vm325, %v479
      %v584 = vld [vmem:[%s539 + $0x44] sm:$0x1]
      %v585 = vsel %vm548, %v480, %v584
      %586 = vst [vmem:[%s539 + $0x44] sm:$0x1] %v585
      %v587 = vld [vmem:[%s539 + $0x48] sm:$0xf]
      %v588 = vsel %vm542, %v487, %v587
      %589 = vst [vmem:[%s539 + $0x48] sm:$0xf] %v588
      %590 = vst.msk [vmem:[%s539 + $0x4c] sm:$0xf] %vm325, %v496
      %v591 = vld [vmem:[%s539 + $0x50] sm:$0x1]
      %v592 = vsel %vm548, %v497, %v591
      %593 = vst [vmem:[%s539 + $0x50] sm:$0x1] %v592
      %v594 = vld [vmem:[%s539 + $0x54] sm:$0xf]
      %v595 = vsel %vm542, %v504, %v594
      %596 = vst [vmem:[%s539 + $0x54] sm:$0xf] %v595
      %597 = vst.msk [vmem:[%s539 + $0x58] sm:$0xf] %vm325, %v513
      %v598 = vld [vmem:[%s539 + $0x5c] sm:$0x1]
      %v599 = vsel %vm548, %v514, %v598
      %600 = vst [vmem:[%s539 + $0x5c] sm:$0x1] %v599
      %p601 = scmp.gt.s32.totalorder %s23, 0
      // Predicated region
      $region37: #{res_batchnorm_block.3} parent=35 // pred_check
        %p602 = pneg %p601
      $region38: #{res_batchnorm_block.3} parent=35 // pred_check_branch
        %604 = sbr.rel (%p602) target = $region40
      $region39: #{res_batchnorm_block.3} parent=35 // pred_region
        %s605 = ssub.s32 %s324, 1
        %p606 = scmp.gt.s32.totalorder %s605, 0
        %s607 = scalar_select %p606, %s605, 0
        %s608 = smul.u32 %s607, 2
        %s609 = smul.addr %s608, 4
        %s610 = scalar_lea.vmem %s292, %s609
        %v611 = vld [vmem:[%s610] sm:$0xf]
        %v612 = vld [vmem:[%s610 + $0x4] sm:$0xf]
        %v614 = vshrl.u32 %v611, 16
        %v616 = vrot.slane %v614, 7
        %v617 = vshll.u32 %v611, 16
        %v619 = vor.u32 %v616, %v617
        %v620 = vrot.slane %v616, 4
        %v622 = vshrl.u32 %v612, 16
        %v624 = vrot.slane %v622, 7
        %v625 = vshll.u32 %v612, 16
        %v627 = vor.u32 %v624, %v625
        %v628 = vsel %vm378, %v620, %v627
        %v629 = vrot.slane %v624, 4
        %v633 = vld [vmem:[#allocation2] sm:$0xf]
        %v634 = vsel %vm542, %v619, %v633
        %635 = vst [vmem:[#allocation2] sm:$0xf] %v634
        %636 = vst.msk [vmem:[#allocation2 + $0x4] sm:$0xf] %vm325, %v628
        %v637 = vld [vmem:[#allocation2 + $0x8] sm:$0x1]
        %v638 = vsel %vm548, %v629, %v637
        %639 = vst [vmem:[#allocation2 + $0x8] sm:$0x1] %v638
      $region40: #{res_batchnorm_block.3} parent=35 // pred_fallthru
        _
      %p640 = scmp.lt.s32.totalorder %s23, 1
      // Predicated region
      $region41: #{res_batchnorm_block.3} parent=35 // pred_check
        %p641 = pneg %p640
      $region42: #{res_batchnorm_block.3} parent=35 // pred_check_branch
        %643 = sbr.rel (%p641) target = $region44
      $region43: #{res_batchnorm_block.3} parent=35 // pred_region
        %s644 = sadd.s32 %s324, 8
        %p645 = scmp.lt.s32.totalorder %s644, 15
        %s646 = scalar_select %p645, %s644, 15
        %s647 = smul.u32 %s646, 2
        %s648 = smul.addr %s647, 4
        %s649 = scalar_lea.vmem %s292, %s648
        %v650 = vld [vmem:[%s649] sm:$0xf]
        %v651 = vld [vmem:[%s649 + $0x4] sm:$0xf]
        %v653 = vshrl.u32 %v650, 16
        %v655 = vrot.slane %v653, 7
        %v656 = vshll.u32 %v650, 16
        %v658 = vor.u32 %v655, %v656
        %v659 = vrot.slane %v655, 4
        %v661 = vshrl.u32 %v651, 16
        %v663 = vrot.slane %v661, 7
        %v664 = vshll.u32 %v651, 16
        %v666 = vor.u32 %v663, %v664
        %v667 = vsel %vm378, %v659, %v666
        %v668 = vrot.slane %v663, 4
        %s672 = scalar_lea.vmem [#allocation2], 108
        %v673 = vld [vmem:[%s672] sm:$0xf]
        %v674 = vsel %vm542, %v658, %v673
        %675 = vst [vmem:[%s672] sm:$0xf] %v674
        %676 = vst.msk [vmem:[%s672 + $0x4] sm:$0xf] %vm325, %v667
        %v677 = vld [vmem:[%s672 + $0x8] sm:$0x1]
        %v678 = vsel %vm548, %v668, %v677
        %679 = vst [vmem:[%s672 + $0x8] sm:$0x1] %v678
      $region44: #{res_batchnorm_block.3} parent=35 // pred_fallthru
        _
      %v680 = vld [vmem:[#allocation2] sm:$0xf]
      %v681 = vld [vmem:[#allocation2 + $0x4] sm:$0xf]
      %v682 = vld [vmem:[#allocation2 + $0xc] sm:$0xf]
      %v683 = vld [vmem:[#allocation2 + $0x10] sm:$0xf]
      %v684 = vld [vmem:[#allocation2 + $0x18] sm:$0xf]
      %v685 = vld [vmem:[#allocation2 + $0x1c] sm:$0xf]
      %v686 = vld [vmem:[#allocation2 + $0x24] sm:$0xf]
      %v687 = vld [vmem:[#allocation2 + $0x28] sm:$0xf]
      %v688 = vld [vmem:[#allocation2 + $0x30] sm:$0xf]
      %v689 = vld [vmem:[#allocation2 + $0x34] sm:$0xf]
      %v690 = vld [vmem:[#allocation2 + $0x3c] sm:$0xf]
      %v691 = vld [vmem:[#allocation2 + $0x40] sm:$0xf]
      %v692 = vld [vmem:[#allocation2 + $0x48] sm:$0xf]
      %v693 = vld [vmem:[#allocation2 + $0x4c] sm:$0xf]
      %v694 = vld [vmem:[#allocation2 + $0x54] sm:$0xf]
      %v695 = vld [vmem:[#allocation2 + $0x58] sm:$0xf]
      %v696 = vld [vmem:[#allocation2 + $0x8] sm:$0x1]
      %v697 = vld [vmem:[#allocation2 + $0x14] sm:$0x1]
      %v698 = vld [vmem:[#allocation2 + $0x20] sm:$0x1]
      %v699 = vld [vmem:[#allocation2 + $0x2c] sm:$0x1]
      %v700 = vld [vmem:[#allocation2 + $0x38] sm:$0x1]
      %v701 = vld [vmem:[#allocation2 + $0x44] sm:$0x1]
      %v702 = vld [vmem:[#allocation2 + $0x50] sm:$0x1]
      %v703 = vld [vmem:[#allocation2 + $0x5c] sm:$0x1]
      %vm704 = vsmask.f32 3328
      %vm705 = vsmask.f32 7440
      %vm706 = vmor %vm704, %vm705
      %v708 = vshrl.u32 %v680, 16
      %v710 = vrot.slane %v708, 4
      %v711 = vshll.u32 %v680, 16
      %v713 = vrot.slane %v711, 5
      %v714 = vor.u32 %v710, %v713
      %v715 = vrot.slane %v714, 4
      %v717 = vshll.u32 %v681, 16
      %v719 = vrot.slane %v717, 5
      %v720 = vsel %vm706, %v715, %v719
      %v721 = vshrl.u32 %v681, 16
      %v723 = vrot.slane %v721, 4
      %v724 = vor.u32 %v723, %v719
      %v725 = vrot.slane %v724, 4
      %v727 = vshll.u32 %v696, 16
      %v729 = vrot.slane %v727, 5
      %v730 = vsel %vm706, %v725, %v729
      %v732 = vshrl.u32 %v682, 16
      %v734 = vrot.slane %v732, 4
      %v735 = vshll.u32 %v682, 16
      %v737 = vrot.slane %v735, 5
      %v738 = vor.u32 %v734, %v737
      %v739 = vrot.slane %v738, 4
      %v741 = vshll.u32 %v683, 16
      %v743 = vrot.slane %v741, 5
      %v744 = vsel %vm706, %v739, %v743
      %v745 = vshrl.u32 %v683, 16
      %v747 = vrot.slane %v745, 4
      %v748 = vor.u32 %v747, %v743
      %v749 = vrot.slane %v748, 4
      %v751 = vshll.u32 %v697, 16
      %v753 = vrot.slane %v751, 5
      %v754 = vsel %vm706, %v749, %v753
      %v756 = vshrl.u32 %v684, 16
      %v758 = vrot.slane %v756, 4
      %v759 = vshll.u32 %v684, 16
      %v761 = vrot.slane %v759, 5
      %v762 = vor.u32 %v758, %v761
      %v763 = vrot.slane %v762, 4
      %v765 = vshll.u32 %v685, 16
      %v767 = vrot.slane %v765, 5
      %v768 = vsel %vm706, %v763, %v767
      %v769 = vshrl.u32 %v685, 16
      %v771 = vrot.slane %v769, 4
      %v772 = vor.u32 %v771, %v767
      %v773 = vrot.slane %v772, 4
      %v775 = vshll.u32 %v698, 16
      %v777 = vrot.slane %v775, 5
      %v778 = vsel %vm706, %v773, %v777
      %v780 = vshrl.u32 %v686, 16
      %v782 = vrot.slane %v780, 4
      %v783 = vshll.u32 %v686, 16
      %v785 = vrot.slane %v783, 5
      %v786 = vor.u32 %v782, %v785
      %v787 = vrot.slane %v786, 4
      %v789 = vshll.u32 %v687, 16
      %v791 = vrot.slane %v789, 5
      %v792 = vsel %vm706, %v787, %v791
      %v793 = vshrl.u32 %v687, 16
      %v795 = vrot.slane %v793, 4
      %v796 = vor.u32 %v795, %v791
      %v797 = vrot.slane %v796, 4
      %v799 = vshll.u32 %v699, 16
      %v801 = vrot.slane %v799, 5
      %v802 = vsel %vm706, %v797, %v801
      %v804 = vshrl.u32 %v688, 16
      %v806 = vrot.slane %v804, 4
      %v807 = vshll.u32 %v688, 16
      %v809 = vrot.slane %v807, 5
      %v810 = vor.u32 %v806, %v809
      %v811 = vrot.slane %v810, 4
      %v813 = vshll.u32 %v689, 16
      %v815 = vrot.slane %v813, 5
      %v816 = vsel %vm706, %v811, %v815
      %v817 = vshrl.u32 %v689, 16
      %v819 = vrot.slane %v817, 4
      %v820 = vor.u32 %v819, %v815
      %v821 = vrot.slane %v820, 4
      %v823 = vshll.u32 %v700, 16
      %v825 = vrot.slane %v823, 5
      %v826 = vsel %vm706, %v821, %v825
      %v828 = vshrl.u32 %v690, 16
      %v830 = vrot.slane %v828, 4
      %v831 = vshll.u32 %v690, 16
      %v833 = vrot.slane %v831, 5
      %v834 = vor.u32 %v830, %v833
      %v835 = vrot.slane %v834, 4
      %v837 = vshll.u32 %v691, 16
      %v839 = vrot.slane %v837, 5
      %v840 = vsel %vm706, %v835, %v839
      %v841 = vshrl.u32 %v691, 16
      %v843 = vrot.slane %v841, 4
      %v844 = vor.u32 %v843, %v839
      %v845 = vrot.slane %v844, 4
      %v847 = vshll.u32 %v701, 16
      %v849 = vrot.slane %v847, 5
      %v850 = vsel %vm706, %v845, %v849
      %v852 = vshrl.u32 %v692, 16
      %v854 = vrot.slane %v852, 4
      %v855 = vshll.u32 %v692, 16
      %v857 = vrot.slane %v855, 5
      %v858 = vor.u32 %v854, %v857
      %v859 = vrot.slane %v858, 4
      %v861 = vshll.u32 %v693, 16
      %v863 = vrot.slane %v861, 5
      %v864 = vsel %vm706, %v859, %v863
      %v865 = vshrl.u32 %v693, 16
      %v867 = vrot.slane %v865, 4
      %v868 = vor.u32 %v867, %v863
      %v869 = vrot.slane %v868, 4
      %v871 = vshll.u32 %v702, 16
      %v873 = vrot.slane %v871, 5
      %v874 = vsel %vm706, %v869, %v873
      %v876 = vshrl.u32 %v694, 16
      %v878 = vrot.slane %v876, 4
      %v879 = vshll.u32 %v694, 16
      %v881 = vrot.slane %v879, 5
      %v882 = vor.u32 %v878, %v881
      %v883 = vrot.slane %v882, 4
      %v885 = vshll.u32 %v695, 16
      %v887 = vrot.slane %v885, 5
      %v888 = vsel %vm706, %v883, %v887
      %v889 = vshrl.u32 %v695, 16
      %v891 = vrot.slane %v889, 4
      %v892 = vor.u32 %v891, %v887
      %v893 = vrot.slane %v892, 4
      %v895 = vshll.u32 %v703, 16
      %v897 = vrot.slane %v895, 5
      %v898 = vsel %vm706, %v893, %v897
      %v899 = vld [vmem:[#allocation2] sm:$0xe]
      %v900 = vld [vmem:[#allocation2 + $0xc] sm:$0xe]
      %v901 = vld [vmem:[#allocation2 + $0x18] sm:$0xe]
      %v902 = vld [vmem:[#allocation2 + $0x24] sm:$0xe]
      %v903 = vld [vmem:[#allocation2 + $0x30] sm:$0xe]
      %v904 = vld [vmem:[#allocation2 + $0x3c] sm:$0xe]
      %v905 = vld [vmem:[#allocation2 + $0x48] sm:$0xe]
      %v906 = vld [vmem:[#allocation2 + $0x54] sm:$0xe]
      %vm931 = vcmask 1042432
      %vm932 = vcmask 1046532
      %vm933 = vmor %vm931, %vm932
      %v934 = vrot.slane %v899, 5
      %v935 = vrot.slane %v934, 4
      %v936 = vrot.slane %v681, 5
      %v937 = vsel %vm933, %v935, %v936
      %v938 = vrot.slane %v936, 4
      %v939 = vrot.slane %v696, 5
      %v940 = vsel %vm933, %v938, %v939
      %v941 = vrot.slane %v900, 5
      %v942 = vrot.slane %v941, 4
      %v943 = vrot.slane %v683, 5
      %v944 = vsel %vm933, %v942, %v943
      %v945 = vrot.slane %v943, 4
      %v946 = vrot.slane %v697, 5
      %v947 = vsel %vm933, %v945, %v946
      %v948 = vrot.slane %v901, 5
      %v949 = vrot.slane %v948, 4
      %v950 = vrot.slane %v685, 5
      %v951 = vsel %vm933, %v949, %v950
      %v952 = vrot.slane %v950, 4
      %v953 = vrot.slane %v698, 5
      %v954 = vsel %vm933, %v952, %v953
      %v955 = vrot.slane %v902, 5
      %v956 = vrot.slane %v955, 4
      %v957 = vrot.slane %v687, 5
      %v958 = vsel %vm933, %v956, %v957
      %v959 = vrot.slane %v957, 4
      %v960 = vrot.slane %v699, 5
      %v961 = vsel %vm933, %v959, %v960
      %v962 = vrot.slane %v903, 5
      %v963 = vrot.slane %v962, 4
      %v964 = vrot.slane %v689, 5
      %v965 = vsel %vm933, %v963, %v964
      %v966 = vrot.slane %v964, 4
      %v967 = vrot.slane %v700, 5
      %v968 = vsel %vm933, %v966, %v967
      %v969 = vrot.slane %v904, 5
      %v970 = vrot.slane %v969, 4
      %v971 = vrot.slane %v691, 5
      %v972 = vsel %vm933, %v970, %v971
      %v973 = vrot.slane %v971, 4
      %v974 = vrot.slane %v701, 5
      %v975 = vsel %vm933, %v973, %v974
      %v976 = vrot.slane %v905, 5
      %v977 = vrot.slane %v976, 4
      %v978 = vrot.slane %v693, 5
      %v979 = vsel %vm933, %v977, %v978
      %v980 = vrot.slane %v978, 4
      %v981 = vrot.slane %v702, 5
      %v982 = vsel %vm933, %v980, %v981
      %v983 = vrot.slane %v906, 5
      %v984 = vrot.slane %v983, 4
      %v985 = vrot.slane %v695, 5
      %v986 = vsel %vm933, %v984, %v985
      %v987 = vrot.slane %v985, 4
      %v988 = vrot.slane %v703, 5
      %v989 = vsel %vm933, %v987, %v988
      %v990 = vld [vmem:[%s539] sm:$0xf]
      %v991 = vld [vmem:[%s539 + $0x4] sm:$0xf]
      %v992 = vld [vmem:[%s539 + $0xc] sm:$0xf]
      %v993 = vld [vmem:[%s539 + $0x10] sm:$0xf]
      %v994 = vld [vmem:[%s539 + $0x18] sm:$0xf]
      %v995 = vld [vmem:[%s539 + $0x1c] sm:$0xf]
      %v996 = vld [vmem:[%s539 + $0x24] sm:$0xf]
      %v997 = vld [vmem:[%s539 + $0x28] sm:$0xf]
      %v998 = vld [vmem:[%s539 + $0x30] sm:$0xf]
      %v999 = vld [vmem:[%s539 + $0x34] sm:$0xf]
      %v1000 = vld [vmem:[%s539 + $0x3c] sm:$0xf]
      %v1001 = vld [vmem:[%s539 + $0x40] sm:$0xf]
      %v1002 = vld [vmem:[%s539 + $0x48] sm:$0xf]
      %v1003 = vld [vmem:[%s539 + $0x4c] sm:$0xf]
      %v1004 = vld [vmem:[%s539 + $0x54] sm:$0xf]
      %v1005 = vld [vmem:[%s539 + $0x58] sm:$0xf]
      %v1006 = vld [vmem:[%s539 + $0x8] sm:$0x1]
      %v1007 = vld [vmem:[%s539 + $0x14] sm:$0x1]
      %v1008 = vld [vmem:[%s539 + $0x20] sm:$0x1]
      %v1009 = vld [vmem:[%s539 + $0x2c] sm:$0x1]
      %v1010 = vld [vmem:[%s539 + $0x38] sm:$0x1]
      %v1011 = vld [vmem:[%s539 + $0x44] sm:$0x1]
      %v1012 = vld [vmem:[%s539 + $0x50] sm:$0x1]
      %v1013 = vld [vmem:[%s539 + $0x5c] sm:$0x1]
      %v1015 = vshrl.u32 %v990, 16
      %v1017 = vrot.slane %v1015, 4
      %v1018 = vshll.u32 %v990, 16
      %v1020 = vrot.slane %v1018, 5
      %v1021 = vor.u32 %v1017, %v1020
      %v1022 = vrot.slane %v1021, 4
      %v1024 = vshll.u32 %v991, 16
      %v1026 = vrot.slane %v1024, 5
      %v1027 = vsel %vm706, %v1022, %v1026
      %v1028 = vshrl.u32 %v991, 16
      %v1030 = vrot.slane %v1028, 4
      %v1031 = vor.u32 %v1030, %v1026
      %v1032 = vrot.slane %v1031, 4
      %v1034 = vshll.u32 %v1006, 16
      %v1036 = vrot.slane %v1034, 5
      %v1037 = vsel %vm706, %v1032, %v1036
      %v1039 = vshrl.u32 %v992, 16
      %v1041 = vrot.slane %v1039, 4
      %v1042 = vshll.u32 %v992, 16
      %v1044 = vrot.slane %v1042, 5
      %v1045 = vor.u32 %v1041, %v1044
      %v1046 = vrot.slane %v1045, 4
      %v1048 = vshll.u32 %v993, 16
      %v1050 = vrot.slane %v1048, 5
      %v1051 = vsel %vm706, %v1046, %v1050
      %v1052 = vshrl.u32 %v993, 16
      %v1054 = vrot.slane %v1052, 4
      %v1055 = vor.u32 %v1054, %v1050
      %v1056 = vrot.slane %v1055, 4
      %v1058 = vshll.u32 %v1007, 16
      %v1060 = vrot.slane %v1058, 5
      %v1061 = vsel %vm706, %v1056, %v1060
      %v1063 = vshrl.u32 %v994, 16
      %v1065 = vrot.slane %v1063, 4
      %v1066 = vshll.u32 %v994, 16
      %v1068 = vrot.slane %v1066, 5
      %v1069 = vor.u32 %v1065, %v1068
      %v1070 = vrot.slane %v1069, 4
      %v1072 = vshll.u32 %v995, 16
      %v1074 = vrot.slane %v1072, 5
      %v1075 = vsel %vm706, %v1070, %v1074
      %v1076 = vshrl.u32 %v995, 16
      %v1078 = vrot.slane %v1076, 4
      %v1079 = vor.u32 %v1078, %v1074
      %v1080 = vrot.slane %v1079, 4
      %v1082 = vshll.u32 %v1008, 16
      %v1084 = vrot.slane %v1082, 5
      %v1085 = vsel %vm706, %v1080, %v1084
      %v1087 = vshrl.u32 %v996, 16
      %v1089 = vrot.slane %v1087, 4
      %v1090 = vshll.u32 %v996, 16
      %v1092 = vrot.slane %v1090, 5
      %v1093 = vor.u32 %v1089, %v1092
      %v1094 = vrot.slane %v1093, 4
      %v1096 = vshll.u32 %v997, 16
      %v1098 = vrot.slane %v1096, 5
      %v1099 = vsel %vm706, %v1094, %v1098
      %v1100 = vshrl.u32 %v997, 16
      %v1102 = vrot.slane %v1100, 4
      %v1103 = vor.u32 %v1102, %v1098
      %v1104 = vrot.slane %v1103, 4
      %v1106 = vshll.u32 %v1009, 16
      %v1108 = vrot.slane %v1106, 5
      %v1109 = vsel %vm706, %v1104, %v1108
      %v1111 = vshrl.u32 %v998, 16
      %v1113 = vrot.slane %v1111, 4
      %v1114 = vshll.u32 %v998, 16
      %v1116 = vrot.slane %v1114, 5
      %v1117 = vor.u32 %v1113, %v1116
      %v1118 = vrot.slane %v1117, 4
      %v1120 = vshll.u32 %v999, 16
      %v1122 = vrot.slane %v1120, 5
      %v1123 = vsel %vm706, %v1118, %v1122
      %v1124 = vshrl.u32 %v999, 16
      %v1126 = vrot.slane %v1124, 4
      %v1127 = vor.u32 %v1126, %v1122
      %v1128 = vrot.slane %v1127, 4
      %v1130 = vshll.u32 %v1010, 16
      %v1132 = vrot.slane %v1130, 5
      %v1133 = vsel %vm706, %v1128, %v1132
      %v1135 = vshrl.u32 %v1000, 16
      %v1137 = vrot.slane %v1135, 4
      %v1138 = vshll.u32 %v1000, 16
      %v1140 = vrot.slane %v1138, 5
      %v1141 = vor.u32 %v1137, %v1140
      %v1142 = vrot.slane %v1141, 4
      %v1144 = vshll.u32 %v1001, 16
      %v1146 = vrot.slane %v1144, 5
      %v1147 = vsel %vm706, %v1142, %v1146
      %v1148 = vshrl.u32 %v1001, 16
      %v1150 = vrot.slane %v1148, 4
      %v1151 = vor.u32 %v1150, %v1146
      %v1152 = vrot.slane %v1151, 4
      %v1154 = vshll.u32 %v1011, 16
      %v1156 = vrot.slane %v1154, 5
      %v1157 = vsel %vm706, %v1152, %v1156
      %v1159 = vshrl.u32 %v1002, 16
      %v1161 = vrot.slane %v1159, 4
      %v1162 = vshll.u32 %v1002, 16
      %v1164 = vrot.slane %v1162, 5
      %v1165 = vor.u32 %v1161, %v1164
      %v1166 = vrot.slane %v1165, 4
      %v1168 = vshll.u32 %v1003, 16
      %v1170 = vrot.slane %v1168, 5
      %v1171 = vsel %vm706, %v1166, %v1170
      %v1172 = vshrl.u32 %v1003, 16
      %v1174 = vrot.slane %v1172, 4
      %v1175 = vor.u32 %v1174, %v1170
      %v1176 = vrot.slane %v1175, 4
      %v1178 = vshll.u32 %v1012, 16
      %v1180 = vrot.slane %v1178, 5
      %v1181 = vsel %vm706, %v1176, %v1180
      %v1183 = vshrl.u32 %v1004, 16
      %v1185 = vrot.slane %v1183, 4
      %v1186 = vshll.u32 %v1004, 16
      %v1188 = vrot.slane %v1186, 5
      %v1189 = vor.u32 %v1185, %v1188
      %v1190 = vrot.slane %v1189, 4
      %v1192 = vshll.u32 %v1005, 16
      %v1194 = vrot.slane %v1192, 5
      %v1195 = vsel %vm706, %v1190, %v1194
      %v1196 = vshrl.u32 %v1005, 16
      %v1198 = vrot.slane %v1196, 4
      %v1199 = vor.u32 %v1198, %v1194
      %v1200 = vrot.slane %v1199, 4
      %v1202 = vshll.u32 %v1013, 16
      %v1204 = vrot.slane %v1202, 5
      %v1205 = vsel %vm706, %v1200, %v1204
      %v1206 = vld [vmem:[%s539] sm:$0xe]
      %v1207 = vld [vmem:[%s539 + $0xc] sm:$0xe]
      %v1208 = vld [vmem:[%s539 + $0x18] sm:$0xe]
      %v1209 = vld [vmem:[%s539 + $0x24] sm:$0xe]
      %v1210 = vld [vmem:[%s539 + $0x30] sm:$0xe]
      %v1211 = vld [vmem:[%s539 + $0x3c] sm:$0xe]
      %v1212 = vld [vmem:[%s539 + $0x48] sm:$0xe]
      %v1213 = vld [vmem:[%s539 + $0x54] sm:$0xe]
      %v1238 = vrot.slane %v1206, 5
      %v1239 = vrot.slane %v1238, 4
      %v1240 = vrot.slane %v991, 5
      %v1241 = vsel %vm933, %v1239, %v1240
      %v1242 = vrot.slane %v1240, 4
      %v1243 = vrot.slane %v1006, 5
      %v1244 = vsel %vm933, %v1242, %v1243
      %v1245 = vrot.slane %v1207, 5
      %v1246 = vrot.slane %v1245, 4
      %v1247 = vrot.slane %v993, 5
      %v1248 = vsel %vm933, %v1246, %v1247
      %v1249 = vrot.slane %v1247, 4
      %v1250 = vrot.slane %v1007, 5
      %v1251 = vsel %vm933, %v1249, %v1250
      %v1252 = vrot.slane %v1208, 5
      %v1253 = vrot.slane %v1252, 4
      %v1254 = vrot.slane %v995, 5
      %v1255 = vsel %vm933, %v1253, %v1254
      %v1256 = vrot.slane %v1254, 4
      %v1257 = vrot.slane %v1008, 5
      %v1258 = vsel %vm933, %v1256, %v1257
      %v1259 = vrot.slane %v1209, 5
      %v1260 = vrot.slane %v1259, 4
      %v1261 = vrot.slane %v997, 5
      %v1262 = vsel %vm933, %v1260, %v1261
      %v1263 = vrot.slane %v1261, 4
      %v1264 = vrot.slane %v1009, 5
      %v1265 = vsel %vm933, %v1263, %v1264
      %v1266 = vrot.slane %v1210, 5
      %v1267 = vrot.slane %v1266, 4
      %v1268 = vrot.slane %v999, 5
      %v1269 = vsel %vm933, %v1267, %v1268
      %v1270 = vrot.slane %v1268, 4
      %v1271 = vrot.slane %v1010, 5
      %v1272 = vsel %vm933, %v1270, %v1271
      %v1273 = vrot.slane %v1211, 5
      %v1274 = vrot.slane %v1273, 4
      %v1275 = vrot.slane %v1001, 5
      %v1276 = vsel %vm933, %v1274, %v1275
      %v1277 = vrot.slane %v1275, 4
      %v1278 = vrot.slane %v1011, 5
      %v1279 = vsel %vm933, %v1277, %v1278
      %v1280 = vrot.slane %v1212, 5
      %v1281 = vrot.slane %v1280, 4
      %v1282 = vrot.slane %v1003, 5
      %v1283 = vsel %vm933, %v1281, %v1282
      %v1284 = vrot.slane %v1282, 4
      %v1285 = vrot.slane %v1012, 5
      %v1286 = vsel %vm933, %v1284, %v1285
      %v1287 = vrot.slane %v1213, 5
      %v1288 = vrot.slane %v1287, 4
      %v1289 = vrot.slane %v1005, 5
      %v1290 = vsel %vm933, %v1288, %v1289
      %v1291 = vrot.slane %v1289, 4
      %v1292 = vrot.slane %v1013, 5
      %v1293 = vsel %vm933, %v1291, %v1292
      %s1294 = scalar_lea.vmem [#allocation2], 24
      %v1295 = vld [vmem:[%s1294] sm:$0xf]
      %v1296 = vld [vmem:[%s1294 + $0x4] sm:$0xf]
      %v1297 = vld [vmem:[%s1294 + $0xc] sm:$0xf]
      %v1298 = vld [vmem:[%s1294 + $0x10] sm:$0xf]
      %v1299 = vld [vmem:[%s1294 + $0x18] sm:$0xf]
      %v1300 = vld [vmem:[%s1294 + $0x1c] sm:$0xf]
      %v1301 = vld [vmem:[%s1294 + $0x24] sm:$0xf]
      %v1302 = vld [vmem:[%s1294 + $0x28] sm:$0xf]
      %v1303 = vld [vmem:[%s1294 + $0x30] sm:$0xf]
      %v1304 = vld [vmem:[%s1294 + $0x34] sm:$0xf]
      %v1305 = vld [vmem:[%s1294 + $0x3c] sm:$0xf]
      %v1306 = vld [vmem:[%s1294 + $0x40] sm:$0xf]
      %v1307 = vld [vmem:[%s1294 + $0x48] sm:$0xf]
      %v1308 = vld [vmem:[%s1294 + $0x4c] sm:$0xf]
      %v1309 = vld [vmem:[%s1294 + $0x54] sm:$0xf]
      %v1310 = vld [vmem:[%s1294 + $0x58] sm:$0xf]
      %v1311 = vld [vmem:[%s1294 + $0x8] sm:$0x1]
      %v1312 = vld [vmem:[%s1294 + $0x14] sm:$0x1]
      %v1313 = vld [vmem:[%s1294 + $0x20] sm:$0x1]
      %v1314 = vld [vmem:[%s1294 + $0x2c] sm:$0x1]
      %v1315 = vld [vmem:[%s1294 + $0x38] sm:$0x1]
      %v1316 = vld [vmem:[%s1294 + $0x44] sm:$0x1]
      %v1317 = vld [vmem:[%s1294 + $0x50] sm:$0x1]
      %v1318 = vld [vmem:[%s1294 + $0x5c] sm:$0x1]
      %v1320 = vshrl.u32 %v1295, 16
      %v1322 = vrot.slane %v1320, 4
      %v1323 = vshll.u32 %v1295, 16
      %v1325 = vrot.slane %v1323, 5
      %v1326 = vor.u32 %v1322, %v1325
      %v1327 = vrot.slane %v1326, 4
      %v1329 = vshll.u32 %v1296, 16
      %v1331 = vrot.slane %v1329, 5
      %v1332 = vsel %vm706, %v1327, %v1331
      %v1333 = vshrl.u32 %v1296, 16
      %v1335 = vrot.slane %v1333, 4
      %v1336 = vor.u32 %v1335, %v1331
      %v1337 = vrot.slane %v1336, 4
      %v1339 = vshll.u32 %v1311, 16
      %v1341 = vrot.slane %v1339, 5
      %v1342 = vsel %vm706, %v1337, %v1341
      %v1344 = vshrl.u32 %v1297, 16
      %v1346 = vrot.slane %v1344, 4
      %v1347 = vshll.u32 %v1297, 16
      %v1349 = vrot.slane %v1347, 5
      %v1350 = vor.u32 %v1346, %v1349
      %v1351 = vrot.slane %v1350, 4
      %v1353 = vshll.u32 %v1298, 16
      %v1355 = vrot.slane %v1353, 5
      %v1356 = vsel %vm706, %v1351, %v1355
      %v1357 = vshrl.u32 %v1298, 16
      %v1359 = vrot.slane %v1357, 4
      %v1360 = vor.u32 %v1359, %v1355
      %v1361 = vrot.slane %v1360, 4
      %v1363 = vshll.u32 %v1312, 16
      %v1365 = vrot.slane %v1363, 5
      %v1366 = vsel %vm706, %v1361, %v1365
      %v1368 = vshrl.u32 %v1299, 16
      %v1370 = vrot.slane %v1368, 4
      %v1371 = vshll.u32 %v1299, 16
      %v1373 = vrot.slane %v1371, 5
      %v1374 = vor.u32 %v1370, %v1373
      %v1375 = vrot.slane %v1374, 4
      %v1377 = vshll.u32 %v1300, 16
      %v1379 = vrot.slane %v1377, 5
      %v1380 = vsel %vm706, %v1375, %v1379
      %v1381 = vshrl.u32 %v1300, 16
      %v1383 = vrot.slane %v1381, 4
      %v1384 = vor.u32 %v1383, %v1379
      %v1385 = vrot.slane %v1384, 4
      %v1387 = vshll.u32 %v1313, 16
      %v1389 = vrot.slane %v1387, 5
      %v1390 = vsel %vm706, %v1385, %v1389
      %v1392 = vshrl.u32 %v1301, 16
      %v1394 = vrot.slane %v1392, 4
      %v1395 = vshll.u32 %v1301, 16
      %v1397 = vrot.slane %v1395, 5
      %v1398 = vor.u32 %v1394, %v1397
      %v1399 = vrot.slane %v1398, 4
      %v1401 = vshll.u32 %v1302, 16
      %v1403 = vrot.slane %v1401, 5
      %v1404 = vsel %vm706, %v1399, %v1403
      %v1405 = vshrl.u32 %v1302, 16
      %v1407 = vrot.slane %v1405, 4
      %v1408 = vor.u32 %v1407, %v1403
      %v1409 = vrot.slane %v1408, 4
      %v1411 = vshll.u32 %v1314, 16
      %v1413 = vrot.slane %v1411, 5
      %v1414 = vsel %vm706, %v1409, %v1413
      %v1416 = vshrl.u32 %v1303, 16
      %v1418 = vrot.slane %v1416, 4
      %v1419 = vshll.u32 %v1303, 16
      %v1421 = vrot.slane %v1419, 5
      %v1422 = vor.u32 %v1418, %v1421
      %v1423 = vrot.slane %v1422, 4
      %v1425 = vshll.u32 %v1304, 16
      %v1427 = vrot.slane %v1425, 5
      %v1428 = vsel %vm706, %v1423, %v1427
      %v1429 = vshrl.u32 %v1304, 16
      %v1431 = vrot.slane %v1429, 4
      %v1432 = vor.u32 %v1431, %v1427
      %v1433 = vrot.slane %v1432, 4
      %v1435 = vshll.u32 %v1315, 16
      %v1437 = vrot.slane %v1435, 5
      %v1438 = vsel %vm706, %v1433, %v1437
      %v1440 = vshrl.u32 %v1305, 16
      %v1442 = vrot.slane %v1440, 4
      %v1443 = vshll.u32 %v1305, 16
      %v1445 = vrot.slane %v1443, 5
      %v1446 = vor.u32 %v1442, %v1445
      %v1447 = vrot.slane %v1446, 4
      %v1449 = vshll.u32 %v1306, 16
      %v1451 = vrot.slane %v1449, 5
      %v1452 = vsel %vm706, %v1447, %v1451
      %v1453 = vshrl.u32 %v1306, 16
      %v1455 = vrot.slane %v1453, 4
      %v1456 = vor.u32 %v1455, %v1451
      %v1457 = vrot.slane %v1456, 4
      %v1459 = vshll.u32 %v1316, 16
      %v1461 = vrot.slane %v1459, 5
      %v1462 = vsel %vm706, %v1457, %v1461
      %v1464 = vshrl.u32 %v1307, 16
      %v1466 = vrot.slane %v1464, 4
      %v1467 = vshll.u32 %v1307, 16
      %v1469 = vrot.slane %v1467, 5
      %v1470 = vor.u32 %v1466, %v1469
      %v1471 = vrot.slane %v1470, 4
      %v1473 = vshll.u32 %v1308, 16
      %v1475 = vrot.slane %v1473, 5
      %v1476 = vsel %vm706, %v1471, %v1475
      %v1477 = vshrl.u32 %v1308, 16
      %v1479 = vrot.slane %v1477, 4
      %v1480 = vor.u32 %v1479, %v1475
      %v1481 = vrot.slane %v1480, 4
      %v1483 = vshll.u32 %v1317, 16
      %v1485 = vrot.slane %v1483, 5
      %v1486 = vsel %vm706, %v1481, %v1485
      %v1488 = vshrl.u32 %v1309, 16
      %v1490 = vrot.slane %v1488, 4
      %v1491 = vshll.u32 %v1309, 16
      %v1493 = vrot.slane %v1491, 5
      %v1494 = vor.u32 %v1490, %v1493
      %v1495 = vrot.slane %v1494, 4
      %v1497 = vshll.u32 %v1310, 16
      %v1499 = vrot.slane %v1497, 5
      %v1500 = vsel %vm706, %v1495, %v1499
      %v1501 = vshrl.u32 %v1310, 16
      %v1503 = vrot.slane %v1501, 4
      %v1504 = vor.u32 %v1503, %v1499
      %v1505 = vrot.slane %v1504, 4
      %v1507 = vshll.u32 %v1318, 16
      %v1509 = vrot.slane %v1507, 5
      %v1510 = vsel %vm706, %v1505, %v1509
      %v1511 = vld [vmem:[%s1294] sm:$0xe]
      %v1512 = vld [vmem:[%s1294 + $0xc] sm:$0xe]
      %v1513 = vld [vmem:[%s1294 + $0x18] sm:$0xe]
      %v1514 = vld [vmem:[%s1294 + $0x24] sm:$0xe]
      %v1515 = vld [vmem:[%s1294 + $0x30] sm:$0xe]
      %v1516 = vld [vmem:[%s1294 + $0x3c] sm:$0xe]
      %v1517 = vld [vmem:[%s1294 + $0x48] sm:$0xe]
      %v1518 = vld [vmem:[%s1294 + $0x54] sm:$0xe]
      %v1543 = vrot.slane %v1511, 5
      %v1544 = vrot.slane %v1543, 4
      %v1545 = vrot.slane %v1296, 5
      %v1546 = vsel %vm933, %v1544, %v1545
      %v1547 = vrot.slane %v1545, 4
      %v1548 = vrot.slane %v1311, 5
      %v1549 = vsel %vm933, %v1547, %v1548
      %v1550 = vrot.slane %v1512, 5
      %v1551 = vrot.slane %v1550, 4
      %v1552 = vrot.slane %v1298, 5
      %v1553 = vsel %vm933, %v1551, %v1552
      %v1554 = vrot.slane %v1552, 4
      %v1555 = vrot.slane %v1312, 5
      %v1556 = vsel %vm933, %v1554, %v1555
      %v1557 = vrot.slane %v1513, 5
      %v1558 = vrot.slane %v1557, 4
      %v1559 = vrot.slane %v1300, 5
      %v1560 = vsel %vm933, %v1558, %v1559
      %v1561 = vrot.slane %v1559, 4
      %v1562 = vrot.slane %v1313, 5
      %v1563 = vsel %vm933, %v1561, %v1562
      %v1564 = vrot.slane %v1514, 5
      %v1565 = vrot.slane %v1564, 4
      %v1566 = vrot.slane %v1302, 5
      %v1567 = vsel %vm933, %v1565, %v1566
      %v1568 = vrot.slane %v1566, 4
      %v1569 = vrot.slane %v1314, 5
      %v1570 = vsel %vm933, %v1568, %v1569
      %v1571 = vrot.slane %v1515, 5
      %v1572 = vrot.slane %v1571, 4
      %v1573 = vrot.slane %v1304, 5
      %v1574 = vsel %vm933, %v1572, %v1573
      %v1575 = vrot.slane %v1573, 4
      %v1576 = vrot.slane %v1315, 5
      %v1577 = vsel %vm933, %v1575, %v1576
      %v1578 = vrot.slane %v1516, 5
      %v1579 = vrot.slane %v1578, 4
      %v1580 = vrot.slane %v1306, 5
      %v1581 = vsel %vm933, %v1579, %v1580
      %v1582 = vrot.slane %v1580, 4
      %v1583 = vrot.slane %v1316, 5
      %v1584 = vsel %vm933, %v1582, %v1583
      %v1585 = vrot.slane %v1517, 5
      %v1586 = vrot.slane %v1585, 4
      %v1587 = vrot.slane %v1308, 5
      %v1588 = vsel %vm933, %v1586, %v1587
      %v1589 = vrot.slane %v1587, 4
      %v1590 = vrot.slane %v1317, 5
      %v1591 = vsel %vm933, %v1589, %v1590
      %v1592 = vrot.slane %v1518, 5
      %v1593 = vrot.slane %v1592, 4
      %v1594 = vrot.slane %v1310, 5
      %v1595 = vsel %vm933, %v1593, %v1594
      %v1596 = vrot.slane %v1594, 4
      %v1597 = vrot.slane %v1318, 5
      %v1598 = vsel %vm933, %v1596, %v1597
      %v1607 = vunpack.c.l.b16 %v680
      %v1608 = vunpack.c.l.b16 %v681
      %v1609 = vunpack.c.l.b16 %v682
      %v1610 = vunpack.c.l.b16 %v683
      %v1611 = vunpack.c.l.b16 %v684
      %v1612 = vunpack.c.l.b16 %v685
      %v1613 = vunpack.c.l.b16 %v686
      %v1614 = vunpack.c.l.b16 %v687
      %v1615 = vunpack.c.l.b16 %v688
      %v1616 = vunpack.c.l.b16 %v689
      %v1617 = vunpack.c.l.b16 %v690
      %v1618 = vunpack.c.l.b16 %v691
      %v1619 = vunpack.c.l.b16 %v692
      %v1620 = vunpack.c.l.b16 %v693
      %v1621 = vunpack.c.l.b16 %v694
      %v1622 = vunpack.c.l.b16 %v695
      %v1623 = vpack.c.b16 %v1608, %v1607
      %v1624 = vpack.c.b16 %v1610, %v1609
      %v1625 = vpack.c.b16 %v1612, %v1611
      %v1626 = vpack.c.b16 %v1614, %v1613
      %v1627 = vpack.c.b16 %v1616, %v1615
      %v1628 = vpack.c.b16 %v1618, %v1617
      %v1629 = vpack.c.b16 %v1620, %v1619
      %v1630 = vpack.c.b16 %v1622, %v1621
      %v1631 = vunpack.c.l.b16 %v720
      %v1632 = vunpack.c.l.b16 %v730
      %v1633 = vunpack.c.l.b16 %v744
      %v1634 = vunpack.c.l.b16 %v754
      %v1635 = vunpack.c.l.b16 %v768
      %v1636 = vunpack.c.l.b16 %v778
      %v1637 = vunpack.c.l.b16 %v792
      %v1638 = vunpack.c.l.b16 %v802
      %v1639 = vunpack.c.l.b16 %v816
      %v1640 = vunpack.c.l.b16 %v826
      %v1641 = vunpack.c.l.b16 %v840
      %v1642 = vunpack.c.l.b16 %v850
      %v1643 = vunpack.c.l.b16 %v864
      %v1644 = vunpack.c.l.b16 %v874
      %v1645 = vunpack.c.l.b16 %v888
      %v1646 = vunpack.c.l.b16 %v898
      %v1647 = vpack.c.b16 %v1632, %v1631
      %v1648 = vpack.c.b16 %v1634, %v1633
      %v1649 = vpack.c.b16 %v1636, %v1635
      %v1650 = vpack.c.b16 %v1638, %v1637
      %v1651 = vpack.c.b16 %v1640, %v1639
      %v1652 = vpack.c.b16 %v1642, %v1641
      %v1653 = vpack.c.b16 %v1644, %v1643
      %v1654 = vpack.c.b16 %v1646, %v1645
      %1655 = vrot.lane.b32.xlu0 %v1647, 8
      %v1656 = vpop.permute.xlu0 %1655
      %1657 = vrot.lane.b32.xlu0 %v1648, 8
      %v1658 = vpop.permute.xlu0 %1657
      %1659 = vrot.lane.b32.xlu0 %v1649, 8
      %v1660 = vpop.permute.xlu0 %1659
      %1661 = vrot.lane.b32.xlu0 %v1650, 8
      %v1662 = vpop.permute.xlu0 %1661
      %1663 = vrot.lane.b32.xlu0 %v1651, 8
      %v1664 = vpop.permute.xlu0 %1663
      %1665 = vrot.lane.b32.xlu0 %v1652, 8
      %v1666 = vpop.permute.xlu0 %1665
      %1667 = vrot.lane.b32.xlu0 %v1653, 8
      %v1668 = vpop.permute.xlu0 %1667
      %1669 = vrot.lane.b32.xlu0 %v1654, 8
      %v1670 = vpop.permute.xlu0 %1669
      %v1671 = vunpack.c.l.b16 %v937
      %v1672 = vunpack.c.l.b16 %v940
      %v1673 = vunpack.c.l.b16 %v944
      %v1674 = vunpack.c.l.b16 %v947
      %v1675 = vunpack.c.l.b16 %v951
      %v1676 = vunpack.c.l.b16 %v954
      %v1677 = vunpack.c.l.b16 %v958
      %v1678 = vunpack.c.l.b16 %v961
      %v1679 = vunpack.c.l.b16 %v965
      %v1680 = vunpack.c.l.b16 %v968
      %v1681 = vunpack.c.l.b16 %v972
      %v1682 = vunpack.c.l.b16 %v975
      %v1683 = vunpack.c.l.b16 %v979
      %v1684 = vunpack.c.l.b16 %v982
      %v1685 = vunpack.c.l.b16 %v986
      %v1686 = vunpack.c.l.b16 %v989
      %v1687 = vpack.c.b16 %v1672, %v1671
      %v1688 = vpack.c.b16 %v1674, %v1673
      %v1689 = vpack.c.b16 %v1676, %v1675
      %v1690 = vpack.c.b16 %v1678, %v1677
      %v1691 = vpack.c.b16 %v1680, %v1679
      %v1692 = vpack.c.b16 %v1682, %v1681
      %v1693 = vpack.c.b16 %v1684, %v1683
      %v1694 = vpack.c.b16 %v1686, %v1685
      %1695 = vrot.lane.b32.xlu0 %v1687, 16
      %v1696 = vpop.permute.xlu0 %1695
      %1697 = vrot.lane.b32.xlu0 %v1688, 16
      %v1698 = vpop.permute.xlu0 %1697
      %1699 = vrot.lane.b32.xlu0 %v1689, 16
      %v1700 = vpop.permute.xlu0 %1699
      %1701 = vrot.lane.b32.xlu0 %v1690, 16
      %v1702 = vpop.permute.xlu0 %1701
      %1703 = vrot.lane.b32.xlu0 %v1691, 16
      %v1704 = vpop.permute.xlu0 %1703
      %1705 = vrot.lane.b32.xlu0 %v1692, 16
      %v1706 = vpop.permute.xlu0 %1705
      %1707 = vrot.lane.b32.xlu0 %v1693, 16
      %v1708 = vpop.permute.xlu0 %1707
      %1709 = vrot.lane.b32.xlu0 %v1694, 16
      %v1710 = vpop.permute.xlu0 %1709
      %v1719 = vunpack.c.l.b16 %v990
      %v1720 = vunpack.c.l.b16 %v991
      %v1721 = vunpack.c.l.b16 %v992
      %v1722 = vunpack.c.l.b16 %v993
      %v1723 = vunpack.c.l.b16 %v994
      %v1724 = vunpack.c.l.b16 %v995
      %v1725 = vunpack.c.l.b16 %v996
      %v1726 = vunpack.c.l.b16 %v997
      %v1727 = vunpack.c.l.b16 %v998
      %v1728 = vunpack.c.l.b16 %v999
      %v1729 = vunpack.c.l.b16 %v1000
      %v1730 = vunpack.c.l.b16 %v1001
      %v1731 = vunpack.c.l.b16 %v1002
      %v1732 = vunpack.c.l.b16 %v1003
      %v1733 = vunpack.c.l.b16 %v1004
      %v1734 = vunpack.c.l.b16 %v1005
      %v1735 = vpack.c.b16 %v1720, %v1719
      %v1736 = vpack.c.b16 %v1722, %v1721
      %v1737 = vpack.c.b16 %v1724, %v1723
      %v1738 = vpack.c.b16 %v1726, %v1725
      %v1739 = vpack.c.b16 %v1728, %v1727
      %v1740 = vpack.c.b16 %v1730, %v1729
      %v1741 = vpack.c.b16 %v1732, %v1731
      %v1742 = vpack.c.b16 %v1734, %v1733
      %1743 = vrot.lane.b32.xlu0 %v1735, 24
      %v1744 = vpop.permute.xlu0 %1743
      %1745 = vrot.lane.b32.xlu0 %v1736, 24
      %v1746 = vpop.permute.xlu0 %1745
      %1747 = vrot.lane.b32.xlu0 %v1737, 24
      %v1748 = vpop.permute.xlu0 %1747
      %1749 = vrot.lane.b32.xlu0 %v1738, 24
      %v1750 = vpop.permute.xlu0 %1749
      %1751 = vrot.lane.b32.xlu0 %v1739, 24
      %v1752 = vpop.permute.xlu0 %1751
      %1753 = vrot.lane.b32.xlu0 %v1740, 24
      %v1754 = vpop.permute.xlu0 %1753
      %1755 = vrot.lane.b32.xlu0 %v1741, 24
      %v1756 = vpop.permute.xlu0 %1755
      %1757 = vrot.lane.b32.xlu0 %v1742, 24
      %v1758 = vpop.permute.xlu0 %1757
      %v1759 = vunpack.c.l.b16 %v1027
      %v1760 = vunpack.c.l.b16 %v1037
      %v1761 = vunpack.c.l.b16 %v1051
      %v1762 = vunpack.c.l.b16 %v1061
      %v1763 = vunpack.c.l.b16 %v1075
      %v1764 = vunpack.c.l.b16 %v1085
      %v1765 = vunpack.c.l.b16 %v1099
      %v1766 = vunpack.c.l.b16 %v1109
      %v1767 = vunpack.c.l.b16 %v1123
      %v1768 = vunpack.c.l.b16 %v1133
      %v1769 = vunpack.c.l.b16 %v1147
      %v1770 = vunpack.c.l.b16 %v1157
      %v1771 = vunpack.c.l.b16 %v1171
      %v1772 = vunpack.c.l.b16 %v1181
      %v1773 = vunpack.c.l.b16 %v1195
      %v1774 = vunpack.c.l.b16 %v1205
      %v1775 = vpack.c.b16 %v1760, %v1759
      %v1776 = vpack.c.b16 %v1762, %v1761
      %v1777 = vpack.c.b16 %v1764, %v1763
      %v1778 = vpack.c.b16 %v1766, %v1765
      %v1779 = vpack.c.b16 %v1768, %v1767
      %v1780 = vpack.c.b16 %v1770, %v1769
      %v1781 = vpack.c.b16 %v1772, %v1771
      %v1782 = vpack.c.b16 %v1774, %v1773
      %1783 = vrot.lane.b32.xlu0 %v1775, 32
      %v1784 = vpop.permute.xlu0 %1783
      %1785 = vrot.lane.b32.xlu0 %v1776, 32
      %v1786 = vpop.permute.xlu0 %1785
      %1787 = vrot.lane.b32.xlu0 %v1777, 32
      %v1788 = vpop.permute.xlu0 %1787
      %1789 = vrot.lane.b32.xlu0 %v1778, 32
      %v1790 = vpop.permute.xlu0 %1789
      %1791 = vrot.lane.b32.xlu0 %v1779, 32
      %v1792 = vpop.permute.xlu0 %1791
      %1793 = vrot.lane.b32.xlu0 %v1780, 32
      %v1794 = vpop.permute.xlu0 %1793
      %1795 = vrot.lane.b32.xlu0 %v1781, 32
      %v1796 = vpop.permute.xlu0 %1795
      %1797 = vrot.lane.b32.xlu0 %v1782, 32
      %v1798 = vpop.permute.xlu0 %1797
      %v1799 = vunpack.c.l.b16 %v1241
      %v1800 = vunpack.c.l.b16 %v1244
      %v1801 = vunpack.c.l.b16 %v1248
      %v1802 = vunpack.c.l.b16 %v1251
      %v1803 = vunpack.c.l.b16 %v1255
      %v1804 = vunpack.c.l.b16 %v1258
      %v1805 = vunpack.c.l.b16 %v1262
      %v1806 = vunpack.c.l.b16 %v1265
      %v1807 = vunpack.c.l.b16 %v1269
      %v1808 = vunpack.c.l.b16 %v1272
      %v1809 = vunpack.c.l.b16 %v1276
      %v1810 = vunpack.c.l.b16 %v1279
      %v1811 = vunpack.c.l.b16 %v1283
      %v1812 = vunpack.c.l.b16 %v1286
      %v1813 = vunpack.c.l.b16 %v1290
      %v1814 = vunpack.c.l.b16 %v1293
      %v1815 = vpack.c.b16 %v1800, %v1799
      %v1816 = vpack.c.b16 %v1802, %v1801
      %v1817 = vpack.c.b16 %v1804, %v1803
      %v1818 = vpack.c.b16 %v1806, %v1805
      %v1819 = vpack.c.b16 %v1808, %v1807
      %v1820 = vpack.c.b16 %v1810, %v1809
      %v1821 = vpack.c.b16 %v1812, %v1811
      %v1822 = vpack.c.b16 %v1814, %v1813
      %1823 = vrot.lane.b32.xlu0 %v1815, 40
      %v1824 = vpop.permute.xlu0 %1823
      %1825 = vrot.lane.b32.xlu0 %v1816, 40
      %v1826 = vpop.permute.xlu0 %1825
      %1827 = vrot.lane.b32.xlu0 %v1817, 40
      %v1828 = vpop.permute.xlu0 %1827
      %1829 = vrot.lane.b32.xlu0 %v1818, 40
      %v1830 = vpop.permute.xlu0 %1829
      %1831 = vrot.lane.b32.xlu0 %v1819, 40
      %v1832 = vpop.permute.xlu0 %1831
      %1833 = vrot.lane.b32.xlu0 %v1820, 40
      %v1834 = vpop.permute.xlu0 %1833
      %1835 = vrot.lane.b32.xlu0 %v1821, 40
      %v1836 = vpop.permute.xlu0 %1835
      %1837 = vrot.lane.b32.xlu0 %v1822, 40
      %v1838 = vpop.permute.xlu0 %1837
      %v1847 = vunpack.c.l.b16 %v1295
      %v1848 = vunpack.c.l.b16 %v1296
      %v1849 = vunpack.c.l.b16 %v1297
      %v1850 = vunpack.c.l.b16 %v1298
      %v1851 = vunpack.c.l.b16 %v1299
      %v1852 = vunpack.c.l.b16 %v1300
      %v1853 = vunpack.c.l.b16 %v1301
      %v1854 = vunpack.c.l.b16 %v1302
      %v1855 = vunpack.c.l.b16 %v1303
      %v1856 = vunpack.c.l.b16 %v1304
      %v1857 = vunpack.c.l.b16 %v1305
      %v1858 = vunpack.c.l.b16 %v1306
      %v1859 = vunpack.c.l.b16 %v1307
      %v1860 = vunpack.c.l.b16 %v1308
      %v1861 = vunpack.c.l.b16 %v1309
      %v1862 = vunpack.c.l.b16 %v1310
      %v1863 = vpack.c.b16 %v1848, %v1847
      %v1864 = vpack.c.b16 %v1850, %v1849
      %v1865 = vpack.c.b16 %v1852, %v1851
      %v1866 = vpack.c.b16 %v1854, %v1853
      %v1867 = vpack.c.b16 %v1856, %v1855
      %v1868 = vpack.c.b16 %v1858, %v1857
      %v1869 = vpack.c.b16 %v1860, %v1859
      %v1870 = vpack.c.b16 %v1862, %v1861
      %1871 = vrot.lane.b32.xlu0 %v1863, 48
      %v1872 = vpop.permute.xlu0 %1871
      %1873 = vrot.lane.b32.xlu0 %v1864, 48
      %v1874 = vpop.permute.xlu0 %1873
      %1875 = vrot.lane.b32.xlu0 %v1865, 48
      %v1876 = vpop.permute.xlu0 %1875
      %1877 = vrot.lane.b32.xlu0 %v1866, 48
      %v1878 = vpop.permute.xlu0 %1877
      %1879 = vrot.lane.b32.xlu0 %v1867, 48
      %v1880 = vpop.permute.xlu0 %1879
      %1881 = vrot.lane.b32.xlu0 %v1868, 48
      %v1882 = vpop.permute.xlu0 %1881
      %1883 = vrot.lane.b32.xlu0 %v1869, 48
      %v1884 = vpop.permute.xlu0 %1883
      %1885 = vrot.lane.b32.xlu0 %v1870, 48
      %v1886 = vpop.permute.xlu0 %1885
      %v1887 = vunpack.c.l.b16 %v1332
      %v1888 = vunpack.c.l.b16 %v1342
      %v1889 = vunpack.c.l.b16 %v1356
      %v1890 = vunpack.c.l.b16 %v1366
      %v1891 = vunpack.c.l.b16 %v1380
      %v1892 = vunpack.c.l.b16 %v1390
      %v1893 = vunpack.c.l.b16 %v1404
      %v1894 = vunpack.c.l.b16 %v1414
      %v1895 = vunpack.c.l.b16 %v1428
      %v1896 = vunpack.c.l.b16 %v1438
      %v1897 = vunpack.c.l.b16 %v1452
      %v1898 = vunpack.c.l.b16 %v1462
      %v1899 = vunpack.c.l.b16 %v1476
      %v1900 = vunpack.c.l.b16 %v1486
      %v1901 = vunpack.c.l.b16 %v1500
      %v1902 = vunpack.c.l.b16 %v1510
      %v1903 = vpack.c.b16 %v1888, %v1887
      %v1904 = vpack.c.b16 %v1890, %v1889
      %v1905 = vpack.c.b16 %v1892, %v1891
      %v1906 = vpack.c.b16 %v1894, %v1893
      %v1907 = vpack.c.b16 %v1896, %v1895
      %v1908 = vpack.c.b16 %v1898, %v1897
      %v1909 = vpack.c.b16 %v1900, %v1899
      %v1910 = vpack.c.b16 %v1902, %v1901
      %1911 = vrot.lane.b32.xlu0 %v1903, 56
      %v1912 = vpop.permute.xlu0 %1911
      %1913 = vrot.lane.b32.xlu0 %v1904, 56
      %v1914 = vpop.permute.xlu0 %1913
      %1915 = vrot.lane.b32.xlu0 %v1905, 56
      %v1916 = vpop.permute.xlu0 %1915
      %1917 = vrot.lane.b32.xlu0 %v1906, 56
      %v1918 = vpop.permute.xlu0 %1917
      %1919 = vrot.lane.b32.xlu0 %v1907, 56
      %v1920 = vpop.permute.xlu0 %1919
      %1921 = vrot.lane.b32.xlu0 %v1908, 56
      %v1922 = vpop.permute.xlu0 %1921
      %1923 = vrot.lane.b32.xlu0 %v1909, 56
      %v1924 = vpop.permute.xlu0 %1923
      %1925 = vrot.lane.b32.xlu0 %v1910, 56
      %v1926 = vpop.permute.xlu0 %1925
      %v1927 = vunpack.c.l.b16 %v1546
      %v1928 = vunpack.c.l.b16 %v1549
      %v1929 = vunpack.c.l.b16 %v1553
      %v1930 = vunpack.c.l.b16 %v1556
      %v1931 = vunpack.c.l.b16 %v1560
      %v1932 = vunpack.c.l.b16 %v1563
      %v1933 = vunpack.c.l.b16 %v1567
      %v1934 = vunpack.c.l.b16 %v1570
      %v1935 = vunpack.c.l.b16 %v1574
      %v1936 = vunpack.c.l.b16 %v1577
      %v1937 = vunpack.c.l.b16 %v1581
      %v1938 = vunpack.c.l.b16 %v1584
      %v1939 = vunpack.c.l.b16 %v1588
      %v1940 = vunpack.c.l.b16 %v1591
      %v1941 = vunpack.c.l.b16 %v1595
      %v1942 = vunpack.c.l.b16 %v1598
      %v1943 = vpack.c.b16 %v1928, %v1927
      %v1944 = vpack.c.b16 %v1930, %v1929
      %v1945 = vpack.c.b16 %v1932, %v1931
      %v1946 = vpack.c.b16 %v1934, %v1933
      %v1947 = vpack.c.b16 %v1936, %v1935
      %v1948 = vpack.c.b16 %v1938, %v1937
      %v1949 = vpack.c.b16 %v1940, %v1939
      %v1950 = vpack.c.b16 %v1942, %v1941
      %1951 = vrot.lane.b32.xlu0 %v1943, 64
      %v1952 = vpop.permute.xlu0 %1951
      %1953 = vrot.lane.b32.xlu0 %v1944, 64
      %v1954 = vpop.permute.xlu0 %1953
      %1955 = vrot.lane.b32.xlu0 %v1945, 64
      %v1956 = vpop.permute.xlu0 %1955
      %1957 = vrot.lane.b32.xlu0 %v1946, 64
      %v1958 = vpop.permute.xlu0 %1957
      %1959 = vrot.lane.b32.xlu0 %v1947, 64
      %v1960 = vpop.permute.xlu0 %1959
      %1961 = vrot.lane.b32.xlu0 %v1948, 64
      %v1962 = vpop.permute.xlu0 %1961
      %1963 = vrot.lane.b32.xlu0 %v1949, 64
      %v1964 = vpop.permute.xlu0 %1963
      %1965 = vrot.lane.b32.xlu0 %v1950, 64
      %v1966 = vpop.permute.xlu0 %1965
      %vm1967 = vcmask 64512
      %v1970 = vsel %vm1967, %v1623, %v1656
      %v1973 = vsel %vm1967, %v1624, %v1658
      %v1976 = vsel %vm1967, %v1625, %v1660
      %v1979 = vsel %vm1967, %v1626, %v1662
      %v1982 = vsel %vm1967, %v1627, %v1664
      %v1985 = vsel %vm1967, %v1628, %v1666
      %v1988 = vsel %vm1967, %v1629, %v1668
      %v1991 = vsel %vm1967, %v1630, %v1670
      %vm1992 = vcmask 130048
      %v1994 = vsel %vm1992, %v1970, %v1696
      %v1996 = vsel %vm1992, %v1973, %v1698
      %v1998 = vsel %vm1992, %v1976, %v1700
      %v2000 = vsel %vm1992, %v1979, %v1702
      %v2002 = vsel %vm1992, %v1982, %v1704
      %v2004 = vsel %vm1992, %v1985, %v1706
      %v2006 = vsel %vm1992, %v1988, %v1708
      %v2008 = vsel %vm1992, %v1991, %v1710
      %vm2009 = vcmask 195584
      %v2011 = vsel %vm2009, %v1994, %v1744
      %v2013 = vsel %vm2009, %v1996, %v1746
      %v2015 = vsel %vm2009, %v1998, %v1748
      %v2017 = vsel %vm2009, %v2000, %v1750
      %v2019 = vsel %vm2009, %v2002, %v1752
      %v2021 = vsel %vm2009, %v2004, %v1754
      %v2023 = vsel %vm2009, %v2006, %v1756
      %v2025 = vsel %vm2009, %v2008, %v1758
      %vm2026 = vcmask 261120
      %v2028 = vsel %vm2026, %v2011, %v1784
      %v2030 = vsel %vm2026, %v2013, %v1786
      %v2032 = vsel %vm2026, %v2015, %v1788
      %v2034 = vsel %vm2026, %v2017, %v1790
      %v2036 = vsel %vm2026, %v2019, %v1792
      %v2038 = vsel %vm2026, %v2021, %v1794
      %v2040 = vsel %vm2026, %v2023, %v1796
      %v2042 = vsel %vm2026, %v2025, %v1798
      %vm2043 = vcmask 326656
      %v2045 = vsel %vm2043, %v2028, %v1824
      %v2047 = vsel %vm2043, %v2030, %v1826
      %v2049 = vsel %vm2043, %v2032, %v1828
      %v2051 = vsel %vm2043, %v2034, %v1830
      %v2053 = vsel %vm2043, %v2036, %v1832
      %v2055 = vsel %vm2043, %v2038, %v1834
      %v2057 = vsel %vm2043, %v2040, %v1836
      %v2059 = vsel %vm2043, %v2042, %v1838
      %vm2060 = vcmask 392192
      %v2062 = vsel %vm2060, %v2045, %v1872
      %v2064 = vsel %vm2060, %v2047, %v1874
      %v2066 = vsel %vm2060, %v2049, %v1876
      %v2068 = vsel %vm2060, %v2051, %v1878
      %v2070 = vsel %vm2060, %v2053, %v1880
      %v2072 = vsel %vm2060, %v2055, %v1882
      %v2074 = vsel %vm2060, %v2057, %v1884
      %v2076 = vsel %vm2060, %v2059, %v1886
      %vm2077 = vcmask 457728
      %v2079 = vsel %vm2077, %v2062, %v1912
      %v2081 = vsel %vm2077, %v2064, %v1914
      %v2083 = vsel %vm2077, %v2066, %v1916
      %v2085 = vsel %vm2077, %v2068, %v1918
      %v2087 = vsel %vm2077, %v2070, %v1920
      %v2089 = vsel %vm2077, %v2072, %v1922
      %v2091 = vsel %vm2077, %v2074, %v1924
      %v2093 = vsel %vm2077, %v2076, %v1926
      %vm2094 = vcmask 523264
      %v2096 = vsel %vm2094, %v2079, %v1952
      %v2098 = vsel %vm2094, %v2081, %v1954
      %v2100 = vsel %vm2094, %v2083, %v1956
      %v2102 = vsel %vm2094, %v2085, %v1958
      %v2104 = vsel %vm2094, %v2087, %v1960
      %v2106 = vsel %vm2094, %v2089, %v1962
      %v2108 = vsel %vm2094, %v2091, %v1964
      %v2110 = vsel %vm2094, %v2093, %v1966
      %vm2111 = vcmask 588800
      %v2113 = vsel %vm2111, %v2096, 0
      %v2115 = vsel %vm2111, %v2098, 0
      %v2117 = vsel %vm2111, %v2100, 0
      %v2119 = vsel %vm2111, %v2102, 0
      %v2121 = vsel %vm2111, %v2104, 0
      %v2123 = vsel %vm2111, %v2106, 0
      %v2125 = vsel %vm2111, %v2108, 0
      %v2127 = vsel %vm2111, %v2110, 0
      %v2129 = vld [vmem:[%s1] sm:$0xf]
      %v2130 = vld [vmem:[%s1 + $0x4] sm:$0xf]
      %v2131 = vld [vmem:[%s1 + $0x8] sm:$0xf]
      %v2132 = vld [vmem:[%s1 + $0xc] sm:$0xf]
      %v2133 = vld [vmem:[%s1 + $0x10] sm:$0xf]
      %v2134 = vld [vmem:[%s1 + $0x14] sm:$0xf]
      %v2135 = vld [vmem:[%s1 + $0x18] sm:$0xf]
      %v2136 = vld [vmem:[%s1 + $0x1c] sm:$0xf]
      %v2137 = vld [vmem:[%s1 + $0x20] sm:$0xf]
      %v2138 = vld [vmem:[%s1 + $0x24] sm:$0xf]
      %v2139 = vld [vmem:[%s1 + $0x28] sm:$0xf]
      %v2140 = vld [vmem:[%s1 + $0x2c] sm:$0xf]
      %v2141 = vld [vmem:[%s1 + $0x30] sm:$0xf]
      %v2142 = vld [vmem:[%s1 + $0x34] sm:$0xf]
      %v2143 = vld [vmem:[%s1 + $0x38] sm:$0xf]
      %v2144 = vld [vmem:[%s1 + $0x3c] sm:$0xf]
      %v2161 = vunpack.c.l.b16 %v2129
      %v2162 = vunpack.c.l.b16 %v2130
      %v2163 = vunpack.c.l.b16 %v2131
      %v2164 = vunpack.c.l.b16 %v2132
      %v2165 = vunpack.c.l.b16 %v2133
      %v2166 = vunpack.c.l.b16 %v2134
      %v2167 = vunpack.c.l.b16 %v2135
      %v2168 = vunpack.c.l.b16 %v2136
      %v2169 = vunpack.c.l.b16 %v2137
      %v2170 = vunpack.c.l.b16 %v2138
      %v2171 = vunpack.c.l.b16 %v2139
      %v2172 = vunpack.c.l.b16 %v2140
      %v2173 = vunpack.c.l.b16 %v2141
      %v2174 = vunpack.c.l.b16 %v2142
      %v2175 = vunpack.c.l.b16 %v2143
      %v2176 = vunpack.c.l.b16 %v2144
      %v2177 = vpack.c.b16 %v2162, %v2161
      %v2178 = vpack.c.b16 %v2164, %v2163
      %v2179 = vpack.c.b16 %v2166, %v2165
      %v2180 = vpack.c.b16 %v2168, %v2167
      %v2181 = vpack.c.b16 %v2170, %v2169
      %v2182 = vpack.c.b16 %v2172, %v2171
      %v2183 = vpack.c.b16 %v2174, %v2173
      %v2184 = vpack.c.b16 %v2176, %v2175
      %2193 = vmatprep.subr.bf16.mxu0 0
      %2194 = vmatpush1.bf16.msra.mxu0 %v2177
      %2195 = vmatprep.subr.bf16.mxu0 0
      %2196 = vmatpush1.bf16.msra.mxu0 %v2178
      %2197 = vmatprep.subr.bf16.mxu0 0
      %2198 = vmatpush1.bf16.msra.mxu0 %v2179
      %2199 = vmatprep.subr.bf16.mxu0 0
      %2200 = vmatpush1.bf16.msra.mxu0 %v2180
      %2201 = vmatprep.subr.bf16.mxu0 0
      %2202 = vmatpush1.bf16.msra.mxu0 %v2181
      %2203 = vmatprep.subr.bf16.mxu0 0
      %2204 = vmatpush1.bf16.msra.mxu0 %v2182
      %2205 = vmatprep.subr.bf16.mxu0 0
      %2206 = vmatpush1.bf16.msra.mxu0 %v2183
      %2207 = vmatprep.subr.bf16.mxu0 0
      %2208 = vmatpush1.bf16.msra.mxu0 %v2184
      %2209 = vmatprep.subr.bf16.mxu0 0
      %2210 = vmatpush1.bf16.msra.mxu0 0
      %2211 = vmatprep.subr.bf16.mxu0 0
      %2212 = vmatpush1.bf16.msra.mxu0 0
      %2213 = vmatprep.subr.bf16.mxu0 0
      %2214 = vmatpush1.bf16.msra.mxu0 0
      %2215 = vmatprep.subr.bf16.mxu0 0
      %2216 = vmatpush1.bf16.msra.mxu0 0
      %2217 = vmatprep.subr.bf16.mxu0 0
      %2218 = vmatpush1.bf16.msra.mxu0 0
      %2219 = vmatprep.subr.bf16.mxu0 0
      %2220 = vmatpush1.bf16.msra.mxu0 0
      %2221 = vmatprep.subr.bf16.mxu0 0
      %2222 = vmatpush1.bf16.msra.mxu0 0
      %2223 = vmatprep.subr.bf16.mxu0 0
      %2224 = vmatpush1.bf16.msra.mxu0 0
      %2225 = vmatprep.mubr.bf16.mxu0 0
      %2226 = vmatmul.mubr.bf16.gmra.mrb[0].mxu0 %v2113
      %v2227 = vpop.f32.mrb[0].mxu0
      %v2228 = vadd.f32 0.0, %v2227
      %v2229 = vpop.f32.mrb[0].mxu0
      %v2230 = vpop.f32.mrb[0].mxu0
      %v2231 = vadd.f32 0.0, %v2230
      %v2232 = vpop.f32.mrb[0].mxu0
      %2233 = vmatprep.mubr.bf16.mxu0 0
      %2234 = vmatmul.mubr.bf16.gmra.mrb[0].mxu0 %v2115
      %v2235 = vpop.f32.mrb[0].mxu0
      %v2236 = vadd.f32 0.0, %v2235
      %v2237 = vpop.f32.mrb[0].mxu0
      %v2238 = vpop.f32.mrb[0].mxu0
      %v2239 = vadd.f32 0.0, %v2238
      %v2240 = vpop.f32.mrb[0].mxu0
      %2241 = vmatprep.mubr.bf16.mxu0 0
      %2242 = vmatmul.mubr.bf16.gmra.mrb[0].mxu0 %v2117
      %v2243 = vpop.f32.mrb[0].mxu0
      %v2244 = vadd.f32 0.0, %v2243
      %v2245 = vpop.f32.mrb[0].mxu0
      %v2246 = vpop.f32.mrb[0].mxu0
      %v2247 = vadd.f32 0.0, %v2246
      %v2248 = vpop.f32.mrb[0].mxu0
      %2249 = vmatprep.mubr.bf16.mxu0 0
      %2250 = vmatmul.mubr.bf16.gmra.mrb[0].mxu0 %v2119
      %v2251 = vpop.f32.mrb[0].mxu0
      %v2252 = vadd.f32 0.0, %v2251
      %v2253 = vpop.f32.mrb[0].mxu0
      %v2254 = vpop.f32.mrb[0].mxu0
      %v2255 = vadd.f32 0.0, %v2254
      %v2256 = vpop.f32.mrb[0].mxu0
      %2257 = vmatprep.mubr.bf16.mxu0 0
      %2258 = vmatmul.mubr.bf16.gmra.mrb[0].mxu0 %v2121
      %v2259 = vpop.f32.mrb[0].mxu0
      %v2260 = vadd.f32 0.0, %v2259
      %v2261 = vpop.f32.mrb[0].mxu0
      %v2262 = vpop.f32.mrb[0].mxu0
      %v2263 = vadd.f32 0.0, %v2262
      %v2264 = vpop.f32.mrb[0].mxu0
      %2265 = vmatprep.mubr.bf16.mxu0 0
      %2266 = vmatmul.mubr.bf16.gmra.mrb[0].mxu0 %v2123
      %v2267 = vpop.f32.mrb[0].mxu0
      %v2268 = vadd.f32 0.0, %v2267
      %v2269 = vpop.f32.mrb[0].mxu0
      %v2270 = vpop.f32.mrb[0].mxu0
      %v2271 = vadd.f32 0.0, %v2270
      %v2272 = vpop.f32.mrb[0].mxu0
      %2273 = vmatprep.mubr.bf16.mxu0 0
      %2274 = vmatmul.mubr.bf16.gmra.mrb[0].mxu0 %v2125
      %v2275 = vpop.f32.mrb[0].mxu0
      %v2276 = vadd.f32 0.0, %v2275
      %v2277 = vpop.f32.mrb[0].mxu0
      %v2278 = vpop.f32.mrb[0].mxu0
      %v2279 = vadd.f32 0.0, %v2278
      %v2280 = vpop.f32.mrb[0].mxu0
      %2281 = vmatprep.mubr.bf16.mxu0 0
      %2282 = vmatmul.mubr.bf16.gmra.mrb[0].mxu0 %v2127
      %v2283 = vpop.f32.mrb[0].mxu0
      %v2284 = vadd.f32 0.0, %v2283
      %v2285 = vpop.f32.mrb[0].mxu0
      %v2286 = vpop.f32.mrb[0].mxu0
      %v2287 = vadd.f32 0.0, %v2286
      %v2288 = vpop.f32.mrb[0].mxu0
      %2289 = vdwg.mxu0
      %v2290 = vpack.c.bf16 %v2231, %v2228
      %v2291 = vpack.c.bf16 %v2239, %v2236
      %v2292 = vpack.c.bf16 %v2247, %v2244
      %v2293 = vpack.c.bf16 %v2255, %v2252
      %v2294 = vpack.c.bf16 %v2263, %v2260
      %v2295 = vpack.c.bf16 %v2271, %v2268
      %v2296 = vpack.c.bf16 %v2279, %v2276
      %v2297 = vpack.c.bf16 %v2287, %v2284
      %v2306 = vunpack.c.l.b16 %v2290
      %v2307 = vunpack.c.h.b16 %v2290
      %v2308 = vunpack.c.l.b16 %v2291
      %v2309 = vunpack.c.h.b16 %v2291
      %v2310 = vunpack.c.l.b16 %v2292
      %v2311 = vunpack.c.h.b16 %v2292
      %v2312 = vunpack.c.l.b16 %v2293
      %v2313 = vunpack.c.h.b16 %v2293
      %v2314 = vunpack.c.l.b16 %v2294
      %v2315 = vunpack.c.h.b16 %v2294
      %v2316 = vunpack.c.l.b16 %v2295
      %v2317 = vunpack.c.h.b16 %v2295
      %v2318 = vunpack.c.l.b16 %v2296
      %v2319 = vunpack.c.h.b16 %v2296
      %v2320 = vunpack.c.l.b16 %v2297
      %v2321 = vunpack.c.h.b16 %v2297
      %v2322 = vpack.c.b16 %v2306, %v2306
      %v2323 = vpack.c.b16 %v2307, %v2307
      %v2324 = vpack.c.b16 %v2308, %v2308
      %v2325 = vpack.c.b16 %v2309, %v2309
      %v2326 = vpack.c.b16 %v2310, %v2310
      %v2327 = vpack.c.b16 %v2311, %v2311
      %v2328 = vpack.c.b16 %v2312, %v2312
      %v2329 = vpack.c.b16 %v2313, %v2313
      %v2330 = vpack.c.b16 %v2314, %v2314
      %v2331 = vpack.c.b16 %v2315, %v2315
      %v2332 = vpack.c.b16 %v2316, %v2316
      %v2333 = vpack.c.b16 %v2317, %v2317
      %v2334 = vpack.c.b16 %v2318, %v2318
      %v2335 = vpack.c.b16 %v2319, %v2319
      %v2336 = vpack.c.b16 %v2320, %v2320
      %v2337 = vpack.c.b16 %v2321, %v2321
      %2354 = vst [vmem:[%s302] sm:$0xf] %v2322
      %2355 = vst [vmem:[%s302 + $0x4] sm:$0xf] %v2323
      %2356 = vst [vmem:[%s302 + $0x8] sm:$0xf] %v2324
      %2357 = vst [vmem:[%s302 + $0xc] sm:$0xf] %v2325
      %2358 = vst [vmem:[%s302 + $0x10] sm:$0xf] %v2326
      %2359 = vst [vmem:[%s302 + $0x14] sm:$0xf] %v2327
      %2360 = vst [vmem:[%s302 + $0x18] sm:$0xf] %v2328
      %2361 = vst [vmem:[%s302 + $0x1c] sm:$0xf] %v2329
      %2362 = vst [vmem:[%s302 + $0x20] sm:$0xf] %v2330
      %2363 = vst [vmem:[%s302 + $0x24] sm:$0xf] %v2331
      %2364 = vst [vmem:[%s302 + $0x28] sm:$0xf] %v2332
      %2365 = vst [vmem:[%s302 + $0x2c] sm:$0xf] %v2333
      %2366 = vst [vmem:[%s302 + $0x30] sm:$0xf] %v2334
      %2367 = vst [vmem:[%s302 + $0x34] sm:$0xf] %v2335
      %2368 = vst [vmem:[%s302 + $0x38] sm:$0xf] %v2336
      %2369 = vst [vmem:[%s302 + $0x3c] sm:$0xf] %v2337
      %v2370 = vadd.f32 %v2228, %v2231
      %v2371 = vadd.f32 %v2370, %v2236
      %v2372 = vadd.f32 %v2371, %v2239
      %v2373 = vadd.f32 %v2372, %v2244
      %v2374 = vadd.f32 %v2373, %v2247
      %v2375 = vadd.f32 %v2374, %v2252
      %v2376 = vadd.f32 %v2375, %v2255
      %v2377 = vadd.f32 %v2376, %v2260
      %v2378 = vadd.f32 %v2377, %v2263
      %v2379 = vadd.f32 %v2378, %v2268
      %v2380 = vadd.f32 %v2379, %v2271
      %v2381 = vadd.f32 %v2380, %v2276
      %v2382 = vadd.f32 %v2381, %v2279
      %v2383 = vadd.f32 %v2382, %v2284
      %v2384 = vadd.f32 %v2383, %v2287
      %v2385 = vrot.slane %v2384, 4
      %v2386 = vadd.f32 %v2384, %v2385
      %v2387 = vrot.slane %v2386, 2
      %v2388 = vadd.f32 %v2386, %v2387
      %v2389 = vrot.slane %v2388, 1
      %v2390 = vadd.f32 %v2388, %v2389
      %v2391 = vmul.f32 %v2228, %v2228
      %v2392 = vmul.f32 %v2231, %v2231
      %v2393 = vmul.f32 %v2236, %v2236
      %v2394 = vmul.f32 %v2239, %v2239
      %v2395 = vmul.f32 %v2244, %v2244
      %v2396 = vmul.f32 %v2247, %v2247
      %v2397 = vmul.f32 %v2252, %v2252
      %v2398 = vmul.f32 %v2255, %v2255
      %v2399 = vmul.f32 %v2260, %v2260
      %v2400 = vmul.f32 %v2263, %v2263
      %v2401 = vmul.f32 %v2268, %v2268
      %v2402 = vmul.f32 %v2271, %v2271
      %v2403 = vmul.f32 %v2276, %v2276
      %v2404 = vmul.f32 %v2279, %v2279
      %v2405 = vmul.f32 %v2284, %v2284
      %v2406 = vmul.f32 %v2287, %v2287
      %v2407 = vadd.f32 %v2391, %v2392
      %v2408 = vadd.f32 %v2407, %v2393
      %v2409 = vadd.f32 %v2408, %v2394
      %v2410 = vadd.f32 %v2409, %v2395
      %v2411 = vadd.f32 %v2410, %v2396
      %v2412 = vadd.f32 %v2411, %v2397
      %v2413 = vadd.f32 %v2412, %v2398
      %v2414 = vadd.f32 %v2413, %v2399
      %v2415 = vadd.f32 %v2414, %v2400
      %v2416 = vadd.f32 %v2415, %v2401
      %v2417 = vadd.f32 %v2416, %v2402
      %v2418 = vadd.f32 %v2417, %v2403
      %v2419 = vadd.f32 %v2418, %v2404
      %v2420 = vadd.f32 %v2419, %v2405
      %v2421 = vadd.f32 %v2420, %v2406
      %v2422 = vrot.slane %v2421, 4
      %v2423 = vadd.f32 %v2421, %v2422
      %v2424 = vrot.slane %v2423, 2
      %v2425 = vadd.f32 %v2423, %v2424
      %v2426 = vrot.slane %v2425, 1
      %v2427 = vadd.f32 %v2425, %v2426
      %vm2428 = vcmask 1040384
      %v2429 = vsel %vm2428, %v2390, %v2427
      %vm2430 = vcmask 1041408
      %v2431 = vsel %vm2430, %v2429, 0.0
      %2432 = vst [vmem:[%s322] sm:$0xff] %v2431
      %v2433 = vld [vmem:[%s359] sm:$0xf]
      %v2434 = vld [vmem:[%s359 + $0x4] sm:$0xf]
      %v2435 = vld [vmem:[%s359 + $0x8] sm:$0xf]
      %v2436 = vld [vmem:[%s359 + $0xc] sm:$0xf]
      %v2437 = vld [vmem:[%s359 + $0x10] sm:$0xf]
      %v2438 = vld [vmem:[%s359 + $0x14] sm:$0xf]
      %v2439 = vld [vmem:[%s359 + $0x18] sm:$0xf]
      %v2440 = vld [vmem:[%s359 + $0x1c] sm:$0xf]
      %v2441 = vld [vmem:[%s359 + $0x20] sm:$0xf]
      %v2442 = vld [vmem:[%s359 + $0x24] sm:$0xf]
      %v2443 = vld [vmem:[%s359 + $0x28] sm:$0xf]
      %v2444 = vld [vmem:[%s359 + $0x2c] sm:$0xf]
      %v2445 = vld [vmem:[%s359 + $0x30] sm:$0xf]
      %v2446 = vld [vmem:[%s359 + $0x34] sm:$0xf]
      %v2447 = vld [vmem:[%s359 + $0x38] sm:$0xf]
      %v2448 = vld [vmem:[%s359 + $0x3c] sm:$0xf]
      %v2449 = vld [vmem:[%s2] sm:$0xf]
      %v2450 = vld [vmem:[%s3] sm:$0x1]
      %v2452 = vlaneseq
      %v2453 = vshrl.u32 %v2452, 7
      %v2454 = vsub.s32 0, %v2453
      %v2455 = vrot.slane %v2450, %v2454
      %v2473 = vunpack.c.l.b16 %v2433
      %v2474 = vunpack.c.l.b16 %v2434
      %v2475 = vunpack.c.l.b16 %v2435
      %v2476 = vunpack.c.l.b16 %v2436
      %v2477 = vunpack.c.l.b16 %v2437
      %v2478 = vunpack.c.l.b16 %v2438
      %v2479 = vunpack.c.l.b16 %v2439
      %v2480 = vunpack.c.l.b16 %v2440
      %v2481 = vunpack.c.l.b16 %v2441
      %v2482 = vunpack.c.l.b16 %v2442
      %v2483 = vunpack.c.l.b16 %v2443
      %v2484 = vunpack.c.l.b16 %v2444
      %v2485 = vunpack.c.l.b16 %v2445
      %v2486 = vunpack.c.l.b16 %v2446
      %v2487 = vunpack.c.l.b16 %v2447
      %v2488 = vunpack.c.l.b16 %v2448
      %v2489 = vpack.c.b16 %v2474, %v2473
      %v2490 = vpack.c.b16 %v2476, %v2475
      %v2491 = vpack.c.b16 %v2478, %v2477
      %v2492 = vpack.c.b16 %v2480, %v2479
      %v2493 = vpack.c.b16 %v2482, %v2481
      %v2494 = vpack.c.b16 %v2484, %v2483
      %v2495 = vpack.c.b16 %v2486, %v2485
      %v2496 = vpack.c.b16 %v2488, %v2487
      %v2498 = vsel %vm1967, %v2489, 0
      %v2501 = vsel %vm1967, %v2490, 0
      %v2504 = vsel %vm1967, %v2491, 0
      %v2507 = vsel %vm1967, %v2492, 0
      %v2510 = vsel %vm1967, %v2493, 0
      %v2513 = vsel %vm1967, %v2494, 0
      %v2516 = vsel %vm1967, %v2495, 0
      %v2519 = vsel %vm1967, %v2496, 0
      %vm2521 = vcmask 1043456
      %v2523 = vsel %vm2521, %v2449, 0
      %2525 = vmatprep.subr.bf16.mxu0 0
      %2526 = vmatpush1.bf16.msra.mxu0 %v2523
      %2527 = vmatprep.subr.bf16.mxu0 0
      %2528 = vmatpush1.bf16.msra.mxu0 0
      %2529 = vmatprep.subr.bf16.mxu0 0
      %2530 = vmatpush1.bf16.msra.mxu0 0
      %2531 = vmatprep.subr.bf16.mxu0 0
      %2532 = vmatpush1.bf16.msra.mxu0 0
      %2533 = vmatprep.subr.bf16.mxu0 0
      %2534 = vmatpush1.bf16.msra.mxu0 0
      %2535 = vmatprep.subr.bf16.mxu0 0
      %2536 = vmatpush1.bf16.msra.mxu0 0
      %2537 = vmatprep.subr.bf16.mxu0 0
      %2538 = vmatpush1.bf16.msra.mxu0 0
      %2539 = vmatprep.subr.bf16.mxu0 0
      %2540 = vmatpush1.bf16.msra.mxu0 0
      %2541 = vmatprep.subr.bf16.mxu0 0
      %2542 = vmatpush1.bf16.msra.mxu0 0
      %2543 = vmatprep.subr.bf16.mxu0 0
      %2544 = vmatpush1.bf16.msra.mxu0 0
      %2545 = vmatprep.subr.bf16.mxu0 0
      %2546 = vmatpush1.bf16.msra.mxu0 0
      %2547 = vmatprep.subr.bf16.mxu0 0
      %2548 = vmatpush1.bf16.msra.mxu0 0
      %2549 = vmatprep.subr.bf16.mxu0 0
      %2550 = vmatpush1.bf16.msra.mxu0 0
      %2551 = vmatprep.subr.bf16.mxu0 0
      %2552 = vmatpush1.bf16.msra.mxu0 0
      %2553 = vmatprep.subr.bf16.mxu0 0
      %2554 = vmatpush1.bf16.msra.mxu0 0
      %2555 = vmatprep.subr.bf16.mxu0 0
      %2556 = vmatpush1.bf16.msra.mxu0 0
      %2557 = vmatprep.mubr.bf16.mxu0 0
      %2558 = vmatmul.mubr.bf16.gmra.mrb[0].mxu0 %v2498
      %v2559 = vpop.f32.mrb[0].mxu0
      %v2560 = vadd.f32 %v2455, %v2559
      %v2561 = vpop.f32.mrb[0].mxu0
      %v2562 = vpop.f32.mrb[0].mxu0
      %v2563 = vadd.f32 %v2455, %v2562
      %v2564 = vpop.f32.mrb[0].mxu0
      %2565 = vmatprep.mubr.bf16.mxu0 0
      %2566 = vmatmul.mubr.bf16.gmra.mrb[0].mxu0 %v2501
      %v2567 = vpop.f32.mrb[0].mxu0
      %v2568 = vadd.f32 %v2455, %v2567
      %v2569 = vpop.f32.mrb[0].mxu0
      %v2570 = vpop.f32.mrb[0].mxu0
      %v2571 = vadd.f32 %v2455, %v2570
      %v2572 = vpop.f32.mrb[0].mxu0
      %2573 = vmatprep.mubr.bf16.mxu0 0
      %2574 = vmatmul.mubr.bf16.gmra.mrb[0].mxu0 %v2504
      %v2575 = vpop.f32.mrb[0].mxu0
      %v2576 = vadd.f32 %v2455, %v2575
      %v2577 = vpop.f32.mrb[0].mxu0
      %v2578 = vpop.f32.mrb[0].mxu0
      %v2579 = vadd.f32 %v2455, %v2578
      %v2580 = vpop.f32.mrb[0].mxu0
      %2581 = vmatprep.mubr.bf16.mxu0 0
      %2582 = vmatmul.mubr.bf16.gmra.mrb[0].mxu0 %v2507
      %v2583 = vpop.f32.mrb[0].mxu0
      %v2584 = vadd.f32 %v2455, %v2583
      %v2585 = vpop.f32.mrb[0].mxu0
      %v2586 = vpop.f32.mrb[0].mxu0
      %v2587 = vadd.f32 %v2455, %v2586
      %v2588 = vpop.f32.mrb[0].mxu0
      %2589 = vmatprep.mubr.bf16.mxu0 0
      %2590 = vmatmul.mubr.bf16.gmra.mrb[0].mxu0 %v2510
      %v2591 = vpop.f32.mrb[0].mxu0
      %v2592 = vadd.f32 %v2455, %v2591
      %v2593 = vpop.f32.mrb[0].mxu0
      %v2594 = vpop.f32.mrb[0].mxu0
      %v2595 = vadd.f32 %v2455, %v2594
      %v2596 = vpop.f32.mrb[0].mxu0
      %2597 = vmatprep.mubr.bf16.mxu0 0
      %2598 = vmatmul.mubr.bf16.gmra.mrb[0].mxu0 %v2513
      %v2599 = vpop.f32.mrb[0].mxu0
      %v2600 = vadd.f32 %v2455, %v2599
      %v2601 = vpop.f32.mrb[0].mxu0
      %v2602 = vpop.f32.mrb[0].mxu0
      %v2603 = vadd.f32 %v2455, %v2602
      %v2604 = vpop.f32.mrb[0].mxu0
      %2605 = vmatprep.mubr.bf16.mxu0 0
      %2606 = vmatmul.mubr.bf16.gmra.mrb[0].mxu0 %v2516
      %v2607 = vpop.f32.mrb[0].mxu0
      %v2608 = vadd.f32 %v2455, %v2607
      %v2609 = vpop.f32.mrb[0].mxu0
      %v2610 = vpop.f32.mrb[0].mxu0
      %v2611 = vadd.f32 %v2455, %v2610
      %v2612 = vpop.f32.mrb[0].mxu0
      %2613 = vmatprep.mubr.bf16.mxu0 0
      %2614 = vmatmul.mubr.bf16.gmra.mrb[0].mxu0 %v2519
      %v2615 = vpop.f32.mrb[0].mxu0
      %v2616 = vadd.f32 %v2455, %v2615
      %v2617 = vpop.f32.mrb[0].mxu0
      %v2618 = vpop.f32.mrb[0].mxu0
      %v2619 = vadd.f32 %v2455, %v2618
      %v2620 = vpop.f32.mrb[0].mxu0
      %2621 = vdwg.mxu0
      %v2622 = vpack.c.bf16 %v2563, %v2560
      %v2623 = vpack.c.bf16 %v2571, %v2568
      %v2624 = vpack.c.bf16 %v2579, %v2576
      %v2625 = vpack.c.bf16 %v2587, %v2584
      %v2626 = vpack.c.bf16 %v2595, %v2592
      %v2627 = vpack.c.bf16 %v2603, %v2600
      %v2628 = vpack.c.bf16 %v2611, %v2608
      %v2629 = vpack.c.bf16 %v2619, %v2616
      %v2638 = vunpack.c.l.b16 %v2622
      %v2639 = vunpack.c.h.b16 %v2622
      %v2640 = vunpack.c.l.b16 %v2623
      %v2641 = vunpack.c.h.b16 %v2623
      %v2642 = vunpack.c.l.b16 %v2624
      %v2643 = vunpack.c.h.b16 %v2624
      %v2644 = vunpack.c.l.b16 %v2625
      %v2645 = vunpack.c.h.b16 %v2625
      %v2646 = vunpack.c.l.b16 %v2626
      %v2647 = vunpack.c.h.b16 %v2626
      %v2648 = vunpack.c.l.b16 %v2627
      %v2649 = vunpack.c.h.b16 %v2627
      %v2650 = vunpack.c.l.b16 %v2628
      %v2651 = vunpack.c.h.b16 %v2628
      %v2652 = vunpack.c.l.b16 %v2629
      %v2653 = vunpack.c.h.b16 %v2629
      %v2654 = vpack.c.b16 %v2638, %v2638
      %v2655 = vpack.c.b16 %v2639, %v2639
      %v2656 = vpack.c.b16 %v2640, %v2640
      %v2657 = vpack.c.b16 %v2641, %v2641
      %v2658 = vpack.c.b16 %v2642, %v2642
      %v2659 = vpack.c.b16 %v2643, %v2643
      %v2660 = vpack.c.b16 %v2644, %v2644
      %v2661 = vpack.c.b16 %v2645, %v2645
      %v2662 = vpack.c.b16 %v2646, %v2646
      %v2663 = vpack.c.b16 %v2647, %v2647
      %v2664 = vpack.c.b16 %v2648, %v2648
      %v2665 = vpack.c.b16 %v2649, %v2649
      %v2666 = vpack.c.b16 %v2650, %v2650
      %v2667 = vpack.c.b16 %v2651, %v2651
      %v2668 = vpack.c.b16 %v2652, %v2652
      %v2669 = vpack.c.b16 %v2653, %v2653
      %2686 = vst [vmem:[%s313] sm:$0xf] %v2654
      %2687 = vst [vmem:[%s313 + $0x4] sm:$0xf] %v2655
      %2688 = vst [vmem:[%s313 + $0x8] sm:$0xf] %v2656
      %2689 = vst [vmem:[%s313 + $0xc] sm:$0xf] %v2657
      %2690 = vst [vmem:[%s313 + $0x10] sm:$0xf] %v2658
      %2691 = vst [vmem:[%s313 + $0x14] sm:$0xf] %v2659
      %2692 = vst [vmem:[%s313 + $0x18] sm:$0xf] %v2660
      %2693 = vst [vmem:[%s313 + $0x1c] sm:$0xf] %v2661
      %2694 = vst [vmem:[%s313 + $0x20] sm:$0xf] %v2662
      %2695 = vst [vmem:[%s313 + $0x24] sm:$0xf] %v2663
      %2696 = vst [vmem:[%s313 + $0x28] sm:$0xf] %v2664
      %2697 = vst [vmem:[%s313 + $0x2c] sm:$0xf] %v2665
      %2698 = vst [vmem:[%s313 + $0x30] sm:$0xf] %v2666
      %2699 = vst [vmem:[%s313 + $0x34] sm:$0xf] %v2667
      %2700 = vst [vmem:[%s313 + $0x38] sm:$0xf] %v2668
      %2701 = vst [vmem:[%s313 + $0x3c] sm:$0xf] %v2669
      %s2702 = smul.u32 8, %s23
      %p2703 = scmp.lt.s32.totalorder %s22, 1
      %s2704 = scalar_select %p2703, %s22, 1
      %p2705 = scmp.lt.s32.totalorder %s2702, 15
      %s2706 = scalar_select %p2705, %s2702, 15
      %s2707 = smul.addr %s2706, 2
      %s2708 = smul.addr %s2704, 32
      %s2709 = sadd.s32 %s2707, %s2708
      %s2710 = smul.addr %s2709, 4
      %s2711 = scalar_lea.vmem %s4, %s2710
      %s2712 = smul.u32 8, %s23
      %p2713 = scmp.lt.s32.totalorder %s22, 1
      %s2714 = scalar_select %p2713, %s22, 1
      %p2715 = scmp.lt.s32.totalorder %s2712, 15
      %s2716 = scalar_select %p2715, %s2712, 15
      %s2717 = smul.addr %s2716, 2
      %s2718 = smul.addr %s2714, 32
      %s2719 = sadd.s32 %s2717, %s2718
      %s2720 = smul.addr %s2719, 4
      %s2721 = scalar_lea.vmem %s5, %s2720
      %p2722 = scmp.lt.s32.totalorder %s22, 1
      %s2723 = scalar_select %p2722, %s22, 1
      %p2724 = scmp.lt.s32.totalorder %s23, 1
      %s2725 = scalar_select %p2724, %s23, 1
      %s2726 = smul.addr %s2723, 2
      %s2727 = sadd.s32 %s2725, %s2726
      %s2728 = smul.addr %s2727, 8
      %s2729 = scalar_lea.vmem %s6, %s2728
      // Predicated region
      $region45: #{res_batchnorm_block.3} parent=35 // pred_check
        %p2730 = pneg %p139
      $region46: #{res_batchnorm_block.3} parent=35 // pred_check_branch
        %2732 = sbr.rel (%p2730) target = $region48
      $region47: #{res_batchnorm_block.3} parent=35 // pred_region
        %s2733 = smul.u32 8, %s23
      $region48: #{res_batchnorm_block.3} parent=35 // pred_fallthru
        _
      // Predicated region
      $region49: #{res_batchnorm_block.3} parent=35 // pred_check
        %p2734 = pneg %p167
      $region50: #{res_batchnorm_block.3} parent=35 // pred_check_branch
        %2736 = sbr.rel (%p2734) target = $region52
      $region51: #{res_batchnorm_block.3} parent=35 // pred_region
        %s2737 = smul.u32 8, %s23
      $region52: #{res_batchnorm_block.3} parent=35 // pred_fallthru
        _
      // Predicated region
      $region53: #{res_batchnorm_block.3} parent=35 // pred_check
        %p2738 = pneg %p195
      $region54: #{res_batchnorm_block.3} parent=35 // pred_check_branch
        %2740 = sbr.rel (%p2738) target = $region56
      $region55: #{res_batchnorm_block.3} parent=35 // pred_region
        _
      $region56: #{res_batchnorm_block.3} parent=35 // pred_fallthru
        _
    $region36: #{res_batchnorm_block.3} parent=5 // pred_fallthru
      _
    %p2741 = scmp.le.s32.totalorder 2, %s13
    // Predicated region
    $region57: #{res_batchnorm_block.3} parent=5 // pred_check
      %p2742 = pneg %p2741
    $region58: #{res_batchnorm_block.3} parent=5 // pred_check_branch
      %2744 = sbr.rel (%p2742) target = $region60
    $region59: #{res_batchnorm_block.3} parent=5 // pred_region
      %s2745 = ssub.s32 %s13, 2
      // Predicated region
      $region61: #{res_batchnorm_block.3} parent=59 // pred_check
        %p2746 = pneg %p145
      $region62: #{res_batchnorm_block.3} parent=59 // pred_check_branch
        %2748 = sbr.rel (%p2746) target = $region64
      $region63: #{res_batchnorm_block.3} parent=59 // pred_region
        %s2749 = smul.u32 8, %s25
        %p2750 = scmp.lt.s32.totalorder %s24, 1
        %s2751 = scalar_select %p2750, %s24, 1
        %p2752 = scmp.lt.s32.totalorder %s2749, 15
        %s2753 = scalar_select %p2752, %s2749, 15
        %s2754 = smul.addr %s2753, 2
        %s2755 = smul.addr %s2751, 32
        %s2756 = sadd.s32 %s2754, %s2755
        %s2757 = smul.addr %s2756, 4
        %s2758 = scalar_lea.vmem %s4, %s2757
      $region64: #{res_batchnorm_block.3} parent=59 // pred_fallthru
        _
      // Predicated region
      $region65: #{res_batchnorm_block.3} parent=59 // pred_check
        %p2759 = pneg %p173
      $region66: #{res_batchnorm_block.3} parent=59 // pred_check_branch
        %2761 = sbr.rel (%p2759) target = $region68
      $region67: #{res_batchnorm_block.3} parent=59 // pred_region
        %s2762 = smul.u32 8, %s25
        %p2763 = scmp.lt.s32.totalorder %s24, 1
        %s2764 = scalar_select %p2763, %s24, 1
        %p2765 = scmp.lt.s32.totalorder %s2762, 15
        %s2766 = scalar_select %p2765, %s2762, 15
        %s2767 = smul.addr %s2766, 2
        %s2768 = smul.addr %s2764, 32
        %s2769 = sadd.s32 %s2767, %s2768
        %s2770 = smul.addr %s2769, 4
        %s2771 = scalar_lea.vmem %s5, %s2770
      $region68: #{res_batchnorm_block.3} parent=59 // pred_fallthru
        _
      // Predicated region
      $region69: #{res_batchnorm_block.3} parent=59 // pred_check
        %p2772 = pneg %p201
      $region70: #{res_batchnorm_block.3} parent=59 // pred_check_branch
        %2774 = sbr.rel (%p2772) target = $region72
      $region71: #{res_batchnorm_block.3} parent=59 // pred_region
        %p2775 = scmp.lt.s32.totalorder %s24, 1
        %s2776 = scalar_select %p2775, %s24, 1
        %p2777 = scmp.lt.s32.totalorder %s25, 1
        %s2778 = scalar_select %p2777, %s25, 1
        %s2779 = smul.addr %s2776, 2
        %s2780 = sadd.s32 %s2778, %s2779
        %s2781 = smul.addr %s2780, 8
        %s2782 = scalar_lea.vmem %s6, %s2781
      $region72: #{res_batchnorm_block.3} parent=59 // pred_fallthru
        _
    $region60: #{res_batchnorm_block.3} parent=5 // pred_fallthru
      _
  $region6: #{res_batchnorm_block.3} parent=0 // loop_footer
    %s17 = sadd.s32 1, %s13
  $region7: #{res_batchnorm_block.3} parent=0 // loop_footer_branch
    %12 = sbr.rel target = $region3
  $region8: #{res_batchnorm_block.3} parent=0 // loop_exit
    _

// kernel: res_batchnorm_block.4
$region0: #{res_batchnorm_block.4}
  #allocation0 [shape = 'u32[]', space=smem, size = 0x4, offset = 0x4, fixed_abs, tag = 'smem constant byte address 0x4 - core index']
  #allocation1 [shape = 'u32[144,128]{1,0:T(1,128)}', space=vmem, size = 0x12000, scoped, tag = 'internal scratch']
  #allocation2 [shape = 'bf16[10,18,128]{2,1,0:T(8,128)(2,1)}', space=vmem, size = 0xf000, scoped, tag = 'scratch operand']
  %s0 = inlined_call_operand.vmem [shape: bf16[2,16,16,128], index: 0, kind: input, shape index: {}]
  %s1 = inlined_call_operand.vmem [shape: bf16[1152,128], index: 1, kind: input, shape index: {}]
  %s2 = inlined_call_operand.vmem [shape: f32[1,128], index: 2, kind: input, shape index: {}]
  %s3 = inlined_call_operand.vmem [shape: f32[1,128], index: 3, kind: input, shape index: {}]
  %s4 = inlined_call_operand.vmem [shape: bf16[2,16,16,128], index: 4, kind: output, shape index: {0}]
  %s5 = inlined_call_operand.vmem [shape: f32[2,2,8,128], index: 5, kind: output, shape index: {1}]
  %6 = xla_tuple %s4, %s5
  %s7 = sld [smem:[#allocation0]]
  $region65: #{res_batchnorm_block.4} parent=0
    _
  %s9 = ssub.s32 1, %s7
  %s10 = scalar_select 0, %s9, %s7
  loop: start=0, step=1, limit=6
  $region2: #{res_batchnorm_block.4} parent=0 // loop_pre_header
    _
  $region3: #{res_batchnorm_block.4} parent=0 // loop_header
    %s12 = sphi 0, %s16
    %p13 = scmp.ge.s32.totalorder %s12, 6
    %s19 = sphi 0, %s31
    %s20 = sphi 0, %s27
    %s21 = sphi 0, %s19
    %s22 = sphi 0, %s20
    %s23 = sphi 0, %s21
    %s24 = sphi 0, %s22
    %s34 = sphi 0, %s36
    %s37 = sphi 0, %s34
    %s38 = sphi 0, %s37
    %s54 = sphi 0, %s38
    %s58 = sphi 0, %s58
    %s60 = sphi 0, %s58
    %s61 = sphi 0, %s60
    %s75 = sphi 0, %s61
    %s79 = sphi 0, %s79
    %s81 = sphi 0, %s79
    %s82 = sphi 0, %s81
    %s96 = sphi 0, %s82
    %s100 = sphi 0, %s100
    %s102 = sphi 0, %s100
    %s103 = sphi 0, %s102
    %s117 = sphi 0, %s103
    %s125 = sphi 0, %s127
    %s128 = sphi 0, %s125
    %s129 = sphi 0, %s128
    %s145 = sphi 0, %s129
    %s153 = sphi 0, %s155
    %s156 = sphi 0, %s153
    %s157 = sphi 0, %s156
    %s173 = sphi 0, %s157
  $region4: #{res_batchnorm_block.4} parent=0 // loop_header_branch
    %15 = sbr.rel (%p13) target = $region8
  $region5: #{res_batchnorm_block.4} parent=0 // loop_body
    %s17 = ssub.s32 %s12, 1
    %s18 = ssub.s32 %s12, 2
    %s25 = sadd.s32 1, %s20
    %p26 = scmp.ge.s32.totalorder %s25, 2
    %s27 = scalar_select %p26, 0, %s25
    %s28 = sadd.s32 1, %s19
    %s29 = scalar_select %p26, %s28, %s19
    %p30 = scmp.ge.s32.totalorder %s29, 2
    %s31 = scalar_select %p30, 0, %s29
    %s32 = ssub.s32 %s19, %s31
    %p33 = scmp.eq.s32.totalorder %s32, 0
    %s35 = sadd.s32 %s34, 1
    %s36 = scalar_select %p33, %s34, %s35
    %p39 = pneg %p33
    %p40 = scmp.eq.s32.totalorder %s12, 3
    %p41 = por %p39, %p40
    %p42 = scmp.ne.s32.totalorder %s34, %s37
    %p43 = scmp.eq.s32.totalorder %s12, 0
    %p44 = por %p42, %p43
    %p45 = scmp.ne.s32.totalorder %s34, %s37
    %p46 = scmp.eq.s32.totalorder %s17, 3
    %p47 = por %p45, %p46
    %p48 = scmp.ne.s32.totalorder %s37, %s38
    %p49 = scmp.eq.s32.totalorder %s17, 0
    %p50 = por %p48, %p49
    %p51 = scmp.ne.s32.totalorder %s37, %s38
    %p52 = scmp.eq.s32.totalorder %s18, 3
    %p53 = por %p51, %p52
    %p55 = scmp.ne.s32.totalorder %s38, %s54
    %p56 = scmp.eq.s32.totalorder %s18, 0
    %p57 = por %p55, %p56
    %s59 = sadd.s32 %s58, 1
    %p62 = scmp.eq.s32.totalorder %s12, 3
    %p63 = scmp.ne.s32.totalorder %s58, %s60
    %p64 = scmp.eq.s32.totalorder %s12, 0
    %p65 = por %p63, %p64
    %p66 = scmp.ne.s32.totalorder %s58, %s60
    %p67 = scmp.eq.s32.totalorder %s17, 3
    %p68 = por %p66, %p67
    %p69 = scmp.ne.s32.totalorder %s60, %s61
    %p70 = scmp.eq.s32.totalorder %s17, 0
    %p71 = por %p69, %p70
    %p72 = scmp.ne.s32.totalorder %s60, %s61
    %p73 = scmp.eq.s32.totalorder %s18, 3
    %p74 = por %p72, %p73
    %p76 = scmp.ne.s32.totalorder %s61, %s75
    %p77 = scmp.eq.s32.totalorder %s18, 0
    %p78 = por %p76, %p77
    %s80 = sadd.s32 %s79, 1
    %p83 = scmp.eq.s32.totalorder %s12, 3
    %p84 = scmp.ne.s32.totalorder %s79, %s81
    %p85 = scmp.eq.s32.totalorder %s12, 0
    %p86 = por %p84, %p85
    %p87 = scmp.ne.s32.totalorder %s79, %s81
    %p88 = scmp.eq.s32.totalorder %s17, 3
    %p89 = por %p87, %p88
    %p90 = scmp.ne.s32.totalorder %s81, %s82
    %p91 = scmp.eq.s32.totalorder %s17, 0
    %p92 = por %p90, %p91
    %p93 = scmp.ne.s32.totalorder %s81, %s82
    %p94 = scmp.eq.s32.totalorder %s18, 3
    %p95 = por %p93, %p94
    %p97 = scmp.ne.s32.totalorder %s82, %s96
    %p98 = scmp.eq.s32.totalorder %s18, 0
    %p99 = por %p97, %p98
    %s101 = sadd.s32 %s100, 1
    %p104 = scmp.eq.s32.totalorder %s12, 3
    %p105 = scmp.ne.s32.totalorder %s100, %s102
    %p106 = scmp.eq.s32.totalorder %s12, 0
    %p107 = por %p105, %p106
    %p108 = scmp.ne.s32.totalorder %s100, %s102
    %p109 = scmp.eq.s32.totalorder %s17, 3
    %p110 = por %p108, %p109
    %p111 = scmp.ne.s32.totalorder %s102, %s103
    %p112 = scmp.eq.s32.totalorder %s17, 0
    %p113 = por %p111, %p112
    %p114 = scmp.ne.s32.totalorder %s102, %s103
    %p115 = scmp.eq.s32.totalorder %s18, 3
    %p116 = por %p114, %p115
    %p118 = scmp.ne.s32.totalorder %s103, %s117
    %p119 = scmp.eq.s32.totalorder %s18, 0
    %p120 = por %p118, %p119
    %s121 = ssub.s32 %s19, %s31
    %s122 = ssub.s32 %s20, %s27
    %s123 = sor.u32 %s121, %s122
    %p124 = scmp.eq.s32.totalorder %s123, 0
    %s126 = sadd.s32 %s125, 1
    %s127 = scalar_select %p124, %s125, %s126
    %p130 = pneg %p124
    %p131 = scmp.eq.s32.totalorder %s12, 3
    %p132 = por %p130, %p131
    %p133 = scmp.ne.s32.totalorder %s125, %s128
    %p134 = scmp.eq.s32.totalorder %s12, 0
    %p135 = por %p133, %p134
    %p136 = scmp.ne.s32.totalorder %s125, %s128
    %p137 = scmp.eq.s32.totalorder %s17, 3
    %p138 = por %p136, %p137
    %p139 = scmp.ne.s32.totalorder %s128, %s129
    %p140 = scmp.eq.s32.totalorder %s17, 0
    %p141 = por %p139, %p140
    %p142 = scmp.ne.s32.totalorder %s128, %s129
    %p143 = scmp.eq.s32.totalorder %s18, 3
    %p144 = por %p142, %p143
    %p146 = scmp.ne.s32.totalorder %s129, %s145
    %p147 = scmp.eq.s32.totalorder %s18, 0
    %p148 = por %p146, %p147
    %s149 = ssub.s32 %s19, %s31
    %s150 = ssub.s32 %s20, %s27
    %s151 = sor.u32 %s149, %s150
    %p152 = scmp.eq.s32.totalorder %s151, 0
    %s154 = sadd.s32 %s153, 1
    %s155 = scalar_select %p152, %s153, %s154
    %p158 = pneg %p152
    %p159 = scmp.eq.s32.totalorder %s12, 3
    %p160 = por %p158, %p159
    %p161 = scmp.ne.s32.totalorder %s153, %s156
    %p162 = scmp.eq.s32.totalorder %s12, 0
    %p163 = por %p161, %p162
    %p164 = scmp.ne.s32.totalorder %s153, %s156
    %p165 = scmp.eq.s32.totalorder %s17, 3
    %p166 = por %p164, %p165
    %p167 = scmp.ne.s32.totalorder %s156, %s157
    %p168 = scmp.eq.s32.totalorder %s17, 0
    %p169 = por %p167, %p168
    %p170 = scmp.ne.s32.totalorder %s156, %s157
    %p171 = scmp.eq.s32.totalorder %s18, 3
    %p172 = por %p170, %p171
    %p174 = scmp.ne.s32.totalorder %s157, %s173
    %p175 = scmp.eq.s32.totalorder %s18, 0
    %p176 = por %p174, %p175
    %p177 = scmp.le.s32.totalorder 1, %s12
    %p178 = scmp.lt.s32.totalorder %s12, 5
    %p179 = pnand %p177, %p178
    %p180 = pneg %p179
    // Predicated region
    $region9: #{res_batchnorm_block.4} parent=5 // pred_check
      _
    $region10: #{res_batchnorm_block.4} parent=5 // pred_check_branch
      %182 = sbr.rel (%p179) target = $region12
    $region11: #{res_batchnorm_block.4} parent=5 // pred_region
      %s183 = ssub.s32 %s12, 1
      // Predicated region
      $region13: #{res_batchnorm_block.4} parent=11 // pred_check
        %p184 = pneg %p71
      $region14: #{res_batchnorm_block.4} parent=11 // pred_check_branch
        %186 = sbr.rel (%p184) target = $region16
      $region15: #{res_batchnorm_block.4} parent=11 // pred_region
        _
      $region16: #{res_batchnorm_block.4} parent=11 // pred_fallthru
        _
      // Predicated region
      $region17: #{res_batchnorm_block.4} parent=11 // pred_check
        %p187 = pneg %p92
      $region18: #{res_batchnorm_block.4} parent=11 // pred_check_branch
        %189 = sbr.rel (%p187) target = $region20
      $region19: #{res_batchnorm_block.4} parent=11 // pred_region
        _
      $region20: #{res_batchnorm_block.4} parent=11 // pred_fallthru
        _
      // Predicated region
      $region21: #{res_batchnorm_block.4} parent=11 // pred_check
        %p190 = pneg %p113
      $region22: #{res_batchnorm_block.4} parent=11 // pred_check_branch
        %192 = sbr.rel (%p190) target = $region24
      $region23: #{res_batchnorm_block.4} parent=11 // pred_region
        _
      $region24: #{res_batchnorm_block.4} parent=11 // pred_fallthru
        _
    $region12: #{res_batchnorm_block.4} parent=5 // pred_fallthru
      _
    %p193 = scmp.lt.s32.totalorder %s12, 4
    // Predicated region
    $region25: #{res_batchnorm_block.4} parent=5 // pred_check
      %p194 = pneg %p193
    $region26: #{res_batchnorm_block.4} parent=5 // pred_check_branch
      %196 = sbr.rel (%p194) target = $region28
    $region27: #{res_batchnorm_block.4} parent=5 // pred_region
      // Predicated region
      $region29: #{res_batchnorm_block.4} parent=27 // pred_check
        %p197 = pneg %p44
      $region30: #{res_batchnorm_block.4} parent=27 // pred_check_branch
        %199 = sbr.rel (%p197) target = $region32
      $region31: #{res_batchnorm_block.4} parent=27 // pred_region
        %p200 = scmp.lt.s32.totalorder %s19, 1
        %s201 = scalar_select %p200, %s19, 1
        %s202 = smul.addr %s201, 32
        %s203 = smul.addr %s202, 4
        %s204 = scalar_lea.vmem %s0, %s203
      $region32: #{res_batchnorm_block.4} parent=27 // pred_fallthru
        _
    $region28: #{res_batchnorm_block.4} parent=5 // pred_fallthru
      _
    %p205 = scmp.le.s32.totalorder 1, %s12
    %p206 = scmp.lt.s32.totalorder %s12, 5
    %p207 = pnand %p205, %p206
    %p208 = pneg %p207
    // Predicated region
    $region33: #{res_batchnorm_block.4} parent=5 // pred_check
      _
    $region34: #{res_batchnorm_block.4} parent=5 // pred_check_branch
      %210 = sbr.rel (%p207) target = $region36
    $region35: #{res_batchnorm_block.4} parent=5 // pred_region
      %s211 = ssub.s32 %s12, 1
      %p212 = scmp.lt.s32.totalorder %s21, 1
      %s213 = scalar_select %p212, %s21, 1
      %s214 = smul.addr %s213, 32
      %s215 = smul.addr %s214, 4
      %s216 = scalar_lea.vmem %s0, %s215
      %p217 = pneg %p50
      %p218 = pneg %p47
      %p219 = pneg %p71
      %p220 = pneg %p68
      %p221 = pneg %p92
      %p222 = pneg %p89
      %p223 = pneg %p113
      %p224 = pneg %p110
      %p225 = pneg %p141
      %p226 = pneg %p138
      %s227 = smul.u32 8, %s22
      %p228 = scmp.lt.s32.totalorder %s21, 1
      %s229 = scalar_select %p228, %s21, 1
      %p230 = scmp.lt.s32.totalorder %s227, 15
      %s231 = scalar_select %p230, %s227, 15
      %s232 = smul.addr %s231, 2
      %s233 = smul.addr %s229, 32
      %s234 = sadd.s32 %s232, %s233
      %s235 = smul.addr %s234, 4
      %s236 = scalar_lea.vmem %s4, %s235
      %p237 = pneg %p169
      %p238 = pneg %p166
      %p239 = scmp.lt.s32.totalorder %s21, 1
      %s240 = scalar_select %p239, %s21, 1
      %p241 = scmp.lt.s32.totalorder %s22, 1
      %s242 = scalar_select %p241, %s22, 1
      %s243 = smul.addr %s240, 2
      %s244 = sadd.s32 %s242, %s243
      %s245 = smul.addr %s244, 8
      %s246 = scalar_lea.vmem %s5, %s245
      %p247 = scmp.lt.s32.totalorder %s21, 1
      %s248 = scalar_select %p247, %s21, 1
      %s249 = smul.addr %s248, 32
      %s250 = smul.addr %s249, 4
      %s251 = scalar_lea.vmem %s0, %s250
      %s252 = smul.u32 8, %s22
      %p253 = scmp.lt.s32.totalorder %s21, 1
      %s254 = scalar_select %p253, %s21, 1
      %p255 = scmp.lt.s32.totalorder %s252, 15
      %s256 = scalar_select %p255, %s252, 15
      %s257 = smul.addr %s256, 2
      %s258 = smul.addr %s254, 32
      %s259 = sadd.s32 %s257, %s258
      %s260 = smul.addr %s259, 4
      %s261 = scalar_lea.vmem %s4, %s260
      %s262 = smul.u32 8, %s22
      %p263 = scmp.lt.s32.totalorder %s21, 1
      %s264 = scalar_select %p263, %s21, 1
      %p265 = scmp.lt.s32.totalorder %s22, 1
      %s266 = scalar_select %p265, %s22, 1
      %s267 = smul.addr %s264, 2
      %s268 = sadd.s32 %s266, %s267
      %s269 = smul.addr %s268, 8
      %s270 = scalar_lea.vmem %s5, %s269
      %v272 = vld [vmem:[%s2] sm:$0x1]
      %v273 = vld [vmem:[%s3] sm:$0x1]
      %s274 = smul.u32 %s22, 8
      %275 = vst [vmem:[#allocation2] sm:$0xf] 0
      %276 = vst [vmem:[#allocation2 + $0x4] sm:$0xf] 0
      %277 = vst [vmem:[#allocation2 + $0x8] sm:$0x1] 0
      %278 = vst [vmem:[#allocation2 + $0xc] sm:$0xf] 0
      %279 = vst [vmem:[#allocation2 + $0x10] sm:$0xf] 0
      %280 = vst [vmem:[#allocation2 + $0x14] sm:$0x1] 0
      %281 = vst [vmem:[#allocation2 + $0x18] sm:$0xf] 0
      %282 = vst [vmem:[#allocation2 + $0x1c] sm:$0xf] 0
      %283 = vst [vmem:[#allocation2 + $0x20] sm:$0x1] 0
      %284 = vst [vmem:[#allocation2 + $0x24] sm:$0xf] 0
      %285 = vst [vmem:[#allocation2 + $0x28] sm:$0xf] 0
      %286 = vst [vmem:[#allocation2 + $0x2c] sm:$0x1] 0
      %287 = vst [vmem:[#allocation2 + $0x30] sm:$0xf] 0
      %288 = vst [vmem:[#allocation2 + $0x34] sm:$0xf] 0
      %289 = vst [vmem:[#allocation2 + $0x38] sm:$0x1] 0
      %290 = vst [vmem:[#allocation2 + $0x3c] sm:$0xf] 0
      %291 = vst [vmem:[#allocation2 + $0x40] sm:$0xf] 0
      %292 = vst [vmem:[#allocation2 + $0x44] sm:$0x1] 0
      %293 = vst [vmem:[#allocation2 + $0x48] sm:$0xf] 0
      %294 = vst [vmem:[#allocation2 + $0x4c] sm:$0xf] 0
      %295 = vst [vmem:[#allocation2 + $0x50] sm:$0x1] 0
      %296 = vst [vmem:[#allocation2 + $0x54] sm:$0xf] 0
      %297 = vst [vmem:[#allocation2 + $0x58] sm:$0xf] 0
      %298 = vst [vmem:[#allocation2 + $0x5c] sm:$0x1] 0
      %299 = vst [vmem:[#allocation2 + $0x60] sm:$0xf] 0
      %300 = vst [vmem:[#allocation2 + $0x64] sm:$0xf] 0
      %301 = vst [vmem:[#allocation2 + $0x68] sm:$0x1] 0
      %302 = vst [vmem:[#allocation2 + $0x6c] sm:$0xf] 0
      %303 = vst [vmem:[#allocation2 + $0x70] sm:$0xf] 0
      %304 = vst [vmem:[#allocation2 + $0x74] sm:$0x1] 0
      %s305 = smul.u32 %s274, 2
      %s306 = smul.addr %s305, 4
      %s307 = scalar_lea.vmem %s251, %s306
      %v308 = vld [vmem:[%s307] sm:$0xf]
      %v309 = vld [vmem:[%s307 + $0x4] sm:$0xf]
      %v310 = vld [vmem:[%s307 + $0x8] sm:$0xf]
      %v311 = vld [vmem:[%s307 + $0xc] sm:$0xf]
      %v312 = vld [vmem:[%s307 + $0x10] sm:$0xf]
      %v313 = vld [vmem:[%s307 + $0x14] sm:$0xf]
      %v314 = vld [vmem:[%s307 + $0x18] sm:$0xf]
      %v315 = vld [vmem:[%s307 + $0x1c] sm:$0xf]
      %v316 = vld [vmem:[%s307 + $0x20] sm:$0xf]
      %v317 = vld [vmem:[%s307 + $0x24] sm:$0xf]
      %v318 = vld [vmem:[%s307 + $0x28] sm:$0xf]
      %v319 = vld [vmem:[%s307 + $0x2c] sm:$0xf]
      %v320 = vld [vmem:[%s307 + $0x30] sm:$0xf]
      %v321 = vld [vmem:[%s307 + $0x34] sm:$0xf]
      %v322 = vld [vmem:[%s307 + $0x38] sm:$0xf]
      %v323 = vld [vmem:[%s307 + $0x3c] sm:$0xf]
      %v324 = vunpack.c.l.bf16 %v308
      %v325 = vunpack.c.l.bf16 %v309
      %v326 = vunpack.c.l.bf16 %v310
      %v327 = vunpack.c.l.bf16 %v311
      %v328 = vunpack.c.l.bf16 %v312
      %v329 = vunpack.c.l.bf16 %v313
      %v330 = vunpack.c.l.bf16 %v314
      %v331 = vunpack.c.l.bf16 %v315
      %v332 = vunpack.c.l.bf16 %v316
      %v333 = vunpack.c.l.bf16 %v317
      %v334 = vunpack.c.l.bf16 %v318
      %v335 = vunpack.c.l.bf16 %v319
      %v336 = vunpack.c.l.bf16 %v320
      %v337 = vunpack.c.l.bf16 %v321
      %v338 = vunpack.c.l.bf16 %v322
      %v339 = vunpack.c.l.bf16 %v323
      %v341 = vlaneseq
      %v342 = vshrl.u32 %v341, 7
      %v343 = vsub.s32 0, %v342
      %v344 = vrot.slane %v272, %v343
      %v346 = vmul.f32 %v324, %v344
      %v347 = vmul.f32 %v325, %v344
      %v348 = vmul.f32 %v326, %v344
      %v349 = vmul.f32 %v327, %v344
      %v350 = vmul.f32 %v328, %v344
      %v351 = vmul.f32 %v329, %v344
      %v352 = vmul.f32 %v330, %v344
      %v353 = vmul.f32 %v331, %v344
      %v354 = vmul.f32 %v332, %v344
      %v355 = vmul.f32 %v333, %v344
      %v356 = vmul.f32 %v334, %v344
      %v357 = vmul.f32 %v335, %v344
      %v358 = vmul.f32 %v336, %v344
      %v359 = vmul.f32 %v337, %v344
      %v360 = vmul.f32 %v338, %v344
      %v361 = vmul.f32 %v339, %v344
      %v363 = vlaneseq
      %v364 = vshrl.u32 %v363, 7
      %v365 = vsub.s32 0, %v364
      %v366 = vrot.slane %v273, %v365
      %v368 = vadd.f32 %v346, %v366
      %v369 = vadd.f32 %v347, %v366
      %v370 = vadd.f32 %v348, %v366
      %v371 = vadd.f32 %v349, %v366
      %v372 = vadd.f32 %v350, %v366
      %v373 = vadd.f32 %v351, %v366
      %v374 = vadd.f32 %v352, %v366
      %v375 = vadd.f32 %v353, %v366
      %v376 = vadd.f32 %v354, %v366
      %v377 = vadd.f32 %v355, %v366
      %v378 = vadd.f32 %v356, %v366
      %v379 = vadd.f32 %v357, %v366
      %v380 = vadd.f32 %v358, %v366
      %v381 = vadd.f32 %v359, %v366
      %v382 = vadd.f32 %v360, %v366
      %v383 = vadd.f32 %v361, %v366
      %v384 = vmax.f32 %v368, 0.0
      %v385 = vmax.f32 %v369, 0.0
      %v386 = vmax.f32 %v370, 0.0
      %v387 = vmax.f32 %v371, 0.0
      %v388 = vmax.f32 %v372, 0.0
      %v389 = vmax.f32 %v373, 0.0
      %v390 = vmax.f32 %v374, 0.0
      %v391 = vmax.f32 %v375, 0.0
      %v392 = vmax.f32 %v376, 0.0
      %v393 = vmax.f32 %v377, 0.0
      %v394 = vmax.f32 %v378, 0.0
      %v395 = vmax.f32 %v379, 0.0
      %v396 = vmax.f32 %v380, 0.0
      %v397 = vmax.f32 %v381, 0.0
      %v398 = vmax.f32 %v382, 0.0
      %v399 = vmax.f32 %v383, 0.0
      %v400 = vpack.c.bf16 %v385, %v384
      %v401 = vpack.c.bf16 %v387, %v386
      %v402 = vpack.c.bf16 %v389, %v388
      %v403 = vpack.c.bf16 %v391, %v390
      %v404 = vpack.c.bf16 %v393, %v392
      %v405 = vpack.c.bf16 %v395, %v394
      %v406 = vpack.c.bf16 %v397, %v396
      %v407 = vpack.c.bf16 %v399, %v398
      %v416 = vunpack.c.l.b16 %v400
      %v417 = vunpack.c.h.b16 %v400
      %v418 = vunpack.c.l.b16 %v401
      %v419 = vunpack.c.h.b16 %v401
      %v420 = vunpack.c.l.b16 %v402
      %v421 = vunpack.c.h.b16 %v402
      %v422 = vunpack.c.l.b16 %v403
      %v423 = vunpack.c.h.b16 %v403
      %v424 = vunpack.c.l.b16 %v404
      %v425 = vunpack.c.h.b16 %v404
      %v426 = vunpack.c.l.b16 %v405
      %v427 = vunpack.c.h.b16 %v405
      %v428 = vunpack.c.l.b16 %v406
      %v429 = vunpack.c.h.b16 %v406
      %v430 = vunpack.c.l.b16 %v407
      %v431 = vunpack.c.h.b16 %v407
      %v432 = vpack.c.b16 %v416, %v416
      %v433 = vpack.c.b16 %v417, %v417
      %v434 = vpack.c.b16 %v418, %v418
      %v435 = vpack.c.b16 %v419, %v419
      %v436 = vpack.c.b16 %v420, %v420
      %v437 = vpack.c.b16 %v421, %v421
      %v438 = vpack.c.b16 %v422, %v422
      %v439 = vpack.c.b16 %v423, %v423
      %v440 = vpack.c.b16 %v424, %v424
      %v441 = vpack.c.b16 %v425, %v425
      %v442 = vpack.c.b16 %v426, %v426
      %v443 = vpack.c.b16 %v427, %v427
      %v444 = vpack.c.b16 %v428, %v428
      %v445 = vpack.c.b16 %v429, %v429
      %v446 = vpack.c.b16 %v430, %v430
      %v447 = vpack.c.b16 %v431, %v431
      %vm448 = vsmask.f32 256
      %vm449 = vsmask.f32 4368
      %vm450 = vmor %vm448, %vm449
      %v452 = vshrl.u32 %v432, 16
      %v454 = vrot.slane %v452, 7
      %v455 = vshll.u32 %v432, 16
      %v457 = vor.u32 %v454, %v455
      %v458 = vrot.slane %v454, 4
      %v460 = vshrl.u32 %v433, 16
      %v462 = vrot.slane %v460, 7
      %v463 = vshll.u32 %v433, 16
      %v465 = vor.u32 %v462, %v463
      %v466 = vsel %vm450, %v458, %v465
      %v467 = vrot.slane %v462, 4
      %v469 = vshrl.u32 %v434, 16
      %v471 = vrot.slane %v469, 7
      %v472 = vshll.u32 %v434, 16
      %v474 = vor.u32 %v471, %v472
      %v475 = vrot.slane %v471, 4
      %v477 = vshrl.u32 %v435, 16
      %v479 = vrot.slane %v477, 7
      %v480 = vshll.u32 %v435, 16
      %v482 = vor.u32 %v479, %v480
      %v483 = vsel %vm450, %v475, %v482
      %v484 = vrot.slane %v479, 4
      %v486 = vshrl.u32 %v436, 16
      %v488 = vrot.slane %v486, 7
      %v489 = vshll.u32 %v436, 16
      %v491 = vor.u32 %v488, %v489
      %v492 = vrot.slane %v488, 4
      %v494 = vshrl.u32 %v437, 16
      %v496 = vrot.slane %v494, 7
      %v497 = vshll.u32 %v437, 16
      %v499 = vor.u32 %v496, %v497
      %v500 = vsel %vm450, %v492, %v499
      %v501 = vrot.slane %v496, 4
      %v503 = vshrl.u32 %v438, 16
      %v505 = vrot.slane %v503, 7
      %v506 = vshll.u32 %v438, 16
      %v508 = vor.u32 %v505, %v506
      %v509 = vrot.slane %v505, 4
      %v511 = vshrl.u32 %v439, 16
      %v513 = vrot.slane %v511, 7
      %v514 = vshll.u32 %v439, 16
      %v516 = vor.u32 %v513, %v514
      %v517 = vsel %vm450, %v509, %v516
      %v518 = vrot.slane %v513, 4
      %v520 = vshrl.u32 %v440, 16
      %v522 = vrot.slane %v520, 7
      %v523 = vshll.u32 %v440, 16
      %v525 = vor.u32 %v522, %v523
      %v526 = vrot.slane %v522, 4
      %v528 = vshrl.u32 %v441, 16
      %v530 = vrot.slane %v528, 7
      %v531 = vshll.u32 %v441, 16
      %v533 = vor.u32 %v530, %v531
      %v534 = vsel %vm450, %v526, %v533
      %v535 = vrot.slane %v530, 4
      %v537 = vshrl.u32 %v442, 16
      %v539 = vrot.slane %v537, 7
      %v540 = vshll.u32 %v442, 16
      %v542 = vor.u32 %v539, %v540
      %v543 = vrot.slane %v539, 4
      %v545 = vshrl.u32 %v443, 16
      %v547 = vrot.slane %v545, 7
      %v548 = vshll.u32 %v443, 16
      %v550 = vor.u32 %v547, %v548
      %v551 = vsel %vm450, %v543, %v550
      %v552 = vrot.slane %v547, 4
      %v554 = vshrl.u32 %v444, 16
      %v556 = vrot.slane %v554, 7
      %v557 = vshll.u32 %v444, 16
      %v559 = vor.u32 %v556, %v557
      %v560 = vrot.slane %v556, 4
      %v562 = vshrl.u32 %v445, 16
      %v564 = vrot.slane %v562, 7
      %v565 = vshll.u32 %v445, 16
      %v567 = vor.u32 %v564, %v565
      %v568 = vsel %vm450, %v560, %v567
      %v569 = vrot.slane %v564, 4
      %v571 = vshrl.u32 %v446, 16
      %v573 = vrot.slane %v571, 7
      %v574 = vshll.u32 %v446, 16
      %v576 = vor.u32 %v573, %v574
      %v577 = vrot.slane %v573, 4
      %v579 = vshrl.u32 %v447, 16
      %v581 = vrot.slane %v579, 7
      %v582 = vshll.u32 %v447, 16
      %v584 = vor.u32 %v581, %v582
      %v585 = vsel %vm450, %v577, %v584
      %v586 = vrot.slane %v581, 4
      %s611 = scalar_lea.vmem [#allocation2], 12
      %vm612 = vcmask 1043456
      %vm613 = vsmask.f32 7938
      %vm614 = vmand %vm612, %vm613
      %v615 = vld [vmem:[%s611] sm:$0xf]
      %v616 = vsel %vm614, %v457, %v615
      %617 = vst [vmem:[%s611] sm:$0xf] %v616
      %618 = vst [vmem:[%s611 + $0x4] sm:$0xf] %v466
      %vm619 = vcmask 1040384
      %vm620 = vmand %vm619, %vm448
      %v621 = vld [vmem:[%s611 + $0x8] sm:$0x1]
      %v622 = vsel %vm620, %v467, %v621
      %623 = vst [vmem:[%s611 + $0x8] sm:$0x1] %v622
      %v624 = vld [vmem:[%s611 + $0xc] sm:$0xf]
      %v625 = vsel %vm614, %v474, %v624
      %626 = vst [vmem:[%s611 + $0xc] sm:$0xf] %v625
      %627 = vst [vmem:[%s611 + $0x10] sm:$0xf] %v483
      %v628 = vld [vmem:[%s611 + $0x14] sm:$0x1]
      %v629 = vsel %vm620, %v484, %v628
      %630 = vst [vmem:[%s611 + $0x14] sm:$0x1] %v629
      %v631 = vld [vmem:[%s611 + $0x18] sm:$0xf]
      %v632 = vsel %vm614, %v491, %v631
      %633 = vst [vmem:[%s611 + $0x18] sm:$0xf] %v632
      %634 = vst [vmem:[%s611 + $0x1c] sm:$0xf] %v500
      %v635 = vld [vmem:[%s611 + $0x20] sm:$0x1]
      %v636 = vsel %vm620, %v501, %v635
      %637 = vst [vmem:[%s611 + $0x20] sm:$0x1] %v636
      %v638 = vld [vmem:[%s611 + $0x24] sm:$0xf]
      %v639 = vsel %vm614, %v508, %v638
      %640 = vst [vmem:[%s611 + $0x24] sm:$0xf] %v639
      %641 = vst [vmem:[%s611 + $0x28] sm:$0xf] %v517
      %v642 = vld [vmem:[%s611 + $0x2c] sm:$0x1]
      %v643 = vsel %vm620, %v518, %v642
      %644 = vst [vmem:[%s611 + $0x2c] sm:$0x1] %v643
      %v645 = vld [vmem:[%s611 + $0x30] sm:$0xf]
      %v646 = vsel %vm614, %v525, %v645
      %647 = vst [vmem:[%s611 + $0x30] sm:$0xf] %v646
      %648 = vst [vmem:[%s611 + $0x34] sm:$0xf] %v534
      %v649 = vld [vmem:[%s611 + $0x38] sm:$0x1]
      %v650 = vsel %vm620, %v535, %v649
      %651 = vst [vmem:[%s611 + $0x38] sm:$0x1] %v650
      %v652 = vld [vmem:[%s611 + $0x3c] sm:$0xf]
      %v653 = vsel %vm614, %v542, %v652
      %654 = vst [vmem:[%s611 + $0x3c] sm:$0xf] %v653
      %655 = vst [vmem:[%s611 + $0x40] sm:$0xf] %v551
      %v656 = vld [vmem:[%s611 + $0x44] sm:$0x1]
      %v657 = vsel %vm620, %v552, %v656
      %658 = vst [vmem:[%s611 + $0x44] sm:$0x1] %v657
      %v659 = vld [vmem:[%s611 + $0x48] sm:$0xf]
      %v660 = vsel %vm614, %v559, %v659
      %661 = vst [vmem:[%s611 + $0x48] sm:$0xf] %v660
      %662 = vst [vmem:[%s611 + $0x4c] sm:$0xf] %v568
      %v663 = vld [vmem:[%s611 + $0x50] sm:$0x1]
      %v664 = vsel %vm620, %v569, %v663
      %665 = vst [vmem:[%s611 + $0x50] sm:$0x1] %v664
      %v666 = vld [vmem:[%s611 + $0x54] sm:$0xf]
      %v667 = vsel %vm614, %v576, %v666
      %668 = vst [vmem:[%s611 + $0x54] sm:$0xf] %v667
      %669 = vst [vmem:[%s611 + $0x58] sm:$0xf] %v585
      %v670 = vld [vmem:[%s611 + $0x5c] sm:$0x1]
      %v671 = vsel %vm620, %v586, %v670
      %672 = vst [vmem:[%s611 + $0x5c] sm:$0x1] %v671
      %p673 = scmp.gt.s32.totalorder %s22, 0
      // Predicated region
      $region37: #{res_batchnorm_block.4} parent=35 // pred_check
        %p674 = pneg %p673
      $region38: #{res_batchnorm_block.4} parent=35 // pred_check_branch
        %676 = sbr.rel (%p674) target = $region40
      $region39: #{res_batchnorm_block.4} parent=35 // pred_region
        %s677 = ssub.s32 %s274, 1
        %p678 = scmp.gt.s32.totalorder %s677, 0
        %s679 = scalar_select %p678, %s677, 0
        %s680 = smul.u32 %s679, 2
        %s681 = smul.addr %s680, 4
        %s682 = scalar_lea.vmem %s251, %s681
        %v683 = vld [vmem:[%s682] sm:$0xf]
        %v684 = vld [vmem:[%s682 + $0x4] sm:$0xf]
        %v685 = vunpack.c.l.bf16 %v683
        %v686 = vunpack.c.l.bf16 %v684
        %v687 = vmul.f32 %v685, %v344
        %v688 = vmul.f32 %v686, %v344
        %v689 = vadd.f32 %v687, %v366
        %v690 = vadd.f32 %v688, %v366
        %v691 = vmax.f32 %v689, 0.0
        %v692 = vmax.f32 %v690, 0.0
        %v693 = vpack.c.bf16 %v692, %v691
        %v695 = vunpack.c.l.b16 %v693
        %v696 = vunpack.c.h.b16 %v693
        %v697 = vpack.c.b16 %v695, %v695
        %v698 = vpack.c.b16 %v696, %v696
        %v700 = vshrl.u32 %v697, 16
        %v702 = vrot.slane %v700, 7
        %v703 = vshll.u32 %v697, 16
        %v705 = vor.u32 %v702, %v703
        %v706 = vrot.slane %v702, 4
        %v708 = vshrl.u32 %v698, 16
        %v710 = vrot.slane %v708, 7
        %v711 = vshll.u32 %v698, 16
        %v713 = vor.u32 %v710, %v711
        %v714 = vsel %vm450, %v706, %v713
        %v715 = vrot.slane %v710, 4
        %v719 = vld [vmem:[#allocation2] sm:$0xf]
        %v720 = vsel %vm614, %v705, %v719
        %721 = vst [vmem:[#allocation2] sm:$0xf] %v720
        %722 = vst [vmem:[#allocation2 + $0x4] sm:$0xf] %v714
        %v723 = vld [vmem:[#allocation2 + $0x8] sm:$0x1]
        %v724 = vsel %vm620, %v715, %v723
        %725 = vst [vmem:[#allocation2 + $0x8] sm:$0x1] %v724
      $region40: #{res_batchnorm_block.4} parent=35 // pred_fallthru
        _
      %p726 = scmp.lt.s32.totalorder %s22, 1
      // Predicated region
      $region41: #{res_batchnorm_block.4} parent=35 // pred_check
        %p727 = pneg %p726
      $region42: #{res_batchnorm_block.4} parent=35 // pred_check_branch
        %729 = sbr.rel (%p727) target = $region44
      $region43: #{res_batchnorm_block.4} parent=35 // pred_region
        %s730 = sadd.s32 %s274, 8
        %p731 = scmp.lt.s32.totalorder %s730, 15
        %s732 = scalar_select %p731, %s730, 15
        %s733 = smul.u32 %s732, 2
        %s734 = smul.addr %s733, 4
        %s735 = scalar_lea.vmem %s251, %s734
        %v736 = vld [vmem:[%s735] sm:$0xf]
        %v737 = vld [vmem:[%s735 + $0x4] sm:$0xf]
        %v738 = vunpack.c.l.bf16 %v736
        %v739 = vunpack.c.l.bf16 %v737
        %v740 = vmul.f32 %v738, %v344
        %v741 = vmul.f32 %v739, %v344
        %v742 = vadd.f32 %v740, %v366
        %v743 = vadd.f32 %v741, %v366
        %v744 = vmax.f32 %v742, 0.0
        %v745 = vmax.f32 %v743, 0.0
        %v746 = vpack.c.bf16 %v745, %v744
        %v748 = vunpack.c.l.b16 %v746
        %v749 = vunpack.c.h.b16 %v746
        %v750 = vpack.c.b16 %v748, %v748
        %v751 = vpack.c.b16 %v749, %v749
        %v753 = vshrl.u32 %v750, 16
        %v755 = vrot.slane %v753, 7
        %v756 = vshll.u32 %v750, 16
        %v758 = vor.u32 %v755, %v756
        %v759 = vrot.slane %v755, 4
        %v761 = vshrl.u32 %v751, 16
        %v763 = vrot.slane %v761, 7
        %v764 = vshll.u32 %v751, 16
        %v766 = vor.u32 %v763, %v764
        %v767 = vsel %vm450, %v759, %v766
        %v768 = vrot.slane %v763, 4
        %s772 = scalar_lea.vmem [#allocation2], 108
        %v773 = vld [vmem:[%s772] sm:$0xf]
        %v774 = vsel %vm614, %v758, %v773
        %775 = vst [vmem:[%s772] sm:$0xf] %v774
        %776 = vst [vmem:[%s772 + $0x4] sm:$0xf] %v767
        %v777 = vld [vmem:[%s772 + $0x8] sm:$0x1]
        %v778 = vsel %vm620, %v768, %v777
        %779 = vst [vmem:[%s772 + $0x8] sm:$0x1] %v778
      $region44: #{res_batchnorm_block.4} parent=35 // pred_fallthru
        _
      %v780 = vld [vmem:[#allocation2] sm:$0xf]
      %v781 = vld [vmem:[#allocation2 + $0x4] sm:$0xf]
      %v782 = vld [vmem:[#allocation2 + $0xc] sm:$0xf]
      %v783 = vld [vmem:[#allocation2 + $0x10] sm:$0xf]
      %v784 = vld [vmem:[#allocation2 + $0x18] sm:$0xf]
      %v785 = vld [vmem:[#allocation2 + $0x1c] sm:$0xf]
      %v786 = vld [vmem:[#allocation2 + $0x24] sm:$0xf]
      %v787 = vld [vmem:[#allocation2 + $0x28] sm:$0xf]
      %v788 = vld [vmem:[#allocation2 + $0x30] sm:$0xf]
      %v789 = vld [vmem:[#allocation2 + $0x34] sm:$0xf]
      %v790 = vld [vmem:[#allocation2 + $0x3c] sm:$0xf]
      %v791 = vld [vmem:[#allocation2 + $0x40] sm:$0xf]
      %v792 = vld [vmem:[#allocation2 + $0x48] sm:$0xf]
      %v793 = vld [vmem:[#allocation2 + $0x4c] sm:$0xf]
      %v794 = vld [vmem:[#allocation2 + $0x54] sm:$0xf]
      %v795 = vld [vmem:[#allocation2 + $0x58] sm:$0xf]
      %v796 = vld [vmem:[#allocation2 + $0x8] sm:$0x1]
      %v797 = vld [vmem:[#allocation2 + $0x14] sm:$0x1]
      %v798 = vld [vmem:[#allocation2 + $0x20] sm:$0x1]
      %v799 = vld [vmem:[#allocation2 + $0x2c] sm:$0x1]
      %v800 = vld [vmem:[#allocation2 + $0x38] sm:$0x1]
      %v801 = vld [vmem:[#allocation2 + $0x44] sm:$0x1]
      %v802 = vld [vmem:[#allocation2 + $0x50] sm:$0x1]
      %v803 = vld [vmem:[#allocation2 + $0x5c] sm:$0x1]
      %vm804 = vsmask.f32 3328
      %vm805 = vsmask.f32 7440
      %vm806 = vmor %vm804, %vm805
      %v808 = vshrl.u32 %v780, 16
      %v810 = vrot.slane %v808, 4
      %v811 = vshll.u32 %v780, 16
      %v813 = vrot.slane %v811, 5
      %v814 = vor.u32 %v810, %v813
      %v815 = vrot.slane %v814, 4
      %v817 = vshll.u32 %v781, 16
      %v819 = vrot.slane %v817, 5
      %v820 = vsel %vm806, %v815, %v819
      %v821 = vshrl.u32 %v781, 16
      %v823 = vrot.slane %v821, 4
      %v824 = vor.u32 %v823, %v819
      %v825 = vrot.slane %v824, 4
      %v827 = vshll.u32 %v796, 16
      %v829 = vrot.slane %v827, 5
      %v830 = vsel %vm806, %v825, %v829
      %v832 = vshrl.u32 %v782, 16
      %v834 = vrot.slane %v832, 4
      %v835 = vshll.u32 %v782, 16
      %v837 = vrot.slane %v835, 5
      %v838 = vor.u32 %v834, %v837
      %v839 = vrot.slane %v838, 4
      %v841 = vshll.u32 %v783, 16
      %v843 = vrot.slane %v841, 5
      %v844 = vsel %vm806, %v839, %v843
      %v845 = vshrl.u32 %v783, 16
      %v847 = vrot.slane %v845, 4
      %v848 = vor.u32 %v847, %v843
      %v849 = vrot.slane %v848, 4
      %v851 = vshll.u32 %v797, 16
      %v853 = vrot.slane %v851, 5
      %v854 = vsel %vm806, %v849, %v853
      %v856 = vshrl.u32 %v784, 16
      %v858 = vrot.slane %v856, 4
      %v859 = vshll.u32 %v784, 16
      %v861 = vrot.slane %v859, 5
      %v862 = vor.u32 %v858, %v861
      %v863 = vrot.slane %v862, 4
      %v865 = vshll.u32 %v785, 16
      %v867 = vrot.slane %v865, 5
      %v868 = vsel %vm806, %v863, %v867
      %v869 = vshrl.u32 %v785, 16
      %v871 = vrot.slane %v869, 4
      %v872 = vor.u32 %v871, %v867
      %v873 = vrot.slane %v872, 4
      %v875 = vshll.u32 %v798, 16
      %v877 = vrot.slane %v875, 5
      %v878 = vsel %vm806, %v873, %v877
      %v880 = vshrl.u32 %v786, 16
      %v882 = vrot.slane %v880, 4
      %v883 = vshll.u32 %v786, 16
      %v885 = vrot.slane %v883, 5
      %v886 = vor.u32 %v882, %v885
      %v887 = vrot.slane %v886, 4
      %v889 = vshll.u32 %v787, 16
      %v891 = vrot.slane %v889, 5
      %v892 = vsel %vm806, %v887, %v891
      %v893 = vshrl.u32 %v787, 16
      %v895 = vrot.slane %v893, 4
      %v896 = vor.u32 %v895, %v891
      %v897 = vrot.slane %v896, 4
      %v899 = vshll.u32 %v799, 16
      %v901 = vrot.slane %v899, 5
      %v902 = vsel %vm806, %v897, %v901
      %v904 = vshrl.u32 %v788, 16
      %v906 = vrot.slane %v904, 4
      %v907 = vshll.u32 %v788, 16
      %v909 = vrot.slane %v907, 5
      %v910 = vor.u32 %v906, %v909
      %v911 = vrot.slane %v910, 4
      %v913 = vshll.u32 %v789, 16
      %v915 = vrot.slane %v913, 5
      %v916 = vsel %vm806, %v911, %v915
      %v917 = vshrl.u32 %v789, 16
      %v919 = vrot.slane %v917, 4
      %v920 = vor.u32 %v919, %v915
      %v921 = vrot.slane %v920, 4
      %v923 = vshll.u32 %v800, 16
      %v925 = vrot.slane %v923, 5
      %v926 = vsel %vm806, %v921, %v925
      %v928 = vshrl.u32 %v790, 16
      %v930 = vrot.slane %v928, 4
      %v931 = vshll.u32 %v790, 16
      %v933 = vrot.slane %v931, 5
      %v934 = vor.u32 %v930, %v933
      %v935 = vrot.slane %v934, 4
      %v937 = vshll.u32 %v791, 16
      %v939 = vrot.slane %v937, 5
      %v940 = vsel %vm806, %v935, %v939
      %v941 = vshrl.u32 %v791, 16
      %v943 = vrot.slane %v941, 4
      %v944 = vor.u32 %v943, %v939
      %v945 = vrot.slane %v944, 4
      %v947 = vshll.u32 %v801, 16
      %v949 = vrot.slane %v947, 5
      %v950 = vsel %vm806, %v945, %v949
      %v952 = vshrl.u32 %v792, 16
      %v954 = vrot.slane %v952, 4
      %v955 = vshll.u32 %v792, 16
      %v957 = vrot.slane %v955, 5
      %v958 = vor.u32 %v954, %v957
      %v959 = vrot.slane %v958, 4
      %v961 = vshll.u32 %v793, 16
      %v963 = vrot.slane %v961, 5
      %v964 = vsel %vm806, %v959, %v963
      %v965 = vshrl.u32 %v793, 16
      %v967 = vrot.slane %v965, 4
      %v968 = vor.u32 %v967, %v963
      %v969 = vrot.slane %v968, 4
      %v971 = vshll.u32 %v802, 16
      %v973 = vrot.slane %v971, 5
      %v974 = vsel %vm806, %v969, %v973
      %v976 = vshrl.u32 %v794, 16
      %v978 = vrot.slane %v976, 4
      %v979 = vshll.u32 %v794, 16
      %v981 = vrot.slane %v979, 5
      %v982 = vor.u32 %v978, %v981
      %v983 = vrot.slane %v982, 4
      %v985 = vshll.u32 %v795, 16
      %v987 = vrot.slane %v985, 5
      %v988 = vsel %vm806, %v983, %v987
      %v989 = vshrl.u32 %v795, 16
      %v991 = vrot.slane %v989, 4
      %v992 = vor.u32 %v991, %v987
      %v993 = vrot.slane %v992, 4
      %v995 = vshll.u32 %v803, 16
      %v997 = vrot.slane %v995, 5
      %v998 = vsel %vm806, %v993, %v997
      %v999 = vld [vmem:[#allocation2] sm:$0xe]
      %v1000 = vld [vmem:[#allocation2 + $0xc] sm:$0xe]
      %v1001 = vld [vmem:[#allocation2 + $0x18] sm:$0xe]
      %v1002 = vld [vmem:[#allocation2 + $0x24] sm:$0xe]
      %v1003 = vld [vmem:[#allocation2 + $0x30] sm:$0xe]
      %v1004 = vld [vmem:[#allocation2 + $0x3c] sm:$0xe]
      %v1005 = vld [vmem:[#allocation2 + $0x48] sm:$0xe]
      %v1006 = vld [vmem:[#allocation2 + $0x54] sm:$0xe]
      %vm1031 = vcmask 1042432
      %vm1032 = vcmask 1046532
      %vm1033 = vmor %vm1031, %vm1032
      %v1034 = vrot.slane %v999, 5
      %v1035 = vrot.slane %v1034, 4
      %v1036 = vrot.slane %v781, 5
      %v1037 = vsel %vm1033, %v1035, %v1036
      %v1038 = vrot.slane %v1036, 4
      %v1039 = vrot.slane %v796, 5
      %v1040 = vsel %vm1033, %v1038, %v1039
      %v1041 = vrot.slane %v1000, 5
      %v1042 = vrot.slane %v1041, 4
      %v1043 = vrot.slane %v783, 5
      %v1044 = vsel %vm1033, %v1042, %v1043
      %v1045 = vrot.slane %v1043, 4
      %v1046 = vrot.slane %v797, 5
      %v1047 = vsel %vm1033, %v1045, %v1046
      %v1048 = vrot.slane %v1001, 5
      %v1049 = vrot.slane %v1048, 4
      %v1050 = vrot.slane %v785, 5
      %v1051 = vsel %vm1033, %v1049, %v1050
      %v1052 = vrot.slane %v1050, 4
      %v1053 = vrot.slane %v798, 5
      %v1054 = vsel %vm1033, %v1052, %v1053
      %v1055 = vrot.slane %v1002, 5
      %v1056 = vrot.slane %v1055, 4
      %v1057 = vrot.slane %v787, 5
      %v1058 = vsel %vm1033, %v1056, %v1057
      %v1059 = vrot.slane %v1057, 4
      %v1060 = vrot.slane %v799, 5
      %v1061 = vsel %vm1033, %v1059, %v1060
      %v1062 = vrot.slane %v1003, 5
      %v1063 = vrot.slane %v1062, 4
      %v1064 = vrot.slane %v789, 5
      %v1065 = vsel %vm1033, %v1063, %v1064
      %v1066 = vrot.slane %v1064, 4
      %v1067 = vrot.slane %v800, 5
      %v1068 = vsel %vm1033, %v1066, %v1067
      %v1069 = vrot.slane %v1004, 5
      %v1070 = vrot.slane %v1069, 4
      %v1071 = vrot.slane %v791, 5
      %v1072 = vsel %vm1033, %v1070, %v1071
      %v1073 = vrot.slane %v1071, 4
      %v1074 = vrot.slane %v801, 5
      %v1075 = vsel %vm1033, %v1073, %v1074
      %v1076 = vrot.slane %v1005, 5
      %v1077 = vrot.slane %v1076, 4
      %v1078 = vrot.slane %v793, 5
      %v1079 = vsel %vm1033, %v1077, %v1078
      %v1080 = vrot.slane %v1078, 4
      %v1081 = vrot.slane %v802, 5
      %v1082 = vsel %vm1033, %v1080, %v1081
      %v1083 = vrot.slane %v1006, 5
      %v1084 = vrot.slane %v1083, 4
      %v1085 = vrot.slane %v795, 5
      %v1086 = vsel %vm1033, %v1084, %v1085
      %v1087 = vrot.slane %v1085, 4
      %v1088 = vrot.slane %v803, 5
      %v1089 = vsel %vm1033, %v1087, %v1088
      %v1090 = vld [vmem:[%s611] sm:$0xf]
      %v1091 = vld [vmem:[%s611 + $0x4] sm:$0xf]
      %v1092 = vld [vmem:[%s611 + $0xc] sm:$0xf]
      %v1093 = vld [vmem:[%s611 + $0x10] sm:$0xf]
      %v1094 = vld [vmem:[%s611 + $0x18] sm:$0xf]
      %v1095 = vld [vmem:[%s611 + $0x1c] sm:$0xf]
      %v1096 = vld [vmem:[%s611 + $0x24] sm:$0xf]
      %v1097 = vld [vmem:[%s611 + $0x28] sm:$0xf]
      %v1098 = vld [vmem:[%s611 + $0x30] sm:$0xf]
      %v1099 = vld [vmem:[%s611 + $0x34] sm:$0xf]
      %v1100 = vld [vmem:[%s611 + $0x3c] sm:$0xf]
      %v1101 = vld [vmem:[%s611 + $0x40] sm:$0xf]
      %v1102 = vld [vmem:[%s611 + $0x48] sm:$0xf]
      %v1103 = vld [vmem:[%s611 + $0x4c] sm:$0xf]
      %v1104 = vld [vmem:[%s611 + $0x54] sm:$0xf]
      %v1105 = vld [vmem:[%s611 + $0x58] sm:$0xf]
      %v1106 = vld [vmem:[%s611 + $0x8] sm:$0x1]
      %v1107 = vld [vmem:[%s611 + $0x14] sm:$0x1]
      %v1108 = vld [vmem:[%s611 + $0x20] sm:$0x1]
      %v1109 = vld [vmem:[%s611 + $0x2c] sm:$0x1]
      %v1110 = vld [vmem:[%s611 + $0x38] sm:$0x1]
      %v1111 = vld [vmem:[%s611 + $0x44] sm:$0x1]
      %v1112 = vld [vmem:[%s611 + $0x50] sm:$0x1]
      %v1113 = vld [vmem:[%s611 + $0x5c] sm:$0x1]
      %v1115 = vshrl.u32 %v1090, 16
      %v1117 = vrot.slane %v1115, 4
      %v1118 = vshll.u32 %v1090, 16
      %v1120 = vrot.slane %v1118, 5
      %v1121 = vor.u32 %v1117, %v1120
      %v1122 = vrot.slane %v1121, 4
      %v1124 = vshll.u32 %v1091, 16
      %v1126 = vrot.slane %v1124, 5
      %v1127 = vsel %vm806, %v1122, %v1126
      %v1128 = vshrl.u32 %v1091, 16
      %v1130 = vrot.slane %v1128, 4
      %v1131 = vor.u32 %v1130, %v1126
      %v1132 = vrot.slane %v1131, 4
      %v1134 = vshll.u32 %v1106, 16
      %v1136 = vrot.slane %v1134, 5
      %v1137 = vsel %vm806, %v1132, %v1136
      %v1139 = vshrl.u32 %v1092, 16
      %v1141 = vrot.slane %v1139, 4
      %v1142 = vshll.u32 %v1092, 16
      %v1144 = vrot.slane %v1142, 5
      %v1145 = vor.u32 %v1141, %v1144
      %v1146 = vrot.slane %v1145, 4
      %v1148 = vshll.u32 %v1093, 16
      %v1150 = vrot.slane %v1148, 5
      %v1151 = vsel %vm806, %v1146, %v1150
      %v1152 = vshrl.u32 %v1093, 16
      %v1154 = vrot.slane %v1152, 4
      %v1155 = vor.u32 %v1154, %v1150
      %v1156 = vrot.slane %v1155, 4
      %v1158 = vshll.u32 %v1107, 16
      %v1160 = vrot.slane %v1158, 5
      %v1161 = vsel %vm806, %v1156, %v1160
      %v1163 = vshrl.u32 %v1094, 16
      %v1165 = vrot.slane %v1163, 4
      %v1166 = vshll.u32 %v1094, 16
      %v1168 = vrot.slane %v1166, 5
      %v1169 = vor.u32 %v1165, %v1168
      %v1170 = vrot.slane %v1169, 4
      %v1172 = vshll.u32 %v1095, 16
      %v1174 = vrot.slane %v1172, 5
      %v1175 = vsel %vm806, %v1170, %v1174
      %v1176 = vshrl.u32 %v1095, 16
      %v1178 = vrot.slane %v1176, 4
      %v1179 = vor.u32 %v1178, %v1174
      %v1180 = vrot.slane %v1179, 4
      %v1182 = vshll.u32 %v1108, 16
      %v1184 = vrot.slane %v1182, 5
      %v1185 = vsel %vm806, %v1180, %v1184
      %v1187 = vshrl.u32 %v1096, 16
      %v1189 = vrot.slane %v1187, 4
      %v1190 = vshll.u32 %v1096, 16
      %v1192 = vrot.slane %v1190, 5
      %v1193 = vor.u32 %v1189, %v1192
      %v1194 = vrot.slane %v1193, 4
      %v1196 = vshll.u32 %v1097, 16
      %v1198 = vrot.slane %v1196, 5
      %v1199 = vsel %vm806, %v1194, %v1198
      %v1200 = vshrl.u32 %v1097, 16
      %v1202 = vrot.slane %v1200, 4
      %v1203 = vor.u32 %v1202, %v1198
      %v1204 = vrot.slane %v1203, 4
      %v1206 = vshll.u32 %v1109, 16
      %v1208 = vrot.slane %v1206, 5
      %v1209 = vsel %vm806, %v1204, %v1208
      %v1211 = vshrl.u32 %v1098, 16
      %v1213 = vrot.slane %v1211, 4
      %v1214 = vshll.u32 %v1098, 16
      %v1216 = vrot.slane %v1214, 5
      %v1217 = vor.u32 %v1213, %v1216
      %v1218 = vrot.slane %v1217, 4
      %v1220 = vshll.u32 %v1099, 16
      %v1222 = vrot.slane %v1220, 5
      %v1223 = vsel %vm806, %v1218, %v1222
      %v1224 = vshrl.u32 %v1099, 16
      %v1226 = vrot.slane %v1224, 4
      %v1227 = vor.u32 %v1226, %v1222
      %v1228 = vrot.slane %v1227, 4
      %v1230 = vshll.u32 %v1110, 16
      %v1232 = vrot.slane %v1230, 5
      %v1233 = vsel %vm806, %v1228, %v1232
      %v1235 = vshrl.u32 %v1100, 16
      %v1237 = vrot.slane %v1235, 4
      %v1238 = vshll.u32 %v1100, 16
      %v1240 = vrot.slane %v1238, 5
      %v1241 = vor.u32 %v1237, %v1240
      %v1242 = vrot.slane %v1241, 4
      %v1244 = vshll.u32 %v1101, 16
      %v1246 = vrot.slane %v1244, 5
      %v1247 = vsel %vm806, %v1242, %v1246
      %v1248 = vshrl.u32 %v1101, 16
      %v1250 = vrot.slane %v1248, 4
      %v1251 = vor.u32 %v1250, %v1246
      %v1252 = vrot.slane %v1251, 4
      %v1254 = vshll.u32 %v1111, 16
      %v1256 = vrot.slane %v1254, 5
      %v1257 = vsel %vm806, %v1252, %v1256
      %v1259 = vshrl.u32 %v1102, 16
      %v1261 = vrot.slane %v1259, 4
      %v1262 = vshll.u32 %v1102, 16
      %v1264 = vrot.slane %v1262, 5
      %v1265 = vor.u32 %v1261, %v1264
      %v1266 = vrot.slane %v1265, 4
      %v1268 = vshll.u32 %v1103, 16
      %v1270 = vrot.slane %v1268, 5
      %v1271 = vsel %vm806, %v1266, %v1270
      %v1272 = vshrl.u32 %v1103, 16
      %v1274 = vrot.slane %v1272, 4
      %v1275 = vor.u32 %v1274, %v1270
      %v1276 = vrot.slane %v1275, 4
      %v1278 = vshll.u32 %v1112, 16
      %v1280 = vrot.slane %v1278, 5
      %v1281 = vsel %vm806, %v1276, %v1280
      %v1283 = vshrl.u32 %v1104, 16
      %v1285 = vrot.slane %v1283, 4
      %v1286 = vshll.u32 %v1104, 16
      %v1288 = vrot.slane %v1286, 5
      %v1289 = vor.u32 %v1285, %v1288
      %v1290 = vrot.slane %v1289, 4
      %v1292 = vshll.u32 %v1105, 16
      %v1294 = vrot.slane %v1292, 5
      %v1295 = vsel %vm806, %v1290, %v1294
      %v1296 = vshrl.u32 %v1105, 16
      %v1298 = vrot.slane %v1296, 4
      %v1299 = vor.u32 %v1298, %v1294
      %v1300 = vrot.slane %v1299, 4
      %v1302 = vshll.u32 %v1113, 16
      %v1304 = vrot.slane %v1302, 5
      %v1305 = vsel %vm806, %v1300, %v1304
      %v1306 = vld [vmem:[%s611] sm:$0xe]
      %v1307 = vld [vmem:[%s611 + $0xc] sm:$0xe]
      %v1308 = vld [vmem:[%s611 + $0x18] sm:$0xe]
      %v1309 = vld [vmem:[%s611 + $0x24] sm:$0xe]
      %v1310 = vld [vmem:[%s611 + $0x30] sm:$0xe]
      %v1311 = vld [vmem:[%s611 + $0x3c] sm:$0xe]
      %v1312 = vld [vmem:[%s611 + $0x48] sm:$0xe]
      %v1313 = vld [vmem:[%s611 + $0x54] sm:$0xe]
      %v1338 = vrot.slane %v1306, 5
      %v1339 = vrot.slane %v1338, 4
      %v1340 = vrot.slane %v1091, 5
      %v1341 = vsel %vm1033, %v1339, %v1340
      %v1342 = vrot.slane %v1340, 4
      %v1343 = vrot.slane %v1106, 5
      %v1344 = vsel %vm1033, %v1342, %v1343
      %v1345 = vrot.slane %v1307, 5
      %v1346 = vrot.slane %v1345, 4
      %v1347 = vrot.slane %v1093, 5
      %v1348 = vsel %vm1033, %v1346, %v1347
      %v1349 = vrot.slane %v1347, 4
      %v1350 = vrot.slane %v1107, 5
      %v1351 = vsel %vm1033, %v1349, %v1350
      %v1352 = vrot.slane %v1308, 5
      %v1353 = vrot.slane %v1352, 4
      %v1354 = vrot.slane %v1095, 5
      %v1355 = vsel %vm1033, %v1353, %v1354
      %v1356 = vrot.slane %v1354, 4
      %v1357 = vrot.slane %v1108, 5
      %v1358 = vsel %vm1033, %v1356, %v1357
      %v1359 = vrot.slane %v1309, 5
      %v1360 = vrot.slane %v1359, 4
      %v1361 = vrot.slane %v1097, 5
      %v1362 = vsel %vm1033, %v1360, %v1361
      %v1363 = vrot.slane %v1361, 4
      %v1364 = vrot.slane %v1109, 5
      %v1365 = vsel %vm1033, %v1363, %v1364
      %v1366 = vrot.slane %v1310, 5
      %v1367 = vrot.slane %v1366, 4
      %v1368 = vrot.slane %v1099, 5
      %v1369 = vsel %vm1033, %v1367, %v1368
      %v1370 = vrot.slane %v1368, 4
      %v1371 = vrot.slane %v1110, 5
      %v1372 = vsel %vm1033, %v1370, %v1371
      %v1373 = vrot.slane %v1311, 5
      %v1374 = vrot.slane %v1373, 4
      %v1375 = vrot.slane %v1101, 5
      %v1376 = vsel %vm1033, %v1374, %v1375
      %v1377 = vrot.slane %v1375, 4
      %v1378 = vrot.slane %v1111, 5
      %v1379 = vsel %vm1033, %v1377, %v1378
      %v1380 = vrot.slane %v1312, 5
      %v1381 = vrot.slane %v1380, 4
      %v1382 = vrot.slane %v1103, 5
      %v1383 = vsel %vm1033, %v1381, %v1382
      %v1384 = vrot.slane %v1382, 4
      %v1385 = vrot.slane %v1112, 5
      %v1386 = vsel %vm1033, %v1384, %v1385
      %v1387 = vrot.slane %v1313, 5
      %v1388 = vrot.slane %v1387, 4
      %v1389 = vrot.slane %v1105, 5
      %v1390 = vsel %vm1033, %v1388, %v1389
      %v1391 = vrot.slane %v1389, 4
      %v1392 = vrot.slane %v1113, 5
      %v1393 = vsel %vm1033, %v1391, %v1392
      %s1394 = scalar_lea.vmem [#allocation2], 24
      %v1395 = vld [vmem:[%s1394] sm:$0xf]
      %v1396 = vld [vmem:[%s1394 + $0x4] sm:$0xf]
      %v1397 = vld [vmem:[%s1394 + $0xc] sm:$0xf]
      %v1398 = vld [vmem:[%s1394 + $0x10] sm:$0xf]
      %v1399 = vld [vmem:[%s1394 + $0x18] sm:$0xf]
      %v1400 = vld [vmem:[%s1394 + $0x1c] sm:$0xf]
      %v1401 = vld [vmem:[%s1394 + $0x24] sm:$0xf]
      %v1402 = vld [vmem:[%s1394 + $0x28] sm:$0xf]
      %v1403 = vld [vmem:[%s1394 + $0x30] sm:$0xf]
      %v1404 = vld [vmem:[%s1394 + $0x34] sm:$0xf]
      %v1405 = vld [vmem:[%s1394 + $0x3c] sm:$0xf]
      %v1406 = vld [vmem:[%s1394 + $0x40] sm:$0xf]
      %v1407 = vld [vmem:[%s1394 + $0x48] sm:$0xf]
      %v1408 = vld [vmem:[%s1394 + $0x4c] sm:$0xf]
      %v1409 = vld [vmem:[%s1394 + $0x54] sm:$0xf]
      %v1410 = vld [vmem:[%s1394 + $0x58] sm:$0xf]
      %v1411 = vld [vmem:[%s1394 + $0x8] sm:$0x1]
      %v1412 = vld [vmem:[%s1394 + $0x14] sm:$0x1]
      %v1413 = vld [vmem:[%s1394 + $0x20] sm:$0x1]
      %v1414 = vld [vmem:[%s1394 + $0x2c] sm:$0x1]
      %v1415 = vld [vmem:[%s1394 + $0x38] sm:$0x1]
      %v1416 = vld [vmem:[%s1394 + $0x44] sm:$0x1]
      %v1417 = vld [vmem:[%s1394 + $0x50] sm:$0x1]
      %v1418 = vld [vmem:[%s1394 + $0x5c] sm:$0x1]
      %v1420 = vshrl.u32 %v1395, 16
      %v1422 = vrot.slane %v1420, 4
      %v1423 = vshll.u32 %v1395, 16
      %v1425 = vrot.slane %v1423, 5
      %v1426 = vor.u32 %v1422, %v1425
      %v1427 = vrot.slane %v1426, 4
      %v1429 = vshll.u32 %v1396, 16
      %v1431 = vrot.slane %v1429, 5
      %v1432 = vsel %vm806, %v1427, %v1431
      %v1433 = vshrl.u32 %v1396, 16
      %v1435 = vrot.slane %v1433, 4
      %v1436 = vor.u32 %v1435, %v1431
      %v1437 = vrot.slane %v1436, 4
      %v1439 = vshll.u32 %v1411, 16
      %v1441 = vrot.slane %v1439, 5
      %v1442 = vsel %vm806, %v1437, %v1441
      %v1444 = vshrl.u32 %v1397, 16
      %v1446 = vrot.slane %v1444, 4
      %v1447 = vshll.u32 %v1397, 16
      %v1449 = vrot.slane %v1447, 5
      %v1450 = vor.u32 %v1446, %v1449
      %v1451 = vrot.slane %v1450, 4
      %v1453 = vshll.u32 %v1398, 16
      %v1455 = vrot.slane %v1453, 5
      %v1456 = vsel %vm806, %v1451, %v1455
      %v1457 = vshrl.u32 %v1398, 16
      %v1459 = vrot.slane %v1457, 4
      %v1460 = vor.u32 %v1459, %v1455
      %v1461 = vrot.slane %v1460, 4
      %v1463 = vshll.u32 %v1412, 16
      %v1465 = vrot.slane %v1463, 5
      %v1466 = vsel %vm806, %v1461, %v1465
      %v1468 = vshrl.u32 %v1399, 16
      %v1470 = vrot.slane %v1468, 4
      %v1471 = vshll.u32 %v1399, 16
      %v1473 = vrot.slane %v1471, 5
      %v1474 = vor.u32 %v1470, %v1473
      %v1475 = vrot.slane %v1474, 4
      %v1477 = vshll.u32 %v1400, 16
      %v1479 = vrot.slane %v1477, 5
      %v1480 = vsel %vm806, %v1475, %v1479
      %v1481 = vshrl.u32 %v1400, 16
      %v1483 = vrot.slane %v1481, 4
      %v1484 = vor.u32 %v1483, %v1479
      %v1485 = vrot.slane %v1484, 4
      %v1487 = vshll.u32 %v1413, 16
      %v1489 = vrot.slane %v1487, 5
      %v1490 = vsel %vm806, %v1485, %v1489
      %v1492 = vshrl.u32 %v1401, 16
      %v1494 = vrot.slane %v1492, 4
      %v1495 = vshll.u32 %v1401, 16
      %v1497 = vrot.slane %v1495, 5
      %v1498 = vor.u32 %v1494, %v1497
      %v1499 = vrot.slane %v1498, 4
      %v1501 = vshll.u32 %v1402, 16
      %v1503 = vrot.slane %v1501, 5
      %v1504 = vsel %vm806, %v1499, %v1503
      %v1505 = vshrl.u32 %v1402, 16
      %v1507 = vrot.slane %v1505, 4
      %v1508 = vor.u32 %v1507, %v1503
      %v1509 = vrot.slane %v1508, 4
      %v1511 = vshll.u32 %v1414, 16
      %v1513 = vrot.slane %v1511, 5
      %v1514 = vsel %vm806, %v1509, %v1513
      %v1516 = vshrl.u32 %v1403, 16
      %v1518 = vrot.slane %v1516, 4
      %v1519 = vshll.u32 %v1403, 16
      %v1521 = vrot.slane %v1519, 5
      %v1522 = vor.u32 %v1518, %v1521
      %v1523 = vrot.slane %v1522, 4
      %v1525 = vshll.u32 %v1404, 16
      %v1527 = vrot.slane %v1525, 5
      %v1528 = vsel %vm806, %v1523, %v1527
      %v1529 = vshrl.u32 %v1404, 16
      %v1531 = vrot.slane %v1529, 4
      %v1532 = vor.u32 %v1531, %v1527
      %v1533 = vrot.slane %v1532, 4
      %v1535 = vshll.u32 %v1415, 16
      %v1537 = vrot.slane %v1535, 5
      %v1538 = vsel %vm806, %v1533, %v1537
      %v1540 = vshrl.u32 %v1405, 16
      %v1542 = vrot.slane %v1540, 4
      %v1543 = vshll.u32 %v1405, 16
      %v1545 = vrot.slane %v1543, 5
      %v1546 = vor.u32 %v1542, %v1545
      %v1547 = vrot.slane %v1546, 4
      %v1549 = vshll.u32 %v1406, 16
      %v1551 = vrot.slane %v1549, 5
      %v1552 = vsel %vm806, %v1547, %v1551
      %v1553 = vshrl.u32 %v1406, 16
      %v1555 = vrot.slane %v1553, 4
      %v1556 = vor.u32 %v1555, %v1551
      %v1557 = vrot.slane %v1556, 4
      %v1559 = vshll.u32 %v1416, 16
      %v1561 = vrot.slane %v1559, 5
      %v1562 = vsel %vm806, %v1557, %v1561
      %v1564 = vshrl.u32 %v1407, 16
      %v1566 = vrot.slane %v1564, 4
      %v1567 = vshll.u32 %v1407, 16
      %v1569 = vrot.slane %v1567, 5
      %v1570 = vor.u32 %v1566, %v1569
      %v1571 = vrot.slane %v1570, 4
      %v1573 = vshll.u32 %v1408, 16
      %v1575 = vrot.slane %v1573, 5
      %v1576 = vsel %vm806, %v1571, %v1575
      %v1577 = vshrl.u32 %v1408, 16
      %v1579 = vrot.slane %v1577, 4
      %v1580 = vor.u32 %v1579, %v1575
      %v1581 = vrot.slane %v1580, 4
      %v1583 = vshll.u32 %v1417, 16
      %v1585 = vrot.slane %v1583, 5
      %v1586 = vsel %vm806, %v1581, %v1585
      %v1588 = vshrl.u32 %v1409, 16
      %v1590 = vrot.slane %v1588, 4
      %v1591 = vshll.u32 %v1409, 16
      %v1593 = vrot.slane %v1591, 5
      %v1594 = vor.u32 %v1590, %v1593
      %v1595 = vrot.slane %v1594, 4
      %v1597 = vshll.u32 %v1410, 16
      %v1599 = vrot.slane %v1597, 5
      %v1600 = vsel %vm806, %v1595, %v1599
      %v1601 = vshrl.u32 %v1410, 16
      %v1603 = vrot.slane %v1601, 4
      %v1604 = vor.u32 %v1603, %v1599
      %v1605 = vrot.slane %v1604, 4
      %v1607 = vshll.u32 %v1418, 16
      %v1609 = vrot.slane %v1607, 5
      %v1610 = vsel %vm806, %v1605, %v1609
      %v1611 = vld [vmem:[%s1394] sm:$0xe]
      %v1612 = vld [vmem:[%s1394 + $0xc] sm:$0xe]
      %v1613 = vld [vmem:[%s1394 + $0x18] sm:$0xe]
      %v1614 = vld [vmem:[%s1394 + $0x24] sm:$0xe]
      %v1615 = vld [vmem:[%s1394 + $0x30] sm:$0xe]
      %v1616 = vld [vmem:[%s1394 + $0x3c] sm:$0xe]
      %v1617 = vld [vmem:[%s1394 + $0x48] sm:$0xe]
      %v1618 = vld [vmem:[%s1394 + $0x54] sm:$0xe]
      %v1643 = vrot.slane %v1611, 5
      %v1644 = vrot.slane %v1643, 4
      %v1645 = vrot.slane %v1396, 5
      %v1646 = vsel %vm1033, %v1644, %v1645
      %v1647 = vrot.slane %v1645, 4
      %v1648 = vrot.slane %v1411, 5
      %v1649 = vsel %vm1033, %v1647, %v1648
      %v1650 = vrot.slane %v1612, 5
      %v1651 = vrot.slane %v1650, 4
      %v1652 = vrot.slane %v1398, 5
      %v1653 = vsel %vm1033, %v1651, %v1652
      %v1654 = vrot.slane %v1652, 4
      %v1655 = vrot.slane %v1412, 5
      %v1656 = vsel %vm1033, %v1654, %v1655
      %v1657 = vrot.slane %v1613, 5
      %v1658 = vrot.slane %v1657, 4
      %v1659 = vrot.slane %v1400, 5
      %v1660 = vsel %vm1033, %v1658, %v1659
      %v1661 = vrot.slane %v1659, 4
      %v1662 = vrot.slane %v1413, 5
      %v1663 = vsel %vm1033, %v1661, %v1662
      %v1664 = vrot.slane %v1614, 5
      %v1665 = vrot.slane %v1664, 4
      %v1666 = vrot.slane %v1402, 5
      %v1667 = vsel %vm1033, %v1665, %v1666
      %v1668 = vrot.slane %v1666, 4
      %v1669 = vrot.slane %v1414, 5
      %v1670 = vsel %vm1033, %v1668, %v1669
      %v1671 = vrot.slane %v1615, 5
      %v1672 = vrot.slane %v1671, 4
      %v1673 = vrot.slane %v1404, 5
      %v1674 = vsel %vm1033, %v1672, %v1673
      %v1675 = vrot.slane %v1673, 4
      %v1676 = vrot.slane %v1415, 5
      %v1677 = vsel %vm1033, %v1675, %v1676
      %v1678 = vrot.slane %v1616, 5
      %v1679 = vrot.slane %v1678, 4
      %v1680 = vrot.slane %v1406, 5
      %v1681 = vsel %vm1033, %v1679, %v1680
      %v1682 = vrot.slane %v1680, 4
      %v1683 = vrot.slane %v1416, 5
      %v1684 = vsel %vm1033, %v1682, %v1683
      %v1685 = vrot.slane %v1617, 5
      %v1686 = vrot.slane %v1685, 4
      %v1687 = vrot.slane %v1408, 5
      %v1688 = vsel %vm1033, %v1686, %v1687
      %v1689 = vrot.slane %v1687, 4
      %v1690 = vrot.slane %v1417, 5
      %v1691 = vsel %vm1033, %v1689, %v1690
      %v1692 = vrot.slane %v1618, 5
      %v1693 = vrot.slane %v1692, 4
      %v1694 = vrot.slane %v1410, 5
      %v1695 = vsel %vm1033, %v1693, %v1694
      %v1696 = vrot.slane %v1694, 4
      %v1697 = vrot.slane %v1418, 5
      %v1698 = vsel %vm1033, %v1696, %v1697
      %v1707 = vunpack.c.l.b16 %v780
      %v1708 = vunpack.c.l.b16 %v781
      %v1709 = vunpack.c.l.b16 %v782
      %v1710 = vunpack.c.l.b16 %v783
      %v1711 = vunpack.c.l.b16 %v784
      %v1712 = vunpack.c.l.b16 %v785
      %v1713 = vunpack.c.l.b16 %v786
      %v1714 = vunpack.c.l.b16 %v787
      %v1715 = vunpack.c.l.b16 %v788
      %v1716 = vunpack.c.l.b16 %v789
      %v1717 = vunpack.c.l.b16 %v790
      %v1718 = vunpack.c.l.b16 %v791
      %v1719 = vunpack.c.l.b16 %v792
      %v1720 = vunpack.c.l.b16 %v793
      %v1721 = vunpack.c.l.b16 %v794
      %v1722 = vunpack.c.l.b16 %v795
      %v1723 = vpack.c.b16 %v1708, %v1707
      %v1724 = vpack.c.b16 %v1710, %v1709
      %v1725 = vpack.c.b16 %v1712, %v1711
      %v1726 = vpack.c.b16 %v1714, %v1713
      %v1727 = vpack.c.b16 %v1716, %v1715
      %v1728 = vpack.c.b16 %v1718, %v1717
      %v1729 = vpack.c.b16 %v1720, %v1719
      %v1730 = vpack.c.b16 %v1722, %v1721
      %v1739 = vunpack.c.l.b16 %v820
      %v1740 = vunpack.c.l.b16 %v830
      %v1741 = vunpack.c.l.b16 %v844
      %v1742 = vunpack.c.l.b16 %v854
      %v1743 = vunpack.c.l.b16 %v868
      %v1744 = vunpack.c.l.b16 %v878
      %v1745 = vunpack.c.l.b16 %v892
      %v1746 = vunpack.c.l.b16 %v902
      %v1747 = vunpack.c.l.b16 %v916
      %v1748 = vunpack.c.l.b16 %v926
      %v1749 = vunpack.c.l.b16 %v940
      %v1750 = vunpack.c.l.b16 %v950
      %v1751 = vunpack.c.l.b16 %v964
      %v1752 = vunpack.c.l.b16 %v974
      %v1753 = vunpack.c.l.b16 %v988
      %v1754 = vunpack.c.l.b16 %v998
      %v1755 = vpack.c.b16 %v1740, %v1739
      %v1756 = vpack.c.b16 %v1742, %v1741
      %v1757 = vpack.c.b16 %v1744, %v1743
      %v1758 = vpack.c.b16 %v1746, %v1745
      %v1759 = vpack.c.b16 %v1748, %v1747
      %v1760 = vpack.c.b16 %v1750, %v1749
      %v1761 = vpack.c.b16 %v1752, %v1751
      %v1762 = vpack.c.b16 %v1754, %v1753
      %v1771 = vunpack.c.l.b16 %v1037
      %v1772 = vunpack.c.l.b16 %v1040
      %v1773 = vunpack.c.l.b16 %v1044
      %v1774 = vunpack.c.l.b16 %v1047
      %v1775 = vunpack.c.l.b16 %v1051
      %v1776 = vunpack.c.l.b16 %v1054
      %v1777 = vunpack.c.l.b16 %v1058
      %v1778 = vunpack.c.l.b16 %v1061
      %v1779 = vunpack.c.l.b16 %v1065
      %v1780 = vunpack.c.l.b16 %v1068
      %v1781 = vunpack.c.l.b16 %v1072
      %v1782 = vunpack.c.l.b16 %v1075
      %v1783 = vunpack.c.l.b16 %v1079
      %v1784 = vunpack.c.l.b16 %v1082
      %v1785 = vunpack.c.l.b16 %v1086
      %v1786 = vunpack.c.l.b16 %v1089
      %v1787 = vpack.c.b16 %v1772, %v1771
      %v1788 = vpack.c.b16 %v1774, %v1773
      %v1789 = vpack.c.b16 %v1776, %v1775
      %v1790 = vpack.c.b16 %v1778, %v1777
      %v1791 = vpack.c.b16 %v1780, %v1779
      %v1792 = vpack.c.b16 %v1782, %v1781
      %v1793 = vpack.c.b16 %v1784, %v1783
      %v1794 = vpack.c.b16 %v1786, %v1785
      %v1811 = vunpack.c.l.b16 %v1090
      %v1812 = vunpack.c.l.b16 %v1091
      %v1813 = vunpack.c.l.b16 %v1092
      %v1814 = vunpack.c.l.b16 %v1093
      %v1815 = vunpack.c.l.b16 %v1094
      %v1816 = vunpack.c.l.b16 %v1095
      %v1817 = vunpack.c.l.b16 %v1096
      %v1818 = vunpack.c.l.b16 %v1097
      %v1819 = vunpack.c.l.b16 %v1098
      %v1820 = vunpack.c.l.b16 %v1099
      %v1821 = vunpack.c.l.b16 %v1100
      %v1822 = vunpack.c.l.b16 %v1101
      %v1823 = vunpack.c.l.b16 %v1102
      %v1824 = vunpack.c.l.b16 %v1103
      %v1825 = vunpack.c.l.b16 %v1104
      %v1826 = vunpack.c.l.b16 %v1105
      %v1827 = vpack.c.b16 %v1812, %v1811
      %v1828 = vpack.c.b16 %v1814, %v1813
      %v1829 = vpack.c.b16 %v1816, %v1815
      %v1830 = vpack.c.b16 %v1818, %v1817
      %v1831 = vpack.c.b16 %v1820, %v1819
      %v1832 = vpack.c.b16 %v1822, %v1821
      %v1833 = vpack.c.b16 %v1824, %v1823
      %v1834 = vpack.c.b16 %v1826, %v1825
      %v1843 = vunpack.c.l.b16 %v1127
      %v1844 = vunpack.c.l.b16 %v1137
      %v1845 = vunpack.c.l.b16 %v1151
      %v1846 = vunpack.c.l.b16 %v1161
      %v1847 = vunpack.c.l.b16 %v1175
      %v1848 = vunpack.c.l.b16 %v1185
      %v1849 = vunpack.c.l.b16 %v1199
      %v1850 = vunpack.c.l.b16 %v1209
      %v1851 = vunpack.c.l.b16 %v1223
      %v1852 = vunpack.c.l.b16 %v1233
      %v1853 = vunpack.c.l.b16 %v1247
      %v1854 = vunpack.c.l.b16 %v1257
      %v1855 = vunpack.c.l.b16 %v1271
      %v1856 = vunpack.c.l.b16 %v1281
      %v1857 = vunpack.c.l.b16 %v1295
      %v1858 = vunpack.c.l.b16 %v1305
      %v1859 = vpack.c.b16 %v1844, %v1843
      %v1860 = vpack.c.b16 %v1846, %v1845
      %v1861 = vpack.c.b16 %v1848, %v1847
      %v1862 = vpack.c.b16 %v1850, %v1849
      %v1863 = vpack.c.b16 %v1852, %v1851
      %v1864 = vpack.c.b16 %v1854, %v1853
      %v1865 = vpack.c.b16 %v1856, %v1855
      %v1866 = vpack.c.b16 %v1858, %v1857
      %v1875 = vunpack.c.l.b16 %v1341
      %v1876 = vunpack.c.l.b16 %v1344
      %v1877 = vunpack.c.l.b16 %v1348
      %v1878 = vunpack.c.l.b16 %v1351
      %v1879 = vunpack.c.l.b16 %v1355
      %v1880 = vunpack.c.l.b16 %v1358
      %v1881 = vunpack.c.l.b16 %v1362
      %v1882 = vunpack.c.l.b16 %v1365
      %v1883 = vunpack.c.l.b16 %v1369
      %v1884 = vunpack.c.l.b16 %v1372
      %v1885 = vunpack.c.l.b16 %v1376
      %v1886 = vunpack.c.l.b16 %v1379
      %v1887 = vunpack.c.l.b16 %v1383
      %v1888 = vunpack.c.l.b16 %v1386
      %v1889 = vunpack.c.l.b16 %v1390
      %v1890 = vunpack.c.l.b16 %v1393
      %v1891 = vpack.c.b16 %v1876, %v1875
      %v1892 = vpack.c.b16 %v1878, %v1877
      %v1893 = vpack.c.b16 %v1880, %v1879
      %v1894 = vpack.c.b16 %v1882, %v1881
      %v1895 = vpack.c.b16 %v1884, %v1883
      %v1896 = vpack.c.b16 %v1886, %v1885
      %v1897 = vpack.c.b16 %v1888, %v1887
      %v1898 = vpack.c.b16 %v1890, %v1889
      %v1915 = vunpack.c.l.b16 %v1395
      %v1916 = vunpack.c.l.b16 %v1396
      %v1917 = vunpack.c.l.b16 %v1397
      %v1918 = vunpack.c.l.b16 %v1398
      %v1919 = vunpack.c.l.b16 %v1399
      %v1920 = vunpack.c.l.b16 %v1400
      %v1921 = vunpack.c.l.b16 %v1401
      %v1922 = vunpack.c.l.b16 %v1402
      %v1923 = vunpack.c.l.b16 %v1403
      %v1924 = vunpack.c.l.b16 %v1404
      %v1925 = vunpack.c.l.b16 %v1405
      %v1926 = vunpack.c.l.b16 %v1406
      %v1927 = vunpack.c.l.b16 %v1407
      %v1928 = vunpack.c.l.b16 %v1408
      %v1929 = vunpack.c.l.b16 %v1409
      %v1930 = vunpack.c.l.b16 %v1410
      %v1931 = vpack.c.b16 %v1916, %v1915
      %v1932 = vpack.c.b16 %v1918, %v1917
      %v1933 = vpack.c.b16 %v1920, %v1919
      %v1934 = vpack.c.b16 %v1922, %v1921
      %v1935 = vpack.c.b16 %v1924, %v1923
      %v1936 = vpack.c.b16 %v1926, %v1925
      %v1937 = vpack.c.b16 %v1928, %v1927
      %v1938 = vpack.c.b16 %v1930, %v1929
      %v1947 = vunpack.c.l.b16 %v1432
      %v1948 = vunpack.c.l.b16 %v1442
      %v1949 = vunpack.c.l.b16 %v1456
      %v1950 = vunpack.c.l.b16 %v1466
      %v1951 = vunpack.c.l.b16 %v1480
      %v1952 = vunpack.c.l.b16 %v1490
      %v1953 = vunpack.c.l.b16 %v1504
      %v1954 = vunpack.c.l.b16 %v1514
      %v1955 = vunpack.c.l.b16 %v1528
      %v1956 = vunpack.c.l.b16 %v1538
      %v1957 = vunpack.c.l.b16 %v1552
      %v1958 = vunpack.c.l.b16 %v1562
      %v1959 = vunpack.c.l.b16 %v1576
      %v1960 = vunpack.c.l.b16 %v1586
      %v1961 = vunpack.c.l.b16 %v1600
      %v1962 = vunpack.c.l.b16 %v1610
      %v1963 = vpack.c.b16 %v1948, %v1947
      %v1964 = vpack.c.b16 %v1950, %v1949
      %v1965 = vpack.c.b16 %v1952, %v1951
      %v1966 = vpack.c.b16 %v1954, %v1953
      %v1967 = vpack.c.b16 %v1956, %v1955
      %v1968 = vpack.c.b16 %v1958, %v1957
      %v1969 = vpack.c.b16 %v1960, %v1959
      %v1970 = vpack.c.b16 %v1962, %v1961
      %v1979 = vunpack.c.l.b16 %v1646
      %v1980 = vunpack.c.l.b16 %v1649
      %v1981 = vunpack.c.l.b16 %v1653
      %v1982 = vunpack.c.l.b16 %v1656
      %v1983 = vunpack.c.l.b16 %v1660
      %v1984 = vunpack.c.l.b16 %v1663
      %v1985 = vunpack.c.l.b16 %v1667
      %v1986 = vunpack.c.l.b16 %v1670
      %v1987 = vunpack.c.l.b16 %v1674
      %v1988 = vunpack.c.l.b16 %v1677
      %v1989 = vunpack.c.l.b16 %v1681
      %v1990 = vunpack.c.l.b16 %v1684
      %v1991 = vunpack.c.l.b16 %v1688
      %v1992 = vunpack.c.l.b16 %v1691
      %v1993 = vunpack.c.l.b16 %v1695
      %v1994 = vunpack.c.l.b16 %v1698
      %v1995 = vpack.c.b16 %v1980, %v1979
      %v1996 = vpack.c.b16 %v1982, %v1981
      %v1997 = vpack.c.b16 %v1984, %v1983
      %v1998 = vpack.c.b16 %v1986, %v1985
      %v1999 = vpack.c.b16 %v1988, %v1987
      %v2000 = vpack.c.b16 %v1990, %v1989
      %v2001 = vpack.c.b16 %v1992, %v1991
      %v2002 = vpack.c.b16 %v1994, %v1993
      %v2011 = vld [vmem:[%s1] sm:$0xf]
      %v2012 = vld [vmem:[%s1 + $0x4] sm:$0xf]
      %v2013 = vld [vmem:[%s1 + $0x8] sm:$0xf]
      %v2014 = vld [vmem:[%s1 + $0xc] sm:$0xf]
      %v2015 = vld [vmem:[%s1 + $0x10] sm:$0xf]
      %v2016 = vld [vmem:[%s1 + $0x14] sm:$0xf]
      %v2017 = vld [vmem:[%s1 + $0x18] sm:$0xf]
      %v2018 = vld [vmem:[%s1 + $0x1c] sm:$0xf]
      %v2019 = vld [vmem:[%s1 + $0x20] sm:$0xf]
      %v2020 = vld [vmem:[%s1 + $0x24] sm:$0xf]
      %v2021 = vld [vmem:[%s1 + $0x28] sm:$0xf]
      %v2022 = vld [vmem:[%s1 + $0x2c] sm:$0xf]
      %v2023 = vld [vmem:[%s1 + $0x30] sm:$0xf]
      %v2024 = vld [vmem:[%s1 + $0x34] sm:$0xf]
      %v2025 = vld [vmem:[%s1 + $0x38] sm:$0xf]
      %v2026 = vld [vmem:[%s1 + $0x3c] sm:$0xf]
      %v2027 = vld [vmem:[%s1 + $0x40] sm:$0xf]
      %v2028 = vld [vmem:[%s1 + $0x44] sm:$0xf]
      %v2029 = vld [vmem:[%s1 + $0x48] sm:$0xf]
      %v2030 = vld [vmem:[%s1 + $0x4c] sm:$0xf]
      %v2031 = vld [vmem:[%s1 + $0x50] sm:$0xf]
      %v2032 = vld [vmem:[%s1 + $0x54] sm:$0xf]
      %v2033 = vld [vmem:[%s1 + $0x58] sm:$0xf]
      %v2034 = vld [vmem:[%s1 + $0x5c] sm:$0xf]
      %v2035 = vld [vmem:[%s1 + $0x60] sm:$0xf]
      %v2036 = vld [vmem:[%s1 + $0x64] sm:$0xf]
      %v2037 = vld [vmem:[%s1 + $0x68] sm:$0xf]
      %v2038 = vld [vmem:[%s1 + $0x6c] sm:$0xf]
      %v2039 = vld [vmem:[%s1 + $0x70] sm:$0xf]
      %v2040 = vld [vmem:[%s1 + $0x74] sm:$0xf]
      %v2041 = vld [vmem:[%s1 + $0x78] sm:$0xf]
      %v2042 = vld [vmem:[%s1 + $0x7c] sm:$0xf]
      %v2043 = vld [vmem:[%s1 + $0x80] sm:$0xf]
      %v2044 = vld [vmem:[%s1 + $0x84] sm:$0xf]
      %v2045 = vld [vmem:[%s1 + $0x88] sm:$0xf]
      %v2046 = vld [vmem:[%s1 + $0x8c] sm:$0xf]
      %v2047 = vld [vmem:[%s1 + $0x90] sm:$0xf]
      %v2048 = vld [vmem:[%s1 + $0x94] sm:$0xf]
      %v2049 = vld [vmem:[%s1 + $0x98] sm:$0xf]
      %v2050 = vld [vmem:[%s1 + $0x9c] sm:$0xf]
      %v2051 = vld [vmem:[%s1 + $0xa0] sm:$0xf]
      %v2052 = vld [vmem:[%s1 + $0xa4] sm:$0xf]
      %v2053 = vld [vmem:[%s1 + $0xa8] sm:$0xf]
      %v2054 = vld [vmem:[%s1 + $0xac] sm:$0xf]
      %v2055 = vld [vmem:[%s1 + $0xb0] sm:$0xf]
      %v2056 = vld [vmem:[%s1 + $0xb4] sm:$0xf]
      %v2057 = vld [vmem:[%s1 + $0xb8] sm:$0xf]
      %v2058 = vld [vmem:[%s1 + $0xbc] sm:$0xf]
      %v2059 = vld [vmem:[%s1 + $0xc0] sm:$0xf]
      %v2060 = vld [vmem:[%s1 + $0xc4] sm:$0xf]
      %v2061 = vld [vmem:[%s1 + $0xc8] sm:$0xf]
      %v2062 = vld [vmem:[%s1 + $0xcc] sm:$0xf]
      %v2063 = vld [vmem:[%s1 + $0xd0] sm:$0xf]
      %v2064 = vld [vmem:[%s1 + $0xd4] sm:$0xf]
      %v2065 = vld [vmem:[%s1 + $0xd8] sm:$0xf]
      %v2066 = vld [vmem:[%s1 + $0xdc] sm:$0xf]
      %v2067 = vld [vmem:[%s1 + $0xe0] sm:$0xf]
      %v2068 = vld [vmem:[%s1 + $0xe4] sm:$0xf]
      %v2069 = vld [vmem:[%s1 + $0xe8] sm:$0xf]
      %v2070 = vld [vmem:[%s1 + $0xec] sm:$0xf]
      %v2071 = vld [vmem:[%s1 + $0xf0] sm:$0xf]
      %v2072 = vld [vmem:[%s1 + $0xf4] sm:$0xf]
      %v2073 = vld [vmem:[%s1 + $0xf8] sm:$0xf]
      %v2074 = vld [vmem:[%s1 + $0xfc] sm:$0xf]
      %v2075 = vld [vmem:[%s1 + $0x100] sm:$0xf]
      %v2076 = vld [vmem:[%s1 + $0x104] sm:$0xf]
      %v2077 = vld [vmem:[%s1 + $0x108] sm:$0xf]
      %v2078 = vld [vmem:[%s1 + $0x10c] sm:$0xf]
      %v2079 = vld [vmem:[%s1 + $0x110] sm:$0xf]
      %v2080 = vld [vmem:[%s1 + $0x114] sm:$0xf]
      %v2081 = vld [vmem:[%s1 + $0x118] sm:$0xf]
      %v2082 = vld [vmem:[%s1 + $0x11c] sm:$0xf]
      %v2083 = vld [vmem:[%s1 + $0x120] sm:$0xf]
      %v2084 = vld [vmem:[%s1 + $0x124] sm:$0xf]
      %v2085 = vld [vmem:[%s1 + $0x128] sm:$0xf]
      %v2086 = vld [vmem:[%s1 + $0x12c] sm:$0xf]
      %v2087 = vld [vmem:[%s1 + $0x130] sm:$0xf]
      %v2088 = vld [vmem:[%s1 + $0x134] sm:$0xf]
      %v2089 = vld [vmem:[%s1 + $0x138] sm:$0xf]
      %v2090 = vld [vmem:[%s1 + $0x13c] sm:$0xf]
      %v2091 = vld [vmem:[%s1 + $0x140] sm:$0xf]
      %v2092 = vld [vmem:[%s1 + $0x144] sm:$0xf]
      %v2093 = vld [vmem:[%s1 + $0x148] sm:$0xf]
      %v2094 = vld [vmem:[%s1 + $0x14c] sm:$0xf]
      %v2095 = vld [vmem:[%s1 + $0x150] sm:$0xf]
      %v2096 = vld [vmem:[%s1 + $0x154] sm:$0xf]
      %v2097 = vld [vmem:[%s1 + $0x158] sm:$0xf]
      %v2098 = vld [vmem:[%s1 + $0x15c] sm:$0xf]
      %v2099 = vld [vmem:[%s1 + $0x160] sm:$0xf]
      %v2100 = vld [vmem:[%s1 + $0x164] sm:$0xf]
      %v2101 = vld [vmem:[%s1 + $0x168] sm:$0xf]
      %v2102 = vld [vmem:[%s1 + $0x16c] sm:$0xf]
      %v2103 = vld [vmem:[%s1 + $0x170] sm:$0xf]
      %v2104 = vld [vmem:[%s1 + $0x174] sm:$0xf]
      %v2105 = vld [vmem:[%s1 + $0x178] sm:$0xf]
      %v2106 = vld [vmem:[%s1 + $0x17c] sm:$0xf]
      %v2107 = vld [vmem:[%s1 + $0x180] sm:$0xf]
      %v2108 = vld [vmem:[%s1 + $0x184] sm:$0xf]
      %v2109 = vld [vmem:[%s1 + $0x188] sm:$0xf]
      %v2110 = vld [vmem:[%s1 + $0x18c] sm:$0xf]
      %v2111 = vld [vmem:[%s1 + $0x190] sm:$0xf]
      %v2112 = vld [vmem:[%s1 + $0x194] sm:$0xf]
      %v2113 = vld [vmem:[%s1 + $0x198] sm:$0xf]
      %v2114 = vld [vmem:[%s1 + $0x19c] sm:$0xf]
      %v2115 = vld [vmem:[%s1 + $0x1a0] sm:$0xf]
      %v2116 = vld [vmem:[%s1 + $0x1a4] sm:$0xf]
      %v2117 = vld [vmem:[%s1 + $0x1a8] sm:$0xf]
      %v2118 = vld [vmem:[%s1 + $0x1ac] sm:$0xf]
      %v2119 = vld [vmem:[%s1 + $0x1b0] sm:$0xf]
      %v2120 = vld [vmem:[%s1 + $0x1b4] sm:$0xf]
      %v2121 = vld [vmem:[%s1 + $0x1b8] sm:$0xf]
      %v2122 = vld [vmem:[%s1 + $0x1bc] sm:$0xf]
      %v2123 = vld [vmem:[%s1 + $0x1c0] sm:$0xf]
      %v2124 = vld [vmem:[%s1 + $0x1c4] sm:$0xf]
      %v2125 = vld [vmem:[%s1 + $0x1c8] sm:$0xf]
      %v2126 = vld [vmem:[%s1 + $0x1cc] sm:$0xf]
      %v2127 = vld [vmem:[%s1 + $0x1d0] sm:$0xf]
      %v2128 = vld [vmem:[%s1 + $0x1d4] sm:$0xf]
      %v2129 = vld [vmem:[%s1 + $0x1d8] sm:$0xf]
      %v2130 = vld [vmem:[%s1 + $0x1dc] sm:$0xf]
      %v2131 = vld [vmem:[%s1 + $0x1e0] sm:$0xf]
      %v2132 = vld [vmem:[%s1 + $0x1e4] sm:$0xf]
      %v2133 = vld [vmem:[%s1 + $0x1e8] sm:$0xf]
      %v2134 = vld [vmem:[%s1 + $0x1ec] sm:$0xf]
      %v2135 = vld [vmem:[%s1 + $0x1f0] sm:$0xf]
      %v2136 = vld [vmem:[%s1 + $0x1f4] sm:$0xf]
      %v2137 = vld [vmem:[%s1 + $0x1f8] sm:$0xf]
      %v2138 = vld [vmem:[%s1 + $0x1fc] sm:$0xf]
      %v2139 = vld [vmem:[%s1 + $0x200] sm:$0xf]
      %v2140 = vld [vmem:[%s1 + $0x204] sm:$0xf]
      %v2141 = vld [vmem:[%s1 + $0x208] sm:$0xf]
      %v2142 = vld [vmem:[%s1 + $0x20c] sm:$0xf]
      %v2143 = vld [vmem:[%s1 + $0x210] sm:$0xf]
      %v2144 = vld [vmem:[%s1 + $0x214] sm:$0xf]
      %v2145 = vld [vmem:[%s1 + $0x218] sm:$0xf]
      %v2146 = vld [vmem:[%s1 + $0x21c] sm:$0xf]
      %v2147 = vld [vmem:[%s1 + $0x220] sm:$0xf]
      %v2148 = vld [vmem:[%s1 + $0x224] sm:$0xf]
      %v2149 = vld [vmem:[%s1 + $0x228] sm:$0xf]
      %v2150 = vld [vmem:[%s1 + $0x22c] sm:$0xf]
      %v2151 = vld [vmem:[%s1 + $0x230] sm:$0xf]
      %v2152 = vld [vmem:[%s1 + $0x234] sm:$0xf]
      %v2153 = vld [vmem:[%s1 + $0x238] sm:$0xf]
      %v2154 = vld [vmem:[%s1 + $0x23c] sm:$0xf]
      %v2299 = vunpack.c.l.b16 %v2011
      %v2300 = vunpack.c.l.b16 %v2012
      %v2301 = vunpack.c.l.b16 %v2013
      %v2302 = vunpack.c.l.b16 %v2014
      %v2303 = vunpack.c.l.b16 %v2015
      %v2304 = vunpack.c.l.b16 %v2016
      %v2305 = vunpack.c.l.b16 %v2017
      %v2306 = vunpack.c.l.b16 %v2018
      %v2307 = vunpack.c.l.b16 %v2019
      %v2308 = vunpack.c.l.b16 %v2020
      %v2309 = vunpack.c.l.b16 %v2021
      %v2310 = vunpack.c.l.b16 %v2022
      %v2311 = vunpack.c.l.b16 %v2023
      %v2312 = vunpack.c.l.b16 %v2024
      %v2313 = vunpack.c.l.b16 %v2025
      %v2314 = vunpack.c.l.b16 %v2026
      %v2315 = vunpack.c.l.b16 %v2027
      %v2316 = vunpack.c.l.b16 %v2028
      %v2317 = vunpack.c.l.b16 %v2029
      %v2318 = vunpack.c.l.b16 %v2030
      %v2319 = vunpack.c.l.b16 %v2031
      %v2320 = vunpack.c.l.b16 %v2032
      %v2321 = vunpack.c.l.b16 %v2033
      %v2322 = vunpack.c.l.b16 %v2034
      %v2323 = vunpack.c.l.b16 %v2035
      %v2324 = vunpack.c.l.b16 %v2036
      %v2325 = vunpack.c.l.b16 %v2037
      %v2326 = vunpack.c.l.b16 %v2038
      %v2327 = vunpack.c.l.b16 %v2039
      %v2328 = vunpack.c.l.b16 %v2040
      %v2329 = vunpack.c.l.b16 %v2041
      %v2330 = vunpack.c.l.b16 %v2042
      %v2331 = vunpack.c.l.b16 %v2043
      %v2332 = vunpack.c.l.b16 %v2044
      %v2333 = vunpack.c.l.b16 %v2045
      %v2334 = vunpack.c.l.b16 %v2046
      %v2335 = vunpack.c.l.b16 %v2047
      %v2336 = vunpack.c.l.b16 %v2048
      %v2337 = vunpack.c.l.b16 %v2049
      %v2338 = vunpack.c.l.b16 %v2050
      %v2339 = vunpack.c.l.b16 %v2051
      %v2340 = vunpack.c.l.b16 %v2052
      %v2341 = vunpack.c.l.b16 %v2053
      %v2342 = vunpack.c.l.b16 %v2054
      %v2343 = vunpack.c.l.b16 %v2055
      %v2344 = vunpack.c.l.b16 %v2056
      %v2345 = vunpack.c.l.b16 %v2057
      %v2346 = vunpack.c.l.b16 %v2058
      %v2347 = vunpack.c.l.b16 %v2059
      %v2348 = vunpack.c.l.b16 %v2060
      %v2349 = vunpack.c.l.b16 %v2061
      %v2350 = vunpack.c.l.b16 %v2062
      %v2351 = vunpack.c.l.b16 %v2063
      %v2352 = vunpack.c.l.b16 %v2064
      %v2353 = vunpack.c.l.b16 %v2065
      %v2354 = vunpack.c.l.b16 %v2066
      %v2355 = vunpack.c.l.b16 %v2067
      %v2356 = vunpack.c.l.b16 %v2068
      %v2357 = vunpack.c.l.b16 %v2069
      %v2358 = vunpack.c.l.b16 %v2070
      %v2359 = vunpack.c.l.b16 %v2071
      %v2360 = vunpack.c.l.b16 %v2072
      %v2361 = vunpack.c.l.b16 %v2073
      %v2362 = vunpack.c.l.b16 %v2074
      %v2363 = vunpack.c.l.b16 %v2075
      %v2364 = vunpack.c.l.b16 %v2076
      %v2365 = vunpack.c.l.b16 %v2077
      %v2366 = vunpack.c.l.b16 %v2078
      %v2367 = vunpack.c.l.b16 %v2079
      %v2368 = vunpack.c.l.b16 %v2080
      %v2369 = vunpack.c.l.b16 %v2081
      %v2370 = vunpack.c.l.b16 %v2082
      %v2371 = vunpack.c.l.b16 %v2083
      %v2372 = vunpack.c.l.b16 %v2084
      %v2373 = vunpack.c.l.b16 %v2085
      %v2374 = vunpack.c.l.b16 %v2086
      %v2375 = vunpack.c.l.b16 %v2087
      %v2376 = vunpack.c.l.b16 %v2088
      %v2377 = vunpack.c.l.b16 %v2089
      %v2378 = vunpack.c.l.b16 %v2090
      %v2379 = vunpack.c.l.b16 %v2091
      %v2380 = vunpack.c.l.b16 %v2092
      %v2381 = vunpack.c.l.b16 %v2093
      %v2382 = vunpack.c.l.b16 %v2094
      %v2383 = vunpack.c.l.b16 %v2095
      %v2384 = vunpack.c.l.b16 %v2096
      %v2385 = vunpack.c.l.b16 %v2097
      %v2386 = vunpack.c.l.b16 %v2098
      %v2387 = vunpack.c.l.b16 %v2099
      %v2388 = vunpack.c.l.b16 %v2100
      %v2389 = vunpack.c.l.b16 %v2101
      %v2390 = vunpack.c.l.b16 %v2102
      %v2391 = vunpack.c.l.b16 %v2103
      %v2392 = vunpack.c.l.b16 %v2104
      %v2393 = vunpack.c.l.b16 %v2105
      %v2394 = vunpack.c.l.b16 %v2106
      %v2395 = vunpack.c.l.b16 %v2107
      %v2396 = vunpack.c.l.b16 %v2108
      %v2397 = vunpack.c.l.b16 %v2109
      %v2398 = vunpack.c.l.b16 %v2110
      %v2399 = vunpack.c.l.b16 %v2111
      %v2400 = vunpack.c.l.b16 %v2112
      %v2401 = vunpack.c.l.b16 %v2113
      %v2402 = vunpack.c.l.b16 %v2114
      %v2403 = vunpack.c.l.b16 %v2115
      %v2404 = vunpack.c.l.b16 %v2116
      %v2405 = vunpack.c.l.b16 %v2117
      %v2406 = vunpack.c.l.b16 %v2118
      %v2407 = vunpack.c.l.b16 %v2119
      %v2408 = vunpack.c.l.b16 %v2120
      %v2409 = vunpack.c.l.b16 %v2121
      %v2410 = vunpack.c.l.b16 %v2122
      %v2411 = vunpack.c.l.b16 %v2123
      %v2412 = vunpack.c.l.b16 %v2124
      %v2413 = vunpack.c.l.b16 %v2125
      %v2414 = vunpack.c.l.b16 %v2126
      %v2415 = vunpack.c.l.b16 %v2127
      %v2416 = vunpack.c.l.b16 %v2128
      %v2417 = vunpack.c.l.b16 %v2129
      %v2418 = vunpack.c.l.b16 %v2130
      %v2419 = vunpack.c.l.b16 %v2131
      %v2420 = vunpack.c.l.b16 %v2132
      %v2421 = vunpack.c.l.b16 %v2133
      %v2422 = vunpack.c.l.b16 %v2134
      %v2423 = vunpack.c.l.b16 %v2135
      %v2424 = vunpack.c.l.b16 %v2136
      %v2425 = vunpack.c.l.b16 %v2137
      %v2426 = vunpack.c.l.b16 %v2138
      %v2427 = vunpack.c.l.b16 %v2139
      %v2428 = vunpack.c.l.b16 %v2140
      %v2429 = vunpack.c.l.b16 %v2141
      %v2430 = vunpack.c.l.b16 %v2142
      %v2431 = vunpack.c.l.b16 %v2143
      %v2432 = vunpack.c.l.b16 %v2144
      %v2433 = vunpack.c.l.b16 %v2145
      %v2434 = vunpack.c.l.b16 %v2146
      %v2435 = vunpack.c.l.b16 %v2147
      %v2436 = vunpack.c.l.b16 %v2148
      %v2437 = vunpack.c.l.b16 %v2149
      %v2438 = vunpack.c.l.b16 %v2150
      %v2439 = vunpack.c.l.b16 %v2151
      %v2440 = vunpack.c.l.b16 %v2152
      %v2441 = vunpack.c.l.b16 %v2153
      %v2442 = vunpack.c.l.b16 %v2154
      %v2443 = vpack.c.b16 %v2300, %v2299
      %v2444 = vpack.c.b16 %v2302, %v2301
      %v2445 = vpack.c.b16 %v2304, %v2303
      %v2446 = vpack.c.b16 %v2306, %v2305
      %v2447 = vpack.c.b16 %v2308, %v2307
      %v2448 = vpack.c.b16 %v2310, %v2309
      %v2449 = vpack.c.b16 %v2312, %v2311
      %v2450 = vpack.c.b16 %v2314, %v2313
      %v2451 = vpack.c.b16 %v2316, %v2315
      %v2452 = vpack.c.b16 %v2318, %v2317
      %v2453 = vpack.c.b16 %v2320, %v2319
      %v2454 = vpack.c.b16 %v2322, %v2321
      %v2455 = vpack.c.b16 %v2324, %v2323
      %v2456 = vpack.c.b16 %v2326, %v2325
      %v2457 = vpack.c.b16 %v2328, %v2327
      %v2458 = vpack.c.b16 %v2330, %v2329
      %v2459 = vpack.c.b16 %v2332, %v2331
      %v2460 = vpack.c.b16 %v2334, %v2333
      %v2461 = vpack.c.b16 %v2336, %v2335
      %v2462 = vpack.c.b16 %v2338, %v2337
      %v2463 = vpack.c.b16 %v2340, %v2339
      %v2464 = vpack.c.b16 %v2342, %v2341
      %v2465 = vpack.c.b16 %v2344, %v2343
      %v2466 = vpack.c.b16 %v2346, %v2345
      %v2467 = vpack.c.b16 %v2348, %v2347
      %v2468 = vpack.c.b16 %v2350, %v2349
      %v2469 = vpack.c.b16 %v2352, %v2351
      %v2470 = vpack.c.b16 %v2354, %v2353
      %v2471 = vpack.c.b16 %v2356, %v2355
      %v2472 = vpack.c.b16 %v2358, %v2357
      %v2473 = vpack.c.b16 %v2360, %v2359
      %v2474 = vpack.c.b16 %v2362, %v2361
      %v2475 = vpack.c.b16 %v2364, %v2363
      %v2476 = vpack.c.b16 %v2366, %v2365
      %v2477 = vpack.c.b16 %v2368, %v2367
      %v2478 = vpack.c.b16 %v2370, %v2369
      %v2479 = vpack.c.b16 %v2372, %v2371
      %v2480 = vpack.c.b16 %v2374, %v2373
      %v2481 = vpack.c.b16 %v2376, %v2375
      %v2482 = vpack.c.b16 %v2378, %v2377
      %v2483 = vpack.c.b16 %v2380, %v2379
      %v2484 = vpack.c.b16 %v2382, %v2381
      %v2485 = vpack.c.b16 %v2384, %v2383
      %v2486 = vpack.c.b16 %v2386, %v2385
      %v2487 = vpack.c.b16 %v2388, %v2387
      %v2488 = vpack.c.b16 %v2390, %v2389
      %v2489 = vpack.c.b16 %v2392, %v2391
      %v2490 = vpack.c.b16 %v2394, %v2393
      %v2491 = vpack.c.b16 %v2396, %v2395
      %v2492 = vpack.c.b16 %v2398, %v2397
      %v2493 = vpack.c.b16 %v2400, %v2399
      %v2494 = vpack.c.b16 %v2402, %v2401
      %v2495 = vpack.c.b16 %v2404, %v2403
      %v2496 = vpack.c.b16 %v2406, %v2405
      %v2497 = vpack.c.b16 %v2408, %v2407
      %v2498 = vpack.c.b16 %v2410, %v2409
      %v2499 = vpack.c.b16 %v2412, %v2411
      %v2500 = vpack.c.b16 %v2414, %v2413
      %v2501 = vpack.c.b16 %v2416, %v2415
      %v2502 = vpack.c.b16 %v2418, %v2417
      %v2503 = vpack.c.b16 %v2420, %v2419
      %v2504 = vpack.c.b16 %v2422, %v2421
      %v2505 = vpack.c.b16 %v2424, %v2423
      %v2506 = vpack.c.b16 %v2426, %v2425
      %v2507 = vpack.c.b16 %v2428, %v2427
      %v2508 = vpack.c.b16 %v2430, %v2429
      %v2509 = vpack.c.b16 %v2432, %v2431
      %v2510 = vpack.c.b16 %v2434, %v2433
      %v2511 = vpack.c.b16 %v2436, %v2435
      %v2512 = vpack.c.b16 %v2438, %v2437
      %v2513 = vpack.c.b16 %v2440, %v2439
      %v2514 = vpack.c.b16 %v2442, %v2441
      %2587 = vmatprep.subr.bf16.mxu0 0
      %2588 = vmatpush1.bf16.msra.mxu0 %v2443
      %2589 = vmatprep.subr.bf16.mxu0 0
      %2590 = vmatpush1.bf16.msra.mxu0 %v2444
      %2591 = vmatprep.subr.bf16.mxu0 0
      %2592 = vmatpush1.bf16.msra.mxu0 %v2445
      %2593 = vmatprep.subr.bf16.mxu0 0
      %2594 = vmatpush1.bf16.msra.mxu0 %v2446
      %2595 = vmatprep.subr.bf16.mxu0 0
      %2596 = vmatpush1.bf16.msra.mxu0 %v2447
      %2597 = vmatprep.subr.bf16.mxu0 0
      %2598 = vmatpush1.bf16.msra.mxu0 %v2448
      %2599 = vmatprep.subr.bf16.mxu0 0
      %2600 = vmatpush1.bf16.msra.mxu0 %v2449
      %2601 = vmatprep.subr.bf16.mxu0 0
      %2602 = vmatpush1.bf16.msra.mxu0 %v2450
      %2603 = vmatprep.subr.bf16.mxu0 0
      %2604 = vmatpush1.bf16.msra.mxu0 %v2451
      %2605 = vmatprep.subr.bf16.mxu0 0
      %2606 = vmatpush1.bf16.msra.mxu0 %v2452
      %2607 = vmatprep.subr.bf16.mxu0 0
      %2608 = vmatpush1.bf16.msra.mxu0 %v2453
      %2609 = vmatprep.subr.bf16.mxu0 0
      %2610 = vmatpush1.bf16.msra.mxu0 %v2454
      %2611 = vmatprep.subr.bf16.mxu0 0
      %2612 = vmatpush1.bf16.msra.mxu0 %v2455
      %2613 = vmatprep.subr.bf16.mxu0 0
      %2614 = vmatpush1.bf16.msra.mxu0 %v2456
      %2615 = vmatprep.subr.bf16.mxu0 0
      %2616 = vmatpush1.bf16.msra.mxu0 %v2457
      %2617 = vmatprep.subr.bf16.mxu0 0
      %2618 = vmatpush1.bf16.msra.mxu0 %v2458
      %2619 = vmatprep.mubr.bf16.mxu0 %v1755
      %2620 = vmatmul.mubr.bf16.gmra.mrb[0].mxu0 %v1723
      %v2621 = vpop.f32.mrb[0].mxu0
      %v2622 = vadd.f32 0.0, %v2621
      %v2623 = vpop.f32.mrb[0].mxu0
      %v2624 = vpop.f32.mrb[0].mxu0
      %v2625 = vadd.f32 0.0, %v2624
      %v2626 = vpop.f32.mrb[0].mxu0
      %2627 = vmatprep.mubr.bf16.mxu0 %v1756
      %2628 = vmatmul.mubr.bf16.gmra.mrb[0].mxu0 %v1724
      %v2629 = vpop.f32.mrb[0].mxu0
      %v2630 = vadd.f32 0.0, %v2629
      %v2631 = vpop.f32.mrb[0].mxu0
      %v2632 = vpop.f32.mrb[0].mxu0
      %v2633 = vadd.f32 0.0, %v2632
      %v2634 = vpop.f32.mrb[0].mxu0
      %2635 = vmatprep.mubr.bf16.mxu0 %v1757
      %2636 = vmatmul.mubr.bf16.gmra.mrb[0].mxu0 %v1725
      %v2637 = vpop.f32.mrb[0].mxu0
      %v2638 = vadd.f32 0.0, %v2637
      %v2639 = vpop.f32.mrb[0].mxu0
      %v2640 = vpop.f32.mrb[0].mxu0
      %v2641 = vadd.f32 0.0, %v2640
      %v2642 = vpop.f32.mrb[0].mxu0
      %2643 = vmatprep.mubr.bf16.mxu0 %v1758
      %2644 = vmatmul.mubr.bf16.gmra.mrb[0].mxu0 %v1726
      %v2645 = vpop.f32.mrb[0].mxu0
      %v2646 = vadd.f32 0.0, %v2645
      %v2647 = vpop.f32.mrb[0].mxu0
      %v2648 = vpop.f32.mrb[0].mxu0
      %v2649 = vadd.f32 0.0, %v2648
      %v2650 = vpop.f32.mrb[0].mxu0
      %2651 = vmatprep.mubr.bf16.mxu0 %v1759
      %2652 = vmatmul.mubr.bf16.gmra.mrb[0].mxu0 %v1727
      %v2653 = vpop.f32.mrb[0].mxu0
      %v2654 = vadd.f32 0.0, %v2653
      %v2655 = vpop.f32.mrb[0].mxu0
      %v2656 = vpop.f32.mrb[0].mxu0
      %v2657 = vadd.f32 0.0, %v2656
      %v2658 = vpop.f32.mrb[0].mxu0
      %2659 = vmatprep.mubr.bf16.mxu0 %v1760
      %2660 = vmatmul.mubr.bf16.gmra.mrb[0].mxu0 %v1728
      %v2661 = vpop.f32.mrb[0].mxu0
      %v2662 = vadd.f32 0.0, %v2661
      %v2663 = vpop.f32.mrb[0].mxu0
      %v2664 = vpop.f32.mrb[0].mxu0
      %v2665 = vadd.f32 0.0, %v2664
      %v2666 = vpop.f32.mrb[0].mxu0
      %2667 = vmatprep.mubr.bf16.mxu0 %v1761
      %2668 = vmatmul.mubr.bf16.gmra.mrb[0].mxu0 %v1729
      %v2669 = vpop.f32.mrb[0].mxu0
      %v2670 = vadd.f32 0.0, %v2669
      %v2671 = vpop.f32.mrb[0].mxu0
      %v2672 = vpop.f32.mrb[0].mxu0
      %v2673 = vadd.f32 0.0, %v2672
      %v2674 = vpop.f32.mrb[0].mxu0
      %2675 = vmatprep.mubr.bf16.mxu0 %v1762
      %2676 = vmatmul.mubr.bf16.gmra.mrb[0].mxu0 %v1730
      %v2677 = vpop.f32.mrb[0].mxu0
      %v2678 = vadd.f32 0.0, %v2677
      %v2679 = vpop.f32.mrb[0].mxu0
      %v2680 = vpop.f32.mrb[0].mxu0
      %v2681 = vadd.f32 0.0, %v2680
      %v2682 = vpop.f32.mrb[0].mxu0
      %2683 = vdwg.mxu0
      %2684 = vmatprep.subr.bf16.mxu0 0
      %2685 = vmatpush1.bf16.msra.mxu0 %v2459
      %2686 = vmatprep.subr.bf16.mxu0 0
      %2687 = vmatpush1.bf16.msra.mxu0 %v2460
      %2688 = vmatprep.subr.bf16.mxu0 0
      %2689 = vmatpush1.bf16.msra.mxu0 %v2461
      %2690 = vmatprep.subr.bf16.mxu0 0
      %2691 = vmatpush1.bf16.msra.mxu0 %v2462
      %2692 = vmatprep.subr.bf16.mxu0 0
      %2693 = vmatpush1.bf16.msra.mxu0 %v2463
      %2694 = vmatprep.subr.bf16.mxu0 0
      %2695 = vmatpush1.bf16.msra.mxu0 %v2464
      %2696 = vmatprep.subr.bf16.mxu0 0
      %2697 = vmatpush1.bf16.msra.mxu0 %v2465
      %2698 = vmatprep.subr.bf16.mxu0 0
      %2699 = vmatpush1.bf16.msra.mxu0 %v2466
      %2700 = vmatprep.subr.bf16.mxu0 0
      %2701 = vmatpush1.bf16.msra.mxu0 %v2467
      %2702 = vmatprep.subr.bf16.mxu0 0
      %2703 = vmatpush1.bf16.msra.mxu0 %v2468
      %2704 = vmatprep.subr.bf16.mxu0 0
      %2705 = vmatpush1.bf16.msra.mxu0 %v2469
      %2706 = vmatprep.subr.bf16.mxu0 0
      %2707 = vmatpush1.bf16.msra.mxu0 %v2470
      %2708 = vmatprep.subr.bf16.mxu0 0
      %2709 = vmatpush1.bf16.msra.mxu0 %v2471
      %2710 = vmatprep.subr.bf16.mxu0 0
      %2711 = vmatpush1.bf16.msra.mxu0 %v2472
      %2712 = vmatprep.subr.bf16.mxu0 0
      %2713 = vmatpush1.bf16.msra.mxu0 %v2473
      %2714 = vmatprep.subr.bf16.mxu0 0
      %2715 = vmatpush1.bf16.msra.mxu0 %v2474
      %2716 = vmatprep.mubr.bf16.mxu0 %v1827
      %2717 = vmatmul.mubr.bf16.gmra.mrb[0].mxu0 %v1787
      %v2718 = vpop.f32.mrb[0].mxu0
      %v2719 = vadd.f32 %v2622, %v2718
      %v2720 = vpop.f32.mrb[0].mxu0
      %v2721 = vpop.f32.mrb[0].mxu0
      %v2722 = vadd.f32 %v2625, %v2721
      %v2723 = vpop.f32.mrb[0].mxu0
      %2724 = vmatprep.mubr.bf16.mxu0 %v1828
      %2725 = vmatmul.mubr.bf16.gmra.mrb[0].mxu0 %v1788
      %v2726 = vpop.f32.mrb[0].mxu0
      %v2727 = vadd.f32 %v2630, %v2726
      %v2728 = vpop.f32.mrb[0].mxu0
      %v2729 = vpop.f32.mrb[0].mxu0
      %v2730 = vadd.f32 %v2633, %v2729
      %v2731 = vpop.f32.mrb[0].mxu0
      %2732 = vmatprep.mubr.bf16.mxu0 %v1829
      %2733 = vmatmul.mubr.bf16.gmra.mrb[0].mxu0 %v1789
      %v2734 = vpop.f32.mrb[0].mxu0
      %v2735 = vadd.f32 %v2638, %v2734
      %v2736 = vpop.f32.mrb[0].mxu0
      %v2737 = vpop.f32.mrb[0].mxu0
      %v2738 = vadd.f32 %v2641, %v2737
      %v2739 = vpop.f32.mrb[0].mxu0
      %2740 = vmatprep.mubr.bf16.mxu0 %v1830
      %2741 = vmatmul.mubr.bf16.gmra.mrb[0].mxu0 %v1790
      %v2742 = vpop.f32.mrb[0].mxu0
      %v2743 = vadd.f32 %v2646, %v2742
      %v2744 = vpop.f32.mrb[0].mxu0
      %v2745 = vpop.f32.mrb[0].mxu0
      %v2746 = vadd.f32 %v2649, %v2745
      %v2747 = vpop.f32.mrb[0].mxu0
      %2748 = vmatprep.mubr.bf16.mxu0 %v1831
      %2749 = vmatmul.mubr.bf16.gmra.mrb[0].mxu0 %v1791
      %v2750 = vpop.f32.mrb[0].mxu0
      %v2751 = vadd.f32 %v2654, %v2750
      %v2752 = vpop.f32.mrb[0].mxu0
      %v2753 = vpop.f32.mrb[0].mxu0
      %v2754 = vadd.f32 %v2657, %v2753
      %v2755 = vpop.f32.mrb[0].mxu0
      %2756 = vmatprep.mubr.bf16.mxu0 %v1832
      %2757 = vmatmul.mubr.bf16.gmra.mrb[0].mxu0 %v1792
      %v2758 = vpop.f32.mrb[0].mxu0
      %v2759 = vadd.f32 %v2662, %v2758
      %v2760 = vpop.f32.mrb[0].mxu0
      %v2761 = vpop.f32.mrb[0].mxu0
      %v2762 = vadd.f32 %v2665, %v2761
      %v2763 = vpop.f32.mrb[0].mxu0
      %2764 = vmatprep.mubr.bf16.mxu0 %v1833
      %2765 = vmatmul.mubr.bf16.gmra.mrb[0].mxu0 %v1793
      %v2766 = vpop.f32.mrb[0].mxu0
      %v2767 = vadd.f32 %v2670, %v2766
      %v2768 = vpop.f32.mrb[0].mxu0
      %v2769 = vpop.f32.mrb[0].mxu0
      %v2770 = vadd.f32 %v2673, %v2769
      %v2771 = vpop.f32.mrb[0].mxu0
      %2772 = vmatprep.mubr.bf16.mxu0 %v1834
      %2773 = vmatmul.mubr.bf16.gmra.mrb[0].mxu0 %v1794
      %v2774 = vpop.f32.mrb[0].mxu0
      %v2775 = vadd.f32 %v2678, %v2774
      %v2776 = vpop.f32.mrb[0].mxu0
      %v2777 = vpop.f32.mrb[0].mxu0
      %v2778 = vadd.f32 %v2681, %v2777
      %v2779 = vpop.f32.mrb[0].mxu0
      %2780 = vdwg.mxu0
      %2781 = vmatprep.subr.bf16.mxu0 0
      %2782 = vmatpush1.bf16.msra.mxu0 %v2475
      %2783 = vmatprep.subr.bf16.mxu0 0
      %2784 = vmatpush1.bf16.msra.mxu0 %v2476
      %2785 = vmatprep.subr.bf16.mxu0 0
      %2786 = vmatpush1.bf16.msra.mxu0 %v2477
      %2787 = vmatprep.subr.bf16.mxu0 0
      %2788 = vmatpush1.bf16.msra.mxu0 %v2478
      %2789 = vmatprep.subr.bf16.mxu0 0
      %2790 = vmatpush1.bf16.msra.mxu0 %v2479
      %2791 = vmatprep.subr.bf16.mxu0 0
      %2792 = vmatpush1.bf16.msra.mxu0 %v2480
      %2793 = vmatprep.subr.bf16.mxu0 0
      %2794 = vmatpush1.bf16.msra.mxu0 %v2481
      %2795 = vmatprep.subr.bf16.mxu0 0
      %2796 = vmatpush1.bf16.msra.mxu0 %v2482
      %2797 = vmatprep.subr.bf16.mxu0 0
      %2798 = vmatpush1.bf16.msra.mxu0 %v2483
      %2799 = vmatprep.subr.bf16.mxu0 0
      %2800 = vmatpush1.bf16.msra.mxu0 %v2484
      %2801 = vmatprep.subr.bf16.mxu0 0
      %2802 = vmatpush1.bf16.msra.mxu0 %v2485
      %2803 = vmatprep.subr.bf16.mxu0 0
      %2804 = vmatpush1.bf16.msra.mxu0 %v2486
      %2805 = vmatprep.subr.bf16.mxu0 0
      %2806 = vmatpush1.bf16.msra.mxu0 %v2487
      %2807 = vmatprep.subr.bf16.mxu0 0
      %2808 = vmatpush1.bf16.msra.mxu0 %v2488
      %2809 = vmatprep.subr.bf16.mxu0 0
      %2810 = vmatpush1.bf16.msra.mxu0 %v2489
      %2811 = vmatprep.subr.bf16.mxu0 0
      %2812 = vmatpush1.bf16.msra.mxu0 %v2490
      %2813 = vmatprep.mubr.bf16.mxu0 %v1891
      %2814 = vmatmul.mubr.bf16.gmra.mrb[0].mxu0 %v1859
      %v2815 = vpop.f32.mrb[0].mxu0
      %v2816 = vadd.f32 %v2719, %v2815
      %v2817 = vpop.f32.mrb[0].mxu0
      %v2818 = vpop.f32.mrb[0].mxu0
      %v2819 = vadd.f32 %v2722, %v2818
      %v2820 = vpop.f32.mrb[0].mxu0
      %2821 = vmatprep.mubr.bf16.mxu0 %v1892
      %2822 = vmatmul.mubr.bf16.gmra.mrb[0].mxu0 %v1860
      %v2823 = vpop.f32.mrb[0].mxu0
      %v2824 = vadd.f32 %v2727, %v2823
      %v2825 = vpop.f32.mrb[0].mxu0
      %v2826 = vpop.f32.mrb[0].mxu0
      %v2827 = vadd.f32 %v2730, %v2826
      %v2828 = vpop.f32.mrb[0].mxu0
      %2829 = vmatprep.mubr.bf16.mxu0 %v1893
      %2830 = vmatmul.mubr.bf16.gmra.mrb[0].mxu0 %v1861
      %v2831 = vpop.f32.mrb[0].mxu0
      %v2832 = vadd.f32 %v2735, %v2831
      %v2833 = vpop.f32.mrb[0].mxu0
      %v2834 = vpop.f32.mrb[0].mxu0
      %v2835 = vadd.f32 %v2738, %v2834
      %v2836 = vpop.f32.mrb[0].mxu0
      %2837 = vmatprep.mubr.bf16.mxu0 %v1894
      %2838 = vmatmul.mubr.bf16.gmra.mrb[0].mxu0 %v1862
      %v2839 = vpop.f32.mrb[0].mxu0
      %v2840 = vadd.f32 %v2743, %v2839
      %v2841 = vpop.f32.mrb[0].mxu0
      %v2842 = vpop.f32.mrb[0].mxu0
      %v2843 = vadd.f32 %v2746, %v2842
      %v2844 = vpop.f32.mrb[0].mxu0
      %2845 = vmatprep.mubr.bf16.mxu0 %v1895
      %2846 = vmatmul.mubr.bf16.gmra.mrb[0].mxu0 %v1863
      %v2847 = vpop.f32.mrb[0].mxu0
      %v2848 = vadd.f32 %v2751, %v2847
      %v2849 = vpop.f32.mrb[0].mxu0
      %v2850 = vpop.f32.mrb[0].mxu0
      %v2851 = vadd.f32 %v2754, %v2850
      %v2852 = vpop.f32.mrb[0].mxu0
      %2853 = vmatprep.mubr.bf16.mxu0 %v1896
      %2854 = vmatmul.mubr.bf16.gmra.mrb[0].mxu0 %v1864
      %v2855 = vpop.f32.mrb[0].mxu0
      %v2856 = vadd.f32 %v2759, %v2855
      %v2857 = vpop.f32.mrb[0].mxu0
      %v2858 = vpop.f32.mrb[0].mxu0
      %v2859 = vadd.f32 %v2762, %v2858
      %v2860 = vpop.f32.mrb[0].mxu0
      %2861 = vmatprep.mubr.bf16.mxu0 %v1897
      %2862 = vmatmul.mubr.bf16.gmra.mrb[0].mxu0 %v1865
      %v2863 = vpop.f32.mrb[0].mxu0
      %v2864 = vadd.f32 %v2767, %v2863
      %v2865 = vpop.f32.mrb[0].mxu0
      %v2866 = vpop.f32.mrb[0].mxu0
      %v2867 = vadd.f32 %v2770, %v2866
      %v2868 = vpop.f32.mrb[0].mxu0
      %2869 = vmatprep.mubr.bf16.mxu0 %v1898
      %2870 = vmatmul.mubr.bf16.gmra.mrb[0].mxu0 %v1866
      %v2871 = vpop.f32.mrb[0].mxu0
      %v2872 = vadd.f32 %v2775, %v2871
      %v2873 = vpop.f32.mrb[0].mxu0
      %v2874 = vpop.f32.mrb[0].mxu0
      %v2875 = vadd.f32 %v2778, %v2874
      %v2876 = vpop.f32.mrb[0].mxu0
      %2877 = vdwg.mxu0
      %2878 = vmatprep.subr.bf16.mxu0 0
      %2879 = vmatpush1.bf16.msra.mxu0 %v2491
      %2880 = vmatprep.subr.bf16.mxu0 0
      %2881 = vmatpush1.bf16.msra.mxu0 %v2492
      %2882 = vmatprep.subr.bf16.mxu0 0
      %2883 = vmatpush1.bf16.msra.mxu0 %v2493
      %2884 = vmatprep.subr.bf16.mxu0 0
      %2885 = vmatpush1.bf16.msra.mxu0 %v2494
      %2886 = vmatprep.subr.bf16.mxu0 0
      %2887 = vmatpush1.bf16.msra.mxu0 %v2495
      %2888 = vmatprep.subr.bf16.mxu0 0
      %2889 = vmatpush1.bf16.msra.mxu0 %v2496
      %2890 = vmatprep.subr.bf16.mxu0 0
      %2891 = vmatpush1.bf16.msra.mxu0 %v2497
      %2892 = vmatprep.subr.bf16.mxu0 0
      %2893 = vmatpush1.bf16.msra.mxu0 %v2498
      %2894 = vmatprep.subr.bf16.mxu0 0
      %2895 = vmatpush1.bf16.msra.mxu0 %v2499
      %2896 = vmatprep.subr.bf16.mxu0 0
      %2897 = vmatpush1.bf16.msra.mxu0 %v2500
      %2898 = vmatprep.subr.bf16.mxu0 0
      %2899 = vmatpush1.bf16.msra.mxu0 %v2501
      %2900 = vmatprep.subr.bf16.mxu0 0
      %2901 = vmatpush1.bf16.msra.mxu0 %v2502
      %2902 = vmatprep.subr.bf16.mxu0 0
      %2903 = vmatpush1.bf16.msra.mxu0 %v2503
      %2904 = vmatprep.subr.bf16.mxu0 0
      %2905 = vmatpush1.bf16.msra.mxu0 %v2504
      %2906 = vmatprep.subr.bf16.mxu0 0
      %2907 = vmatpush1.bf16.msra.mxu0 %v2505
      %2908 = vmatprep.subr.bf16.mxu0 0
      %2909 = vmatpush1.bf16.msra.mxu0 %v2506
      %2910 = vmatprep.mubr.bf16.mxu0 %v1963
      %2911 = vmatmul.mubr.bf16.gmra.mrb[0].mxu0 %v1931
      %v2912 = vpop.f32.mrb[0].mxu0
      %v2913 = vadd.f32 %v2816, %v2912
      %v2914 = vpop.f32.mrb[0].mxu0
      %v2915 = vpop.f32.mrb[0].mxu0
      %v2916 = vadd.f32 %v2819, %v2915
      %v2917 = vpop.f32.mrb[0].mxu0
      %2918 = vmatprep.mubr.bf16.mxu0 %v1964
      %2919 = vmatmul.mubr.bf16.gmra.mrb[0].mxu0 %v1932
      %v2920 = vpop.f32.mrb[0].mxu0
      %v2921 = vadd.f32 %v2824, %v2920
      %v2922 = vpop.f32.mrb[0].mxu0
      %v2923 = vpop.f32.mrb[0].mxu0
      %v2924 = vadd.f32 %v2827, %v2923
      %v2925 = vpop.f32.mrb[0].mxu0
      %2926 = vmatprep.mubr.bf16.mxu0 %v1965
      %2927 = vmatmul.mubr.bf16.gmra.mrb[0].mxu0 %v1933
      %v2928 = vpop.f32.mrb[0].mxu0
      %v2929 = vadd.f32 %v2832, %v2928
      %v2930 = vpop.f32.mrb[0].mxu0
      %v2931 = vpop.f32.mrb[0].mxu0
      %v2932 = vadd.f32 %v2835, %v2931
      %v2933 = vpop.f32.mrb[0].mxu0
      %2934 = vmatprep.mubr.bf16.mxu0 %v1966
      %2935 = vmatmul.mubr.bf16.gmra.mrb[0].mxu0 %v1934
      %v2936 = vpop.f32.mrb[0].mxu0
      %v2937 = vadd.f32 %v2840, %v2936
      %v2938 = vpop.f32.mrb[0].mxu0
      %v2939 = vpop.f32.mrb[0].mxu0
      %v2940 = vadd.f32 %v2843, %v2939
      %v2941 = vpop.f32.mrb[0].mxu0
      %2942 = vmatprep.mubr.bf16.mxu0 %v1967
      %2943 = vmatmul.mubr.bf16.gmra.mrb[0].mxu0 %v1935
      %v2944 = vpop.f32.mrb[0].mxu0
      %v2945 = vadd.f32 %v2848, %v2944
      %v2946 = vpop.f32.mrb[0].mxu0
      %v2947 = vpop.f32.mrb[0].mxu0
      %v2948 = vadd.f32 %v2851, %v2947
      %v2949 = vpop.f32.mrb[0].mxu0
      %2950 = vmatprep.mubr.bf16.mxu0 %v1968
      %2951 = vmatmul.mubr.bf16.gmra.mrb[0].mxu0 %v1936
      %v2952 = vpop.f32.mrb[0].mxu0
      %v2953 = vadd.f32 %v2856, %v2952
      %v2954 = vpop.f32.mrb[0].mxu0
      %v2955 = vpop.f32.mrb[0].mxu0
      %v2956 = vadd.f32 %v2859, %v2955
      %v2957 = vpop.f32.mrb[0].mxu0
      %2958 = vmatprep.mubr.bf16.mxu0 %v1969
      %2959 = vmatmul.mubr.bf16.gmra.mrb[0].mxu0 %v1937
      %v2960 = vpop.f32.mrb[0].mxu0
      %v2961 = vadd.f32 %v2864, %v2960
      %v2962 = vpop.f32.mrb[0].mxu0
      %v2963 = vpop.f32.mrb[0].mxu0
      %v2964 = vadd.f32 %v2867, %v2963
      %v2965 = vpop.f32.mrb[0].mxu0
      %2966 = vmatprep.mubr.bf16.mxu0 %v1970
      %2967 = vmatmul.mubr.bf16.gmra.mrb[0].mxu0 %v1938
      %v2968 = vpop.f32.mrb[0].mxu0
      %v2969 = vadd.f32 %v2872, %v2968
      %v2970 = vpop.f32.mrb[0].mxu0
      %v2971 = vpop.f32.mrb[0].mxu0
      %v2972 = vadd.f32 %v2875, %v2971
      %v2973 = vpop.f32.mrb[0].mxu0
      %2974 = vdwg.mxu0
      %2975 = vmatprep.subr.bf16.mxu0 0
      %2976 = vmatpush1.bf16.msra.mxu0 %v2507
      %2977 = vmatprep.subr.bf16.mxu0 0
      %2978 = vmatpush1.bf16.msra.mxu0 %v2508
      %2979 = vmatprep.subr.bf16.mxu0 0
      %2980 = vmatpush1.bf16.msra.mxu0 %v2509
      %2981 = vmatprep.subr.bf16.mxu0 0
      %2982 = vmatpush1.bf16.msra.mxu0 %v2510
      %2983 = vmatprep.subr.bf16.mxu0 0
      %2984 = vmatpush1.bf16.msra.mxu0 %v2511
      %2985 = vmatprep.subr.bf16.mxu0 0
      %2986 = vmatpush1.bf16.msra.mxu0 %v2512
      %2987 = vmatprep.subr.bf16.mxu0 0
      %2988 = vmatpush1.bf16.msra.mxu0 %v2513
      %2989 = vmatprep.subr.bf16.mxu0 0
      %2990 = vmatpush1.bf16.msra.mxu0 %v2514
      %2991 = vmatprep.subr.bf16.mxu0 0
      %2992 = vmatpush1.bf16.msra.mxu0 0
      %2993 = vmatprep.subr.bf16.mxu0 0
      %2994 = vmatpush1.bf16.msra.mxu0 0
      %2995 = vmatprep.subr.bf16.mxu0 0
      %2996 = vmatpush1.bf16.msra.mxu0 0
      %2997 = vmatprep.subr.bf16.mxu0 0
      %2998 = vmatpush1.bf16.msra.mxu0 0
      %2999 = vmatprep.subr.bf16.mxu0 0
      %3000 = vmatpush1.bf16.msra.mxu0 0
      %3001 = vmatprep.subr.bf16.mxu0 0
      %3002 = vmatpush1.bf16.msra.mxu0 0
      %3003 = vmatprep.subr.bf16.mxu0 0
      %3004 = vmatpush1.bf16.msra.mxu0 0
      %3005 = vmatprep.subr.bf16.mxu0 0
      %3006 = vmatpush1.bf16.msra.mxu0 0
      %3007 = vmatprep.mubr.bf16.mxu0 0
      %3008 = vmatmul.mubr.bf16.gmra.mrb[0].mxu0 %v1995
      %v3009 = vpop.f32.mrb[0].mxu0
      %v3010 = vadd.f32 %v2913, %v3009
      %v3011 = vpop.f32.mrb[0].mxu0
      %v3012 = vpop.f32.mrb[0].mxu0
      %v3013 = vadd.f32 %v2916, %v3012
      %v3014 = vpop.f32.mrb[0].mxu0
      %3015 = vmatprep.mubr.bf16.mxu0 0
      %3016 = vmatmul.mubr.bf16.gmra.mrb[0].mxu0 %v1996
      %v3017 = vpop.f32.mrb[0].mxu0
      %v3018 = vadd.f32 %v2921, %v3017
      %v3019 = vpop.f32.mrb[0].mxu0
      %v3020 = vpop.f32.mrb[0].mxu0
      %v3021 = vadd.f32 %v2924, %v3020
      %v3022 = vpop.f32.mrb[0].mxu0
      %3023 = vmatprep.mubr.bf16.mxu0 0
      %3024 = vmatmul.mubr.bf16.gmra.mrb[0].mxu0 %v1997
      %v3025 = vpop.f32.mrb[0].mxu0
      %v3026 = vadd.f32 %v2929, %v3025
      %v3027 = vpop.f32.mrb[0].mxu0
      %v3028 = vpop.f32.mrb[0].mxu0
      %v3029 = vadd.f32 %v2932, %v3028
      %v3030 = vpop.f32.mrb[0].mxu0
      %3031 = vmatprep.mubr.bf16.mxu0 0
      %3032 = vmatmul.mubr.bf16.gmra.mrb[0].mxu0 %v1998
      %v3033 = vpop.f32.mrb[0].mxu0
      %v3034 = vadd.f32 %v2937, %v3033
      %v3035 = vpop.f32.mrb[0].mxu0
      %v3036 = vpop.f32.mrb[0].mxu0
      %v3037 = vadd.f32 %v2940, %v3036
      %v3038 = vpop.f32.mrb[0].mxu0
      %3039 = vmatprep.mubr.bf16.mxu0 0
      %3040 = vmatmul.mubr.bf16.gmra.mrb[0].mxu0 %v1999
      %v3041 = vpop.f32.mrb[0].mxu0
      %v3042 = vadd.f32 %v2945, %v3041
      %v3043 = vpop.f32.mrb[0].mxu0
      %v3044 = vpop.f32.mrb[0].mxu0
      %v3045 = vadd.f32 %v2948, %v3044
      %v3046 = vpop.f32.mrb[0].mxu0
      %3047 = vmatprep.mubr.bf16.mxu0 0
      %3048 = vmatmul.mubr.bf16.gmra.mrb[0].mxu0 %v2000
      %v3049 = vpop.f32.mrb[0].mxu0
      %v3050 = vadd.f32 %v2953, %v3049
      %v3051 = vpop.f32.mrb[0].mxu0
      %v3052 = vpop.f32.mrb[0].mxu0
      %v3053 = vadd.f32 %v2956, %v3052
      %v3054 = vpop.f32.mrb[0].mxu0
      %3055 = vmatprep.mubr.bf16.mxu0 0
      %3056 = vmatmul.mubr.bf16.gmra.mrb[0].mxu0 %v2001
      %v3057 = vpop.f32.mrb[0].mxu0
      %v3058 = vadd.f32 %v2961, %v3057
      %v3059 = vpop.f32.mrb[0].mxu0
      %v3060 = vpop.f32.mrb[0].mxu0
      %v3061 = vadd.f32 %v2964, %v3060
      %v3062 = vpop.f32.mrb[0].mxu0
      %3063 = vmatprep.mubr.bf16.mxu0 0
      %3064 = vmatmul.mubr.bf16.gmra.mrb[0].mxu0 %v2002
      %v3065 = vpop.f32.mrb[0].mxu0
      %v3066 = vadd.f32 %v2969, %v3065
      %v3067 = vpop.f32.mrb[0].mxu0
      %v3068 = vpop.f32.mrb[0].mxu0
      %v3069 = vadd.f32 %v2972, %v3068
      %v3070 = vpop.f32.mrb[0].mxu0
      %3071 = vdwg.mxu0
      %v3072 = vpack.c.bf16 %v3013, %v3010
      %v3073 = vpack.c.bf16 %v3021, %v3018
      %v3074 = vpack.c.bf16 %v3029, %v3026
      %v3075 = vpack.c.bf16 %v3037, %v3034
      %v3076 = vpack.c.bf16 %v3045, %v3042
      %v3077 = vpack.c.bf16 %v3053, %v3050
      %v3078 = vpack.c.bf16 %v3061, %v3058
      %v3079 = vpack.c.bf16 %v3069, %v3066
      %v3088 = vunpack.c.l.b16 %v3072
      %v3089 = vunpack.c.h.b16 %v3072
      %v3090 = vunpack.c.l.b16 %v3073
      %v3091 = vunpack.c.h.b16 %v3073
      %v3092 = vunpack.c.l.b16 %v3074
      %v3093 = vunpack.c.h.b16 %v3074
      %v3094 = vunpack.c.l.b16 %v3075
      %v3095 = vunpack.c.h.b16 %v3075
      %v3096 = vunpack.c.l.b16 %v3076
      %v3097 = vunpack.c.h.b16 %v3076
      %v3098 = vunpack.c.l.b16 %v3077
      %v3099 = vunpack.c.h.b16 %v3077
      %v3100 = vunpack.c.l.b16 %v3078
      %v3101 = vunpack.c.h.b16 %v3078
      %v3102 = vunpack.c.l.b16 %v3079
      %v3103 = vunpack.c.h.b16 %v3079
      %v3104 = vpack.c.b16 %v3088, %v3088
      %v3105 = vpack.c.b16 %v3089, %v3089
      %v3106 = vpack.c.b16 %v3090, %v3090
      %v3107 = vpack.c.b16 %v3091, %v3091
      %v3108 = vpack.c.b16 %v3092, %v3092
      %v3109 = vpack.c.b16 %v3093, %v3093
      %v3110 = vpack.c.b16 %v3094, %v3094
      %v3111 = vpack.c.b16 %v3095, %v3095
      %v3112 = vpack.c.b16 %v3096, %v3096
      %v3113 = vpack.c.b16 %v3097, %v3097
      %v3114 = vpack.c.b16 %v3098, %v3098
      %v3115 = vpack.c.b16 %v3099, %v3099
      %v3116 = vpack.c.b16 %v3100, %v3100
      %v3117 = vpack.c.b16 %v3101, %v3101
      %v3118 = vpack.c.b16 %v3102, %v3102
      %v3119 = vpack.c.b16 %v3103, %v3103
      %3136 = vst [vmem:[%s261] sm:$0xf] %v3104
      %3137 = vst [vmem:[%s261 + $0x4] sm:$0xf] %v3105
      %3138 = vst [vmem:[%s261 + $0x8] sm:$0xf] %v3106
      %3139 = vst [vmem:[%s261 + $0xc] sm:$0xf] %v3107
      %3140 = vst [vmem:[%s261 + $0x10] sm:$0xf] %v3108
      %3141 = vst [vmem:[%s261 + $0x14] sm:$0xf] %v3109
      %3142 = vst [vmem:[%s261 + $0x18] sm:$0xf] %v3110
      %3143 = vst [vmem:[%s261 + $0x1c] sm:$0xf] %v3111
      %3144 = vst [vmem:[%s261 + $0x20] sm:$0xf] %v3112
      %3145 = vst [vmem:[%s261 + $0x24] sm:$0xf] %v3113
      %3146 = vst [vmem:[%s261 + $0x28] sm:$0xf] %v3114
      %3147 = vst [vmem:[%s261 + $0x2c] sm:$0xf] %v3115
      %3148 = vst [vmem:[%s261 + $0x30] sm:$0xf] %v3116
      %3149 = vst [vmem:[%s261 + $0x34] sm:$0xf] %v3117
      %3150 = vst [vmem:[%s261 + $0x38] sm:$0xf] %v3118
      %3151 = vst [vmem:[%s261 + $0x3c] sm:$0xf] %v3119
      %v3152 = vadd.f32 %v3010, %v3013
      %v3153 = vadd.f32 %v3152, %v3018
      %v3154 = vadd.f32 %v3153, %v3021
      %v3155 = vadd.f32 %v3154, %v3026
      %v3156 = vadd.f32 %v3155, %v3029
      %v3157 = vadd.f32 %v3156, %v3034
      %v3158 = vadd.f32 %v3157, %v3037
      %v3159 = vadd.f32 %v3158, %v3042
      %v3160 = vadd.f32 %v3159, %v3045
      %v3161 = vadd.f32 %v3160, %v3050
      %v3162 = vadd.f32 %v3161, %v3053
      %v3163 = vadd.f32 %v3162, %v3058
      %v3164 = vadd.f32 %v3163, %v3061
      %v3165 = vadd.f32 %v3164, %v3066
      %v3166 = vadd.f32 %v3165, %v3069
      %v3167 = vrot.slane %v3166, 4
      %v3168 = vadd.f32 %v3166, %v3167
      %v3169 = vrot.slane %v3168, 2
      %v3170 = vadd.f32 %v3168, %v3169
      %v3171 = vrot.slane %v3170, 1
      %v3172 = vadd.f32 %v3170, %v3171
      %v3173 = vmul.f32 %v3010, %v3010
      %v3174 = vmul.f32 %v3013, %v3013
      %v3175 = vmul.f32 %v3018, %v3018
      %v3176 = vmul.f32 %v3021, %v3021
      %v3177 = vmul.f32 %v3026, %v3026
      %v3178 = vmul.f32 %v3029, %v3029
      %v3179 = vmul.f32 %v3034, %v3034
      %v3180 = vmul.f32 %v3037, %v3037
      %v3181 = vmul.f32 %v3042, %v3042
      %v3182 = vmul.f32 %v3045, %v3045
      %v3183 = vmul.f32 %v3050, %v3050
      %v3184 = vmul.f32 %v3053, %v3053
      %v3185 = vmul.f32 %v3058, %v3058
      %v3186 = vmul.f32 %v3061, %v3061
      %v3187 = vmul.f32 %v3066, %v3066
      %v3188 = vmul.f32 %v3069, %v3069
      %v3189 = vadd.f32 %v3173, %v3174
      %v3190 = vadd.f32 %v3189, %v3175
      %v3191 = vadd.f32 %v3190, %v3176
      %v3192 = vadd.f32 %v3191, %v3177
      %v3193 = vadd.f32 %v3192, %v3178
      %v3194 = vadd.f32 %v3193, %v3179
      %v3195 = vadd.f32 %v3194, %v3180
      %v3196 = vadd.f32 %v3195, %v3181
      %v3197 = vadd.f32 %v3196, %v3182
      %v3198 = vadd.f32 %v3197, %v3183
      %v3199 = vadd.f32 %v3198, %v3184
      %v3200 = vadd.f32 %v3199, %v3185
      %v3201 = vadd.f32 %v3200, %v3186
      %v3202 = vadd.f32 %v3201, %v3187
      %v3203 = vadd.f32 %v3202, %v3188
      %v3204 = vrot.slane %v3203, 4
      %v3205 = vadd.f32 %v3203, %v3204
      %v3206 = vrot.slane %v3205, 2
      %v3207 = vadd.f32 %v3205, %v3206
      %v3208 = vrot.slane %v3207, 1
      %v3209 = vadd.f32 %v3207, %v3208
      %vm3210 = vcmask 1040384
      %v3211 = vsel %vm3210, %v3172, %v3209
      %vm3212 = vcmask 1041408
      %v3213 = vsel %vm3212, %v3211, 0.0
      %3214 = vst [vmem:[%s270] sm:$0xff] %v3213
      %s3215 = smul.u32 8, %s22
      %p3216 = scmp.lt.s32.totalorder %s21, 1
      %s3217 = scalar_select %p3216, %s21, 1
      %p3218 = scmp.lt.s32.totalorder %s3215, 15
      %s3219 = scalar_select %p3218, %s3215, 15
      %s3220 = smul.addr %s3219, 2
      %s3221 = smul.addr %s3217, 32
      %s3222 = sadd.s32 %s3220, %s3221
      %s3223 = smul.addr %s3222, 4
      %s3224 = scalar_lea.vmem %s4, %s3223
      %p3225 = scmp.lt.s32.totalorder %s21, 1
      %s3226 = scalar_select %p3225, %s21, 1
      %p3227 = scmp.lt.s32.totalorder %s22, 1
      %s3228 = scalar_select %p3227, %s22, 1
      %s3229 = smul.addr %s3226, 2
      %s3230 = sadd.s32 %s3228, %s3229
      %s3231 = smul.addr %s3230, 8
      %s3232 = scalar_lea.vmem %s5, %s3231
      // Predicated region
      $region45: #{res_batchnorm_block.4} parent=35 // pred_check
        %p3233 = pneg %p138
      $region46: #{res_batchnorm_block.4} parent=35 // pred_check_branch
        %3235 = sbr.rel (%p3233) target = $region48
      $region47: #{res_batchnorm_block.4} parent=35 // pred_region
        %s3236 = smul.u32 8, %s22
      $region48: #{res_batchnorm_block.4} parent=35 // pred_fallthru
        _
      // Predicated region
      $region49: #{res_batchnorm_block.4} parent=35 // pred_check
        %p3237 = pneg %p166
      $region50: #{res_batchnorm_block.4} parent=35 // pred_check_branch
        %3239 = sbr.rel (%p3237) target = $region52
      $region51: #{res_batchnorm_block.4} parent=35 // pred_region
        _
      $region52: #{res_batchnorm_block.4} parent=35 // pred_fallthru
        _
    $region36: #{res_batchnorm_block.4} parent=5 // pred_fallthru
      _
    %p3240 = scmp.le.s32.totalorder 2, %s12
    // Predicated region
    $region53: #{res_batchnorm_block.4} parent=5 // pred_check
      %p3241 = pneg %p3240
    $region54: #{res_batchnorm_block.4} parent=5 // pred_check_branch
      %3243 = sbr.rel (%p3241) target = $region56
    $region55: #{res_batchnorm_block.4} parent=5 // pred_region
      %s3244 = ssub.s32 %s12, 2
      // Predicated region
      $region57: #{res_batchnorm_block.4} parent=55 // pred_check
        %p3245 = pneg %p144
      $region58: #{res_batchnorm_block.4} parent=55 // pred_check_branch
        %3247 = sbr.rel (%p3245) target = $region60
      $region59: #{res_batchnorm_block.4} parent=55 // pred_region
        %s3248 = smul.u32 8, %s24
        %p3249 = scmp.lt.s32.totalorder %s23, 1
        %s3250 = scalar_select %p3249, %s23, 1
        %p3251 = scmp.lt.s32.totalorder %s3248, 15
        %s3252 = scalar_select %p3251, %s3248, 15
        %s3253 = smul.addr %s3252, 2
        %s3254 = smul.addr %s3250, 32
        %s3255 = sadd.s32 %s3253, %s3254
        %s3256 = smul.addr %s3255, 4
        %s3257 = scalar_lea.vmem %s4, %s3256
      $region60: #{res_batchnorm_block.4} parent=55 // pred_fallthru
        _
      // Predicated region
      $region61: #{res_batchnorm_block.4} parent=55 // pred_check
        %p3258 = pneg %p172
      $region62: #{res_batchnorm_block.4} parent=55 // pred_check_branch
        %3260 = sbr.rel (%p3258) target = $region64
      $region63: #{res_batchnorm_block.4} parent=55 // pred_region
        %p3261 = scmp.lt.s32.totalorder %s23, 1
        %s3262 = scalar_select %p3261, %s23, 1
        %p3263 = scmp.lt.s32.totalorder %s24, 1
        %s3264 = scalar_select %p3263, %s24, 1
        %s3265 = smul.addr %s3262, 2
        %s3266 = sadd.s32 %s3264, %s3265
        %s3267 = smul.addr %s3266, 8
        %s3268 = scalar_lea.vmem %s5, %s3267
      $region64: #{res_batchnorm_block.4} parent=55 // pred_fallthru
        _
    $region56: #{res_batchnorm_block.4} parent=5 // pred_fallthru
      _
  $region6: #{res_batchnorm_block.4} parent=0 // loop_footer
    %s16 = sadd.s32 1, %s12
  $region7: #{res_batchnorm_block.4} parent=0 // loop_footer_branch
    %11 = sbr.rel target = $region3
  $region8: #{res_batchnorm_block.4} parent=0 // loop_exit
    _

</llo_original>
